<compile_context>
chip_gen: v5e
topology: v5e:2x2
jax: 0.10.0
libtpu: 0.0.40
codegen_flags: <defaults>
</compile_context>

<pallas_src>
import jax
import jax.numpy as jnp
from jax.experimental import pallas as pl
from jax.experimental.pallas import tpu as pltpu

IN_SHAPE = 768
HIDDEN = 768
OUT_SHAPE = 1
OUT_LANES = 128          # lane-dense output tile width
BN_EPS = 1e-5
DEFAULT_TILE_B = 256     # multiple of 128 -> fills MXU rows at large batch


def _round_up(x, m):
    return (x + m - 1) // m * m


# -----------------------------------------------------------------------------
# Kernel: one batch tile through the whole (BN-folded) network.
# -----------------------------------------------------------------------------
def siamese_kernel(wt_ref, mut_ref, w1_ref, b1_ref, w2_ref, b2_ref,
                   w3_ref, b3_ref, o_ref):
    # Siamese difference (f32, VPU).
    x = mut_ref[...] - wt_ref[...]

    # Block 1: Linear(768, 768) + ReLU.  (BN1 is pre-folded into W2'/b2'.)
    h = jnp.dot(x.astype(jnp.bfloat16), w1_ref[...],
                preferred_element_type=jnp.float32) + b1_ref[...]
    h = jnp.maximum(h, 0.0)

    # Block 2: Linear(768, 768) + ReLU.  (BN2 is pre-folded into W3'/b3'.)
    h = jnp.dot(h.astype(jnp.bfloat16), w2_ref[...],
                preferred_element_type=jnp.float32) + b2_ref[...]
    h = jnp.maximum(h, 0.0)

    # Head: Linear(768 -> 1) as VPU multiply + lane reduction (an Mx768x1 MXU
    # matmul would use 1/256 of the MXU columns for the same push/pop latency).
    y = jnp.sum(h * w3_ref[...], axis=-1, keepdims=True)          # (tile_b, 1)

    # Lane-dense store: replicate across 128 lanes; wrapper keeps column 0.
    o_ref[...] = (jnp.broadcast_to(y, o_ref.shape) + b3_ref[...]).astype(o_ref.dtype)


# -----------------------------------------------------------------------------
# Wrapper: parameter folding + pallas_call with a batch grid.
# -----------------------------------------------------------------------------
def fold_params(p):
    """Fold eval-mode BatchNorm (which follows each activation) into the NEXT
    Linear layer: BN(h) @ W + b == h @ (diag(s) W) + (t @ W + b)."""
    hi = jax.lax.Precision.HIGHEST

    def bn_affine(g, be, m, v):
        s = g * jax.lax.rsqrt(v + BN_EPS)
        return s, be - m * s

    s1, t1 = bn_affine(p["g1"], p["be1"], p["m1"], p["v1"])
    s2, t2 = bn_affine(p["g2"], p["be2"], p["m2"], p["v2"])
    w2f = p["w2"] * s1.reshape(-1, 1)
    b2f = jnp.dot(t1, p["w2"], precision=hi) + p["b2"]
    w3f = p["w3"] * s2.reshape(-1, 1)                    # (768, 1)
    b3f = jnp.dot(t2, p["w3"], precision=hi) + p["b3"]   # (1, 1)
    return {
        "w1": p["w1"], "b1": p["b1"],
        "w2": w2f, "b2": b2f,
        "w3row": w3f.T,                                  # (1, 768) for the VPU head
        "b3": b3f,
    }


def siamese_forward(seq_wt, seq_mut, folded_params, *, tile_b=DEFAULT_TILE_B):
    assert seq_wt.shape == seq_mut.shape and seq_wt.shape[1] == IN_SHAPE
    B = seq_wt.shape[0]
    B_pad = _round_up(B, 8)
    if B_pad != B:
        pad = ((0, B_pad - B), (0, 0))
        seq_wt = jnp.pad(seq_wt, pad)
        seq_mut = jnp.pad(seq_mut, pad)
    tb = min(_round_up(tile_b, 8), B_pad)
    grid = (pl.cdiv(B_pad, tb),)

    # bf16 matmul operands (f32 accumulation in-kernel); biases / head row stay f32.
    w1 = folded_params["w1"].astype(jnp.bfloat16)
    w2 = folded_params["w2"].astype(jnp.bfloat16)
    b3_lanes = jnp.broadcast_to(folded_params["b3"], (1, OUT_LANES))

    args = (seq_wt, seq_mut, w1, folded_params["b1"], w2, folded_params["b2"],
            folded_params["w3row"], b3_lanes)

    batch_spec = pl.BlockSpec((tb, IN_SHAPE), lambda i: (i, 0))

    def resident(shape):
        # Constant index_map: weights stay VMEM-resident across batch tiles.
        return pl.BlockSpec(shape, lambda i: (0, 0))

    in_specs = [
        batch_spec, batch_spec,
        resident((IN_SHAPE, HIDDEN)), resident((1, HIDDEN)),
        resident((HIDDEN, HIDDEN)), resident((1, HIDDEN)),
        resident((1, HIDDEN)), resident((1, OUT_LANES)),
    ]
    out_specs = pl.BlockSpec((tb, OUT_LANES), lambda i: (i, 0))

    out = pl.pallas_call(
        siamese_kernel,
        out_shape=jax.ShapeDtypeStruct((B_pad, OUT_LANES), jnp.float32),
        grid=grid,
        in_specs=in_specs,
        out_specs=out_specs,
        compiler_params=pltpu.CompilerParams(
            dimension_semantics=("parallel",),   # shard batch tiles across TCs
            vmem_limit_bytes=16 << 20,           # ~10 MiB actual footprint @ tb=256
        ),
    )(*args)
    return out[:B, :OUT_SHAPE]


# -----------------------------------------------------------------------------
# Parameter init (PyTorch-style) and pure-JAX references.
# -----------------------------------------------------------------------------
def init_params(key):
    ks = jax.random.split(key, 14)

    def linear(kw, kb, fan_in, fan_out):
        bound = 1.0 / jnp.sqrt(jnp.float32(fan_in))
        w = jax.random.uniform(kw, (fan_in, fan_out), jnp.float32, -bound, bound)
        b = jax.random.uniform(kb, (1, fan_out), jnp.float32, -bound, bound)
        return w, b

    def batchnorm(kg, kb, km, kv):
        # Non-trivial running stats so the BN-folding path is actually exercised.
        g = jax.random.uniform(kg, (1, HIDDEN), jnp.float32, 0.8, 1.2)
        be = 0.1 * jax.random.normal(kb, (1, HIDDEN), jnp.float32)
        m = 0.1 * jax.random.normal(km, (1, HIDDEN), jnp.float32)
        v = jax.random.uniform(kv, (1, HIDDEN), jnp.float32, 0.8, 1.2)
        return g, be, m, v

    w1, b1 = linear(ks[0], ks[1], IN_SHAPE, HIDDEN)
    w2, b2 = linear(ks[2], ks[3], HIDDEN, HIDDEN)
    w3, b3 = linear(ks[4], ks[5], HIDDEN, OUT_SHAPE)
    g1, be1, m1, v1 = batchnorm(ks[6], ks[7], ks[8], ks[9])
    g2, be2, m2, v2 = batchnorm(ks[10], ks[11], ks[12], ks[13])
    return {
        "w1": w1, "b1": b1, "g1": g1, "be1": be1, "m1": m1, "v1": v1,
        "w2": w2, "b2": b2, "g2": g2, "be2": be2, "m2": m2, "v2": v2,
        "w3": w3, "b3": b3,
    }


def reference_unfolded_f32(wt, mut, p):
    """Original module math (eval mode), full f32."""
    hi = jax.lax.Precision.HIGHEST

    def bn(h, g, be, m, v):
        return (h - m) * jax.lax.rsqrt(v + BN_EPS) * g + be

    x = mut - wt
    h = jnp.maximum(jnp.dot(x, p["w1"], precision=hi) + p["b1"], 0.0)
    h = bn(h, p["g1"], p["be1"], p["m1"], p["v1"])
    h = jnp.maximum(jnp.dot(h, p["w2"], precision=hi) + p["b2"], 0.0)
    h = bn(h, p["g2"], p["be2"], p["m2"], p["v2"])
    return jnp.dot(h, p["w3"], precision=hi) + p["b3"]


def reference_folded_f32(wt, mut, fp):
    """Folded parameters, full f32 (validates the BN-folding algebra)."""
    hi = jax.lax.Precision.HIGHEST
    x = mut - wt
    h = jnp.maximum(jnp.dot(x, fp["w1"], precision=hi) + fp["b1"], 0.0)
    h = jnp.maximum(jnp.dot(h, fp["w2"], precision=hi) + fp["b2"], 0.0)
    return jnp.sum(h * fp["w3row"], axis=-1, keepdims=True) + fp["b3"]


def reference_matched(wt, mut, fp):
    """Folded params with the kernel's precision choices (bf16 MXU, f32 accum)."""
    x = mut - wt
    h = jnp.dot(x.astype(jnp.bfloat16), fp["w1"].astype(jnp.bfloat16),
                preferred_element_type=jnp.float32) + fp["b1"]
    h = jnp.maximum(h, 0.0)
    h = jnp.dot(h.astype(jnp.bfloat16), fp["w2"].astype(jnp.bfloat16),
                preferred_element_type=jnp.float32) + fp["b2"]
    h = jnp.maximum(h, 0.0)
    return jnp.sum(h * fp["w3row"], axis=-1, keepdims=True) + fp["b3"]


if __name__ == "__main__":
    key = jax.random.PRNGKey(0)
    k_params, k_wt, k_mut = jax.random.split(key, 3)

    B = 8  # small demo batch
    params = init_params(k_params)
    folded = fold_params(params)
    seq_wt = jax.random.normal(k_wt, (B, IN_SHAPE), jnp.float32)
    seq_mut = jax.random.normal(k_mut, (B, IN_SHAPE), jnp.float32)

    out = siamese_forward(seq_wt, seq_mut, folded)
    out = jax.block_until_ready(out)
    assert out.shape == (B, OUT_SHAPE)

    # 1) BN folding is algebraically exact (pure JAX, f32).
    ref_f32 = reference_unfolded_f32(seq_wt, seq_mut, params)
    ref_fold = reference_folded_f32(seq_wt, seq_mut, folded)
    assert jnp.allclose(ref_fold, ref_f32, atol=1e-4, rtol=1e-4)

    # 2) Kernel matches a precision-matched (bf16 matmul) pure-JAX reference.
    ref_bf16 = reference_matched(seq_wt, seq_mut, folded)
    assert jnp.allclose(out, ref_bf16, atol=1e-3, rtol=1e-3)

    print("KERNEL_OK")
</pallas_src>

<mosaic_0001>
module attributes {stable_mosaic.version = 11 : i64} {
  func.func @siamese_kernel(%arg0: i32, %arg1: memref<8x768xf32, #tpu.memory_space<vmem>>, %arg2: memref<8x768xf32, #tpu.memory_space<vmem>>, %arg3: memref<768x768xbf16, #tpu.memory_space<vmem>>, %arg4: memref<1x768xf32, #tpu.memory_space<vmem>>, %arg5: memref<768x768xbf16, #tpu.memory_space<vmem>>, %arg6: memref<1x768xf32, #tpu.memory_space<vmem>>, %arg7: memref<1x768xf32, #tpu.memory_space<vmem>>, %arg8: memref<1x128xf32, #tpu.memory_space<vmem>>, %arg9: memref<8x128xf32, #tpu.memory_space<vmem>>) attributes {dimension_semantics = [#tpu.dimension_semantics<parallel>], iteration_bounds = array<i64: 1>, scalar_prefetch = 0 : i64, scratch_operands = 0 : i64, tpu.core_type = #tpu.core_type<tc>, window_params = [{transform_indices = @transform_0, window_bounds = array<i64: 8, 768>}, {transform_indices = @transform_1, window_bounds = array<i64: 8, 768>}, {pipeline_mode = #tpu.pipeline_mode<synchronous>, transform_indices = @transform_2, window_bounds = array<i64: 768, 768>}, {pipeline_mode = #tpu.pipeline_mode<synchronous>, transform_indices = @transform_3, window_bounds = array<i64: 1, 768>}, {pipeline_mode = #tpu.pipeline_mode<synchronous>, transform_indices = @transform_4, window_bounds = array<i64: 768, 768>}, {pipeline_mode = #tpu.pipeline_mode<synchronous>, transform_indices = @transform_5, window_bounds = array<i64: 1, 768>}, {pipeline_mode = #tpu.pipeline_mode<synchronous>, transform_indices = @transform_6, window_bounds = array<i64: 1, 768>}, {pipeline_mode = #tpu.pipeline_mode<synchronous>, transform_indices = @transform_7, window_bounds = array<i64: 1, 128>}, {transform_indices = @transform_8, window_bounds = array<i64: 8, 128>}]} {
    %c0 = arith.constant 0 : index
    %c0_0 = arith.constant 0 : index
    %0 = vector.load %arg2[%c0, %c0_0] : memref<8x768xf32, #tpu.memory_space<vmem>>, vector<8x768xf32>
    %c0_1 = arith.constant 0 : index
    %c0_2 = arith.constant 0 : index
    %1 = vector.load %arg1[%c0_1, %c0_2] : memref<8x768xf32, #tpu.memory_space<vmem>>, vector<8x768xf32>
    %2 = arith.subf %0, %1 : vector<8x768xf32>
    %3 = arith.truncf %2 : vector<8x768xf32> to vector<8x768xbf16>
    %c0_3 = arith.constant 0 : index
    %c0_4 = arith.constant 0 : index
    %4 = vector.load %arg3[%c0_3, %c0_4] : memref<768x768xbf16, #tpu.memory_space<vmem>>, vector<768x768xbf16>
    %cst = arith.constant dense<0.000000e+00> : vector<8x768xf32>
    %5 = tpu.matmul %3, %4, %cst {dimension_numbers = #tpu.dot_dimension_numbers<[1], [0], [0], [1], [0, 0, 1, 1], [], []>} : vector<8x768xbf16>, vector<768x768xbf16>, vector<8x768xf32> -> vector<8x768xf32>
    %c0_5 = arith.constant 0 : index
    %c0_6 = arith.constant 0 : index
    %6 = vector.load %arg4[%c0_5, %c0_6] : memref<1x768xf32, #tpu.memory_space<vmem>>, vector<1x768xf32>
    %7 = vector.broadcast %6 : vector<1x768xf32> to vector<8x768xf32>
    %8 = arith.addf %5, %7 : vector<8x768xf32>
    %cst_7 = arith.constant 0.000000e+00 : f32
    %9 = vector.broadcast %cst_7 : f32 to vector<8x768xf32>
    %10 = arith.maximumf %8, %9 : vector<8x768xf32>
    %11 = arith.truncf %10 : vector<8x768xf32> to vector<8x768xbf16>
    %c0_8 = arith.constant 0 : index
    %c0_9 = arith.constant 0 : index
    %12 = vector.load %arg5[%c0_8, %c0_9] : memref<768x768xbf16, #tpu.memory_space<vmem>>, vector<768x768xbf16>
    %cst_10 = arith.constant dense<0.000000e+00> : vector<8x768xf32>
    %13 = tpu.matmul %11, %12, %cst_10 {dimension_numbers = #tpu.dot_dimension_numbers<[1], [0], [0], [1], [0, 0, 1, 1], [], []>} : vector<8x768xbf16>, vector<768x768xbf16>, vector<8x768xf32> -> vector<8x768xf32>
    %c0_11 = arith.constant 0 : index
    %c0_12 = arith.constant 0 : index
    %14 = vector.load %arg6[%c0_11, %c0_12] : memref<1x768xf32, #tpu.memory_space<vmem>>, vector<1x768xf32>
    %15 = vector.broadcast %14 : vector<1x768xf32> to vector<8x768xf32>
    %16 = arith.addf %13, %15 : vector<8x768xf32>
    %cst_13 = arith.constant 0.000000e+00 : f32
    %17 = vector.broadcast %cst_13 : f32 to vector<8x768xf32>
    %18 = arith.maximumf %16, %17 : vector<8x768xf32>
    %c0_14 = arith.constant 0 : index
    %c0_15 = arith.constant 0 : index
    %19 = vector.load %arg7[%c0_14, %c0_15] : memref<1x768xf32, #tpu.memory_space<vmem>>, vector<1x768xf32>
    %20 = vector.broadcast %19 : vector<1x768xf32> to vector<8x768xf32>
    %21 = arith.mulf %18, %20 : vector<8x768xf32>
    %cst_16 = arith.constant dense<0.000000e+00> : vector<8xf32>
    %22 = vector.multi_reduction <add>, %21, %cst_16 [1] : vector<8x768xf32> to vector<8xf32>
    %23 = vector.shape_cast %22 : vector<8xf32> to vector<8x1xf32>
    %24 = vector.shape_cast %23 : vector<8x1xf32> to vector<8x1xf32>
    %25 = vector.broadcast %24 : vector<8x1xf32> to vector<8x128xf32>
    %c0_17 = arith.constant 0 : index
    %c0_18 = arith.constant 0 : index
    %26 = vector.load %arg8[%c0_17, %c0_18] : memref<1x128xf32, #tpu.memory_space<vmem>>, vector<1x128xf32>
    %27 = vector.broadcast %26 : vector<1x128xf32> to vector<8x128xf32>
    %28 = arith.addf %25, %27 : vector<8x128xf32>
    %c0_19 = arith.constant 0 : index
    %c0_20 = arith.constant 0 : index
    %29 = vector.load %arg9[%c0_19, %c0_20] : memref<8x128xf32, #tpu.memory_space<vmem>>, vector<8x128xf32>
    tpu.vector_store %arg9[%c0_19, %c0_20], %28 {strides = array<i32>} : memref<8x128xf32, #tpu.memory_space<vmem>>, vector<8x128xf32>,
    return
  }
  func.func @transform_0(%arg0: i32) -> (i32, i32) {
    %c0_i32 = arith.constant 0 : i32
    %c0_i32_0 = arith.constant 0 : i32
    return %arg0, %c0_i32 : i32, i32
  }
  func.func @transform_1(%arg0: i32) -> (i32, i32) {
    %c0_i32 = arith.constant 0 : i32
    %c0_i32_0 = arith.constant 0 : i32
    return %arg0, %c0_i32 : i32, i32
  }
  func.func @transform_2(%arg0: i32) -> (i32, i32) {
    %c0_i32 = arith.constant 0 : i32
    %c0_i32_0 = arith.constant 0 : i32
    %c0_i32_1 = arith.constant 0 : i32
    return %c0_i32, %c0_i32_0 : i32, i32
  }
  func.func @transform_3(%arg0: i32) -> (i32, i32) {
    %c0_i32 = arith.constant 0 : i32
    %c0_i32_0 = arith.constant 0 : i32
    %c0_i32_1 = arith.constant 0 : i32
    return %c0_i32, %c0_i32_0 : i32, i32
  }
  func.func @transform_4(%arg0: i32) -> (i32, i32) {
    %c0_i32 = arith.constant 0 : i32
    %c0_i32_0 = arith.constant 0 : i32
    %c0_i32_1 = arith.constant 0 : i32
    return %c0_i32, %c0_i32_0 : i32, i32
  }
  func.func @transform_5(%arg0: i32) -> (i32, i32) {
    %c0_i32 = arith.constant 0 : i32
    %c0_i32_0 = arith.constant 0 : i32
    %c0_i32_1 = arith.constant 0 : i32
    return %c0_i32, %c0_i32_0 : i32, i32
  }
  func.func @transform_6(%arg0: i32) -> (i32, i32) {
    %c0_i32 = arith.constant 0 : i32
    %c0_i32_0 = arith.constant 0 : i32
    %c0_i32_1 = arith.constant 0 : i32
    return %c0_i32, %c0_i32_0 : i32, i32
  }
  func.func @transform_7(%arg0: i32) -> (i32, i32) {
    %c0_i32 = arith.constant 0 : i32
    %c0_i32_0 = arith.constant 0 : i32
    %c0_i32_1 = arith.constant 0 : i32
    return %c0_i32, %c0_i32_0 : i32, i32
  }
  func.func @transform_8(%arg0: i32) -> (i32, i32) {
    %c0_i32 = arith.constant 0 : i32
    %c0_i32_0 = arith.constant 0 : i32
    return %arg0, %c0_i32 : i32, i32
  }
}

</mosaic_0001>

<llo_original>
// kernel: tpu_custom_call.1
$region0: #{tpu_custom_call.1}
  #allocation0 [shape = 'u32[]', space=smem, size = 0x4, offset = 0x4, fixed_abs, tag = 'smem constant byte address 0x4 - core index']
  #allocation1 [shape = 'u32[72,128]{1,0:T(1,128)}', space=vmem, size = 0x9000, scoped, tag = 'internal scratch']
  %s0 = inlined_call_operand.hbm [shape: f32[8,768], index: 0, kind: input, shape index: {}]
  %s1 = inlined_call_operand.hbm [shape: f32[8,768], index: 1, kind: input, shape index: {}]
  %s2 = inlined_call_operand.hbm [shape: bf16[768,768], index: 2, kind: input, shape index: {}]
  %s3 = inlined_call_operand.hbm [shape: f32[1,768], index: 3, kind: input, shape index: {}]
  %s4 = inlined_call_operand.hbm [shape: bf16[768,768], index: 4, kind: input, shape index: {}]
  %s5 = inlined_call_operand.hbm [shape: f32[1,768], index: 5, kind: input, shape index: {}]
  %s6 = inlined_call_operand.hbm [shape: f32[1,768], index: 6, kind: input, shape index: {}]
  %s7 = inlined_call_operand.hbm [shape: f32[1,128], index: 7, kind: input, shape index: {}]
  %s8 = inlined_call_operand.hbm [shape: f32[8,128], index: 8, kind: output, shape index: {}]
  %s9 = sld [smem:[#allocation0]]
  $region74: #{tpu_custom_call.1} parent=0
    _
  %s11 = ssub.s32 1, %s9
  %s12 = scalar_select 0, %s11, %s9
  $region1: #{tpu_custom_call.1} parent=0
    #allocation2 [shape = 'u8[24576]{0}', space=vmem, size = 0x6000, scoped, tag = 'input window, operand 0, single buffered']
    #allocation3 [shape = 's32[1]{0}', space=sflag, size = 0x4, scoped, tag = 'scoped memory for tpu_custom_call.1']
    #allocation4 [shape = 's32[1]{0}', space=sflag, size = 0x4, scoped, tag = 'scoped memory for tpu_custom_call.1']
    #allocation5 [shape = 'u8[24576]{0}', space=vmem, size = 0x6000, scoped, tag = 'input window, operand 1, single buffered']
    #allocation6 [shape = 's32[1]{0}', space=sflag, size = 0x4, scoped, tag = 'scoped memory for tpu_custom_call.1']
    #allocation7 [shape = 'u8[1179648]{0}', space=vmem, size = 0x120000, scoped, tag = 'input window, operand 2, single buffered']
    #allocation8 [shape = 'u8[3072]{0}', space=vmem, size = 0xc00, scoped, tag = 'input window, operand 3, single buffered']
    #allocation9 [shape = 's32[1]{0}', space=sflag, size = 0x4, scoped, tag = 'scoped memory for tpu_custom_call.1']
    #allocation10 [shape = 'u8[1179648]{0}', space=vmem, size = 0x120000, scoped, tag = 'input window, operand 4, single buffered']
    #allocation11 [shape = 'u8[3072]{0}', space=vmem, size = 0xc00, scoped, tag = 'input window, operand 5, single buffered']
    #allocation12 [shape = 's32[1]{0}', space=sflag, size = 0x4, scoped, tag = 'scoped memory for tpu_custom_call.1']
    #allocation13 [shape = 'u8[3072]{0}', space=vmem, size = 0xc00, scoped, tag = 'input window, operand 6, single buffered']
    #allocation14 [shape = 'u8[512]{0}', space=vmem, size = 0x400, scoped, tag = 'input window, operand 7, single buffered']
    #allocation15 [shape = 's32[1]{0}', space=sflag, size = 0x4, scoped, tag = 'scoped memory for tpu_custom_call.1']
    #allocation16 [shape = 'u8[4096]{0}', space=vmem, size = 0x1000, scoped, tag = 'output window, operand 0, single buffered']
    %13 = vsyncpa [#allocation3], 0
    %14 = vsyncpa [#allocation6], 0
    %15 = vsyncpa [#allocation9], 0
    %16 = vsyncpa [#allocation12], 0
    %17 = vsyncpa [#allocation15], 0
    %18 = vsyncpa [#allocation4], 0
    // Predicated region
    $region2: #{tpu_custom_call.1} parent=1 // pred_check
      _
    $region3: #{tpu_custom_call.1} parent=1 // pred_check_branch
      %20 = sbr.rel (0) target = $region5
    $region4: #{tpu_custom_call.1} parent=1 // pred_region
      %22 = vsyncadd [#allocation3], 0
      %s24 = sshll.u32 %s0, 4
      %s25 = int_to_ptr.hbm [resolvable:$true] %s24
      %s26 = sshll.u32 [#allocation2], 4
      %s27 = int_to_ptr.vmem [resolvable:$true] %s26
      %29 = dma.hbm_to_vmem [thread:$0]  %s25, 768, %s27, [#allocation3]
    $region5: #{tpu_custom_call.1} parent=1 // pred_fallthru
      _
    // Predicated region
    $region6: #{tpu_custom_call.1} parent=1 // pred_check
      _
    $region7: #{tpu_custom_call.1} parent=1 // pred_check_branch
      %31 = sbr.rel (0) target = $region9
    $region8: #{tpu_custom_call.1} parent=1 // pred_region
      %33 = vsyncadd [#allocation6], 0
      %s35 = sshll.u32 %s1, 4
      %s36 = int_to_ptr.hbm [resolvable:$true] %s35
      %s37 = sshll.u32 [#allocation5], 4
      %s38 = int_to_ptr.vmem [resolvable:$true] %s37
      %40 = dma.hbm_to_vmem [thread:$0]  %s36, 768, %s38, [#allocation6]
    $region9: #{tpu_custom_call.1} parent=1 // pred_fallthru
      _
    // Predicated region
    $region10: #{tpu_custom_call.1} parent=1 // pred_check
      _
    $region11: #{tpu_custom_call.1} parent=1 // pred_check_branch
      %42 = sbr.rel (0) target = $region13
    $region12: #{tpu_custom_call.1} parent=1 // pred_region
      %44 = vsyncadd [#allocation6], 0
      %s45 = sshll.u32 %s2, 4
      %s46 = int_to_ptr.hbm [resolvable:$true] %s45
      %s47 = sshll.u32 [#allocation7], 4
      %s48 = int_to_ptr.vmem [resolvable:$true] %s47
      %53 = dma.hbm_to_vmem [thread:$0]  %s46, 36864, %s48, [#allocation6], 384, 384, 24
    $region13: #{tpu_custom_call.1} parent=1 // pred_fallthru
      _
    // Predicated region
    $region14: #{tpu_custom_call.1} parent=1 // pred_check
      _
    $region15: #{tpu_custom_call.1} parent=1 // pred_check_branch
      %55 = sbr.rel (0) target = $region17
    $region16: #{tpu_custom_call.1} parent=1 // pred_region
      %57 = vsyncadd [#allocation9], 0
      %s59 = sshll.u32 %s3, 4
      %s60 = int_to_ptr.hbm [resolvable:$true] %s59
      %s61 = sshll.u32 [#allocation8], 4
      %s62 = int_to_ptr.vmem [resolvable:$true] %s61
      %64 = dma.hbm_to_vmem [thread:$0]  %s60, 96, %s62, [#allocation9]
    $region17: #{tpu_custom_call.1} parent=1 // pred_fallthru
      _
    // Predicated region
    $region18: #{tpu_custom_call.1} parent=1 // pred_check
      _
    $region19: #{tpu_custom_call.1} parent=1 // pred_check_branch
      %66 = sbr.rel (0) target = $region21
    $region20: #{tpu_custom_call.1} parent=1 // pred_region
      %68 = vsyncadd [#allocation9], 0
      %s69 = sshll.u32 %s4, 4
      %s70 = int_to_ptr.hbm [resolvable:$true] %s69
      %s71 = sshll.u32 [#allocation10], 4
      %s72 = int_to_ptr.vmem [resolvable:$true] %s71
      %77 = dma.hbm_to_vmem [thread:$0]  %s70, 36864, %s72, [#allocation9], 384, 384, 24
    $region21: #{tpu_custom_call.1} parent=1 // pred_fallthru
      _
    // Predicated region
    $region22: #{tpu_custom_call.1} parent=1 // pred_check
      _
    $region23: #{tpu_custom_call.1} parent=1 // pred_check_branch
      %79 = sbr.rel (0) target = $region25
    $region24: #{tpu_custom_call.1} parent=1 // pred_region
      %81 = vsyncadd [#allocation12], 0
      %s83 = sshll.u32 %s5, 4
      %s84 = int_to_ptr.hbm [resolvable:$true] %s83
      %s85 = sshll.u32 [#allocation11], 4
      %s86 = int_to_ptr.vmem [resolvable:$true] %s85
      %88 = dma.hbm_to_vmem [thread:$0]  %s84, 96, %s86, [#allocation12]
    $region25: #{tpu_custom_call.1} parent=1 // pred_fallthru
      _
    // Predicated region
    $region26: #{tpu_custom_call.1} parent=1 // pred_check
      _
    $region27: #{tpu_custom_call.1} parent=1 // pred_check_branch
      %90 = sbr.rel (0) target = $region29
    $region28: #{tpu_custom_call.1} parent=1 // pred_region
      %92 = vsyncadd [#allocation12], 0
      %s94 = sshll.u32 %s6, 4
      %s95 = int_to_ptr.hbm [resolvable:$true] %s94
      %s96 = sshll.u32 [#allocation13], 4
      %s97 = int_to_ptr.vmem [resolvable:$true] %s96
      %99 = dma.hbm_to_vmem [thread:$0]  %s95, 96, %s97, [#allocation12]
    $region29: #{tpu_custom_call.1} parent=1 // pred_fallthru
      _
    // Predicated region
    $region30: #{tpu_custom_call.1} parent=1 // pred_check
      _
    $region31: #{tpu_custom_call.1} parent=1 // pred_check_branch
      %101 = sbr.rel (0) target = $region33
    $region32: #{tpu_custom_call.1} parent=1 // pred_region
      %103 = vsyncadd [#allocation15], 0
      %s105 = sshll.u32 %s7, 4
      %s106 = int_to_ptr.hbm [resolvable:$true] %s105
      %s107 = sshll.u32 [#allocation14], 4
      %s108 = int_to_ptr.vmem [resolvable:$true] %s107
      %110 = dma.hbm_to_vmem [thread:$0]  %s106, 16, %s108, [#allocation15]
    $region33: #{tpu_custom_call.1} parent=1 // pred_fallthru
      _
    // Predicated region
    $region34: #{tpu_custom_call.1} parent=1 // pred_check
      _
    $region35: #{tpu_custom_call.1} parent=1 // pred_check_branch
      %112 = sbr.rel (0) target = $region37
    $region36: #{tpu_custom_call.1} parent=1 // pred_region
      %114 = dma.done [#allocation3], 768
    $region37: #{tpu_custom_call.1} parent=1 // pred_fallthru
      _
    // Predicated region
    $region38: #{tpu_custom_call.1} parent=1 // pred_check
      _
    $region39: #{tpu_custom_call.1} parent=1 // pred_check_branch
      %116 = sbr.rel (0) target = $region41
    $region40: #{tpu_custom_call.1} parent=1 // pred_region
      %118 = dma.done [#allocation6], 768
    $region41: #{tpu_custom_call.1} parent=1 // pred_fallthru
      _
    // Predicated region
    $region42: #{tpu_custom_call.1} parent=1 // pred_check
      _
    $region43: #{tpu_custom_call.1} parent=1 // pred_check_branch
      %120 = sbr.rel (0) target = $region45
    $region44: #{tpu_custom_call.1} parent=1 // pred_region
      %122 = dma.done [#allocation6], 36864
    $region45: #{tpu_custom_call.1} parent=1 // pred_fallthru
      _
    // Predicated region
    $region46: #{tpu_custom_call.1} parent=1 // pred_check
      _
    $region47: #{tpu_custom_call.1} parent=1 // pred_check_branch
      %124 = sbr.rel (0) target = $region49
    $region48: #{tpu_custom_call.1} parent=1 // pred_region
      %126 = dma.done [#allocation9], 96
    $region49: #{tpu_custom_call.1} parent=1 // pred_fallthru
      _
    // Predicated region
    $region50: #{tpu_custom_call.1} parent=1 // pred_check
      _
    $region51: #{tpu_custom_call.1} parent=1 // pred_check_branch
      %128 = sbr.rel (0) target = $region53
    $region52: #{tpu_custom_call.1} parent=1 // pred_region
      %130 = dma.done [#allocation9], 36864
    $region53: #{tpu_custom_call.1} parent=1 // pred_fallthru
      _
    // Predicated region
    $region54: #{tpu_custom_call.1} parent=1 // pred_check
      _
    $region55: #{tpu_custom_call.1} parent=1 // pred_check_branch
      %132 = sbr.rel (0) target = $region57
    $region56: #{tpu_custom_call.1} parent=1 // pred_region
      %134 = dma.done [#allocation12], 96
    $region57: #{tpu_custom_call.1} parent=1 // pred_fallthru
      _
    // Predicated region
    $region58: #{tpu_custom_call.1} parent=1 // pred_check
      _
    $region59: #{tpu_custom_call.1} parent=1 // pred_check_branch
      %136 = sbr.rel (0) target = $region61
    $region60: #{tpu_custom_call.1} parent=1 // pred_region
      %138 = dma.done [#allocation12], 96
    $region61: #{tpu_custom_call.1} parent=1 // pred_fallthru
      _
    // Predicated region
    $region62: #{tpu_custom_call.1} parent=1 // pred_check
      _
    $region63: #{tpu_custom_call.1} parent=1 // pred_check_branch
      %140 = sbr.rel (0) target = $region65
    $region64: #{tpu_custom_call.1} parent=1 // pred_region
      %142 = dma.done [#allocation15], 16
    $region65: #{tpu_custom_call.1} parent=1 // pred_fallthru
      _
    %v143 = vld [vmem:[#allocation5] sm:$0xff]
    %v144 = vld [vmem:[#allocation5 + $0x8] sm:$0xff]
    %v145 = vld [vmem:[#allocation5 + $0x10] sm:$0xff]
    %v146 = vld [vmem:[#allocation5 + $0x18] sm:$0xff]
    %v147 = vld [vmem:[#allocation5 + $0x20] sm:$0xff]
    %v148 = vld [vmem:[#allocation5 + $0x28] sm:$0xff]
    %v149 = vld [vmem:[#allocation2] sm:$0xff]
    %v150 = vld [vmem:[#allocation2 + $0x8] sm:$0xff]
    %v151 = vld [vmem:[#allocation2 + $0x10] sm:$0xff]
    %v152 = vld [vmem:[#allocation2 + $0x18] sm:$0xff]
    %v153 = vld [vmem:[#allocation2 + $0x20] sm:$0xff]
    %v154 = vld [vmem:[#allocation2 + $0x28] sm:$0xff]
    %v155 = vsub.f32 %v143, %v149
    %v156 = vsub.f32 %v144, %v150
    %v157 = vsub.f32 %v145, %v151
    %v158 = vsub.f32 %v146, %v152
    %v159 = vsub.f32 %v147, %v153
    %v160 = vsub.f32 %v148, %v154
    %v161 = vpack.c.bf16 %v155, %v155
    %v162 = vpack.c.bf16 %v156, %v156
    %v163 = vpack.c.bf16 %v157, %v157
    %v164 = vpack.c.bf16 %v158, %v158
    %v165 = vpack.c.bf16 %v159, %v159
    %v166 = vpack.c.bf16 %v160, %v160
    %v167 = vld [vmem:[#allocation7] sm:$0xff]
    %v168 = vld [vmem:[#allocation7 + $0x8] sm:$0xff]
    %v169 = vld [vmem:[#allocation7 + $0x10] sm:$0xff]
    %v170 = vld [vmem:[#allocation7 + $0x18] sm:$0xff]
    %v171 = vld [vmem:[#allocation7 + $0x20] sm:$0xff]
    %v172 = vld [vmem:[#allocation7 + $0x28] sm:$0xff]
    %v173 = vld [vmem:[#allocation7 + $0x30] sm:$0xff]
    %v174 = vld [vmem:[#allocation7 + $0x38] sm:$0xff]
    %v175 = vld [vmem:[#allocation7 + $0x40] sm:$0xff]
    %v176 = vld [vmem:[#allocation7 + $0x48] sm:$0xff]
    %v177 = vld [vmem:[#allocation7 + $0x50] sm:$0xff]
    %v178 = vld [vmem:[#allocation7 + $0x58] sm:$0xff]
    %v179 = vld [vmem:[#allocation7 + $0x60] sm:$0xff]
    %v180 = vld [vmem:[#allocation7 + $0x68] sm:$0xff]
    %v181 = vld [vmem:[#allocation7 + $0x70] sm:$0xff]
    %v182 = vld [vmem:[#allocation7 + $0x78] sm:$0xff]
    %v183 = vld [vmem:[#allocation7 + $0x80] sm:$0xff]
    %v184 = vld [vmem:[#allocation7 + $0x88] sm:$0xff]
    %v185 = vld [vmem:[#allocation7 + $0x90] sm:$0xff]
    %v186 = vld [vmem:[#allocation7 + $0x98] sm:$0xff]
    %v187 = vld [vmem:[#allocation7 + $0xa0] sm:$0xff]
    %v188 = vld [vmem:[#allocation7 + $0xa8] sm:$0xff]
    %v189 = vld [vmem:[#allocation7 + $0xb0] sm:$0xff]
    %v190 = vld [vmem:[#allocation7 + $0xb8] sm:$0xff]
    %v191 = vld [vmem:[#allocation7 + $0xc0] sm:$0xff]
    %v192 = vld [vmem:[#allocation7 + $0xc8] sm:$0xff]
    %v193 = vld [vmem:[#allocation7 + $0xd0] sm:$0xff]
    %v194 = vld [vmem:[#allocation7 + $0xd8] sm:$0xff]
    %v195 = vld [vmem:[#allocation7 + $0xe0] sm:$0xff]
    %v196 = vld [vmem:[#allocation7 + $0xe8] sm:$0xff]
    %v197 = vld [vmem:[#allocation7 + $0xf0] sm:$0xff]
    %v198 = vld [vmem:[#allocation7 + $0xf8] sm:$0xff]
    %v199 = vld [vmem:[#allocation7 + $0x100] sm:$0xff]
    %v200 = vld [vmem:[#allocation7 + $0x108] sm:$0xff]
    %v201 = vld [vmem:[#allocation7 + $0x110] sm:$0xff]
    %v202 = vld [vmem:[#allocation7 + $0x118] sm:$0xff]
    %v203 = vld [vmem:[#allocation7 + $0x120] sm:$0xff]
    %v204 = vld [vmem:[#allocation7 + $0x128] sm:$0xff]
    %v205 = vld [vmem:[#allocation7 + $0x130] sm:$0xff]
    %v206 = vld [vmem:[#allocation7 + $0x138] sm:$0xff]
    %v207 = vld [vmem:[#allocation7 + $0x140] sm:$0xff]
    %v208 = vld [vmem:[#allocation7 + $0x148] sm:$0xff]
    %v209 = vld [vmem:[#allocation7 + $0x150] sm:$0xff]
    %v210 = vld [vmem:[#allocation7 + $0x158] sm:$0xff]
    %v211 = vld [vmem:[#allocation7 + $0x160] sm:$0xff]
    %v212 = vld [vmem:[#allocation7 + $0x168] sm:$0xff]
    %v213 = vld [vmem:[#allocation7 + $0x170] sm:$0xff]
    %v214 = vld [vmem:[#allocation7 + $0x178] sm:$0xff]
    %v215 = vld [vmem:[#allocation7 + $0x180] sm:$0xff]
    %v216 = vld [vmem:[#allocation7 + $0x188] sm:$0xff]
    %v217 = vld [vmem:[#allocation7 + $0x190] sm:$0xff]
    %v218 = vld [vmem:[#allocation7 + $0x198] sm:$0xff]
    %v219 = vld [vmem:[#allocation7 + $0x1a0] sm:$0xff]
    %v220 = vld [vmem:[#allocation7 + $0x1a8] sm:$0xff]
    %v221 = vld [vmem:[#allocation7 + $0x1b0] sm:$0xff]
    %v222 = vld [vmem:[#allocation7 + $0x1b8] sm:$0xff]
    %v223 = vld [vmem:[#allocation7 + $0x1c0] sm:$0xff]
    %v224 = vld [vmem:[#allocation7 + $0x1c8] sm:$0xff]
    %v225 = vld [vmem:[#allocation7 + $0x1d0] sm:$0xff]
    %v226 = vld [vmem:[#allocation7 + $0x1d8] sm:$0xff]
    %v227 = vld [vmem:[#allocation7 + $0x1e0] sm:$0xff]
    %v228 = vld [vmem:[#allocation7 + $0x1e8] sm:$0xff]
    %v229 = vld [vmem:[#allocation7 + $0x1f0] sm:$0xff]
    %v230 = vld [vmem:[#allocation7 + $0x1f8] sm:$0xff]
    %v231 = vld [vmem:[#allocation7 + $0x200] sm:$0xff]
    %v232 = vld [vmem:[#allocation7 + $0x208] sm:$0xff]
    %v233 = vld [vmem:[#allocation7 + $0x210] sm:$0xff]
    %v234 = vld [vmem:[#allocation7 + $0x218] sm:$0xff]
    %v235 = vld [vmem:[#allocation7 + $0x220] sm:$0xff]
    %v236 = vld [vmem:[#allocation7 + $0x228] sm:$0xff]
    %v237 = vld [vmem:[#allocation7 + $0x230] sm:$0xff]
    %v238 = vld [vmem:[#allocation7 + $0x238] sm:$0xff]
    %v239 = vld [vmem:[#allocation7 + $0x240] sm:$0xff]
    %v240 = vld [vmem:[#allocation7 + $0x248] sm:$0xff]
    %v241 = vld [vmem:[#allocation7 + $0x250] sm:$0xff]
    %v242 = vld [vmem:[#allocation7 + $0x258] sm:$0xff]
    %v243 = vld [vmem:[#allocation7 + $0x260] sm:$0xff]
    %v244 = vld [vmem:[#allocation7 + $0x268] sm:$0xff]
    %v245 = vld [vmem:[#allocation7 + $0x270] sm:$0xff]
    %v246 = vld [vmem:[#allocation7 + $0x278] sm:$0xff]
    %v247 = vld [vmem:[#allocation7 + $0x280] sm:$0xff]
    %v248 = vld [vmem:[#allocation7 + $0x288] sm:$0xff]
    %v249 = vld [vmem:[#allocation7 + $0x290] sm:$0xff]
    %v250 = vld [vmem:[#allocation7 + $0x298] sm:$0xff]
    %v251 = vld [vmem:[#allocation7 + $0x2a0] sm:$0xff]
    %v252 = vld [vmem:[#allocation7 + $0x2a8] sm:$0xff]
    %v253 = vld [vmem:[#allocation7 + $0x2b0] sm:$0xff]
    %v254 = vld [vmem:[#allocation7 + $0x2b8] sm:$0xff]
    %v255 = vld [vmem:[#allocation7 + $0x2c0] sm:$0xff]
    %v256 = vld [vmem:[#allocation7 + $0x2c8] sm:$0xff]
    %v257 = vld [vmem:[#allocation7 + $0x2d0] sm:$0xff]
    %v258 = vld [vmem:[#allocation7 + $0x2d8] sm:$0xff]
    %v259 = vld [vmem:[#allocation7 + $0x2e0] sm:$0xff]
    %v260 = vld [vmem:[#allocation7 + $0x2e8] sm:$0xff]
    %v261 = vld [vmem:[#allocation7 + $0x2f0] sm:$0xff]
    %v262 = vld [vmem:[#allocation7 + $0x2f8] sm:$0xff]
    %v263 = vld [vmem:[#allocation7 + $0x300] sm:$0xff]
    %v264 = vld [vmem:[#allocation7 + $0x308] sm:$0xff]
    %v265 = vld [vmem:[#allocation7 + $0x310] sm:$0xff]
    %v266 = vld [vmem:[#allocation7 + $0x318] sm:$0xff]
    %v267 = vld [vmem:[#allocation7 + $0x320] sm:$0xff]
    %v268 = vld [vmem:[#allocation7 + $0x328] sm:$0xff]
    %v269 = vld [vmem:[#allocation7 + $0x330] sm:$0xff]
    %v270 = vld [vmem:[#allocation7 + $0x338] sm:$0xff]
    %v271 = vld [vmem:[#allocation7 + $0x340] sm:$0xff]
    %v272 = vld [vmem:[#allocation7 + $0x348] sm:$0xff]
    %v273 = vld [vmem:[#allocation7 + $0x350] sm:$0xff]
    %v274 = vld [vmem:[#allocation7 + $0x358] sm:$0xff]
    %v275 = vld [vmem:[#allocation7 + $0x360] sm:$0xff]
    %v276 = vld [vmem:[#allocation7 + $0x368] sm:$0xff]
    %v277 = vld [vmem:[#allocation7 + $0x370] sm:$0xff]
    %v278 = vld [vmem:[#allocation7 + $0x378] sm:$0xff]
    %v279 = vld [vmem:[#allocation7 + $0x380] sm:$0xff]
    %v280 = vld [vmem:[#allocation7 + $0x388] sm:$0xff]
    %v281 = vld [vmem:[#allocation7 + $0x390] sm:$0xff]
    %v282 = vld [vmem:[#allocation7 + $0x398] sm:$0xff]
    %v283 = vld [vmem:[#allocation7 + $0x3a0] sm:$0xff]
    %v284 = vld [vmem:[#allocation7 + $0x3a8] sm:$0xff]
    %v285 = vld [vmem:[#allocation7 + $0x3b0] sm:$0xff]
    %v286 = vld [vmem:[#allocation7 + $0x3b8] sm:$0xff]
    %v287 = vld [vmem:[#allocation7 + $0x3c0] sm:$0xff]
    %v288 = vld [vmem:[#allocation7 + $0x3c8] sm:$0xff]
    %v289 = vld [vmem:[#allocation7 + $0x3d0] sm:$0xff]
    %v290 = vld [vmem:[#allocation7 + $0x3d8] sm:$0xff]
    %v291 = vld [vmem:[#allocation7 + $0x3e0] sm:$0xff]
    %v292 = vld [vmem:[#allocation7 + $0x3e8] sm:$0xff]
    %v293 = vld [vmem:[#allocation7 + $0x3f0] sm:$0xff]
    %v294 = vld [vmem:[#allocation7 + $0x3f8] sm:$0xff]
    %v295 = vld [vmem:[#allocation7 + $0x400] sm:$0xff]
    %v296 = vld [vmem:[#allocation7 + $0x408] sm:$0xff]
    %v297 = vld [vmem:[#allocation7 + $0x410] sm:$0xff]
    %v298 = vld [vmem:[#allocation7 + $0x418] sm:$0xff]
    %v299 = vld [vmem:[#allocation7 + $0x420] sm:$0xff]
    %v300 = vld [vmem:[#allocation7 + $0x428] sm:$0xff]
    %v301 = vld [vmem:[#allocation7 + $0x430] sm:$0xff]
    %v302 = vld [vmem:[#allocation7 + $0x438] sm:$0xff]
    %v303 = vld [vmem:[#allocation7 + $0x440] sm:$0xff]
    %v304 = vld [vmem:[#allocation7 + $0x448] sm:$0xff]
    %v305 = vld [vmem:[#allocation7 + $0x450] sm:$0xff]
    %v306 = vld [vmem:[#allocation7 + $0x458] sm:$0xff]
    %v307 = vld [vmem:[#allocation7 + $0x460] sm:$0xff]
    %v308 = vld [vmem:[#allocation7 + $0x468] sm:$0xff]
    %v309 = vld [vmem:[#allocation7 + $0x470] sm:$0xff]
    %v310 = vld [vmem:[#allocation7 + $0x478] sm:$0xff]
    %v311 = vld [vmem:[#allocation7 + $0x480] sm:$0xff]
    %v312 = vld [vmem:[#allocation7 + $0x488] sm:$0xff]
    %v313 = vld [vmem:[#allocation7 + $0x490] sm:$0xff]
    %v314 = vld [vmem:[#allocation7 + $0x498] sm:$0xff]
    %v315 = vld [vmem:[#allocation7 + $0x4a0] sm:$0xff]
    %v316 = vld [vmem:[#allocation7 + $0x4a8] sm:$0xff]
    %v317 = vld [vmem:[#allocation7 + $0x4b0] sm:$0xff]
    %v318 = vld [vmem:[#allocation7 + $0x4b8] sm:$0xff]
    %v319 = vld [vmem:[#allocation7 + $0x4c0] sm:$0xff]
    %v320 = vld [vmem:[#allocation7 + $0x4c8] sm:$0xff]
    %v321 = vld [vmem:[#allocation7 + $0x4d0] sm:$0xff]
    %v322 = vld [vmem:[#allocation7 + $0x4d8] sm:$0xff]
    %v323 = vld [vmem:[#allocation7 + $0x4e0] sm:$0xff]
    %v324 = vld [vmem:[#allocation7 + $0x4e8] sm:$0xff]
    %v325 = vld [vmem:[#allocation7 + $0x4f0] sm:$0xff]
    %v326 = vld [vmem:[#allocation7 + $0x4f8] sm:$0xff]
    %v327 = vld [vmem:[#allocation7 + $0x500] sm:$0xff]
    %v328 = vld [vmem:[#allocation7 + $0x508] sm:$0xff]
    %v329 = vld [vmem:[#allocation7 + $0x510] sm:$0xff]
    %v330 = vld [vmem:[#allocation7 + $0x518] sm:$0xff]
    %v331 = vld [vmem:[#allocation7 + $0x520] sm:$0xff]
    %v332 = vld [vmem:[#allocation7 + $0x528] sm:$0xff]
    %v333 = vld [vmem:[#allocation7 + $0x530] sm:$0xff]
    %v334 = vld [vmem:[#allocation7 + $0x538] sm:$0xff]
    %v335 = vld [vmem:[#allocation7 + $0x540] sm:$0xff]
    %v336 = vld [vmem:[#allocation7 + $0x548] sm:$0xff]
    %v337 = vld [vmem:[#allocation7 + $0x550] sm:$0xff]
    %v338 = vld [vmem:[#allocation7 + $0x558] sm:$0xff]
    %v339 = vld [vmem:[#allocation7 + $0x560] sm:$0xff]
    %v340 = vld [vmem:[#allocation7 + $0x568] sm:$0xff]
    %v341 = vld [vmem:[#allocation7 + $0x570] sm:$0xff]
    %v342 = vld [vmem:[#allocation7 + $0x578] sm:$0xff]
    %v343 = vld [vmem:[#allocation7 + $0x580] sm:$0xff]
    %v344 = vld [vmem:[#allocation7 + $0x588] sm:$0xff]
    %v345 = vld [vmem:[#allocation7 + $0x590] sm:$0xff]
    %v346 = vld [vmem:[#allocation7 + $0x598] sm:$0xff]
    %v347 = vld [vmem:[#allocation7 + $0x5a0] sm:$0xff]
    %v348 = vld [vmem:[#allocation7 + $0x5a8] sm:$0xff]
    %v349 = vld [vmem:[#allocation7 + $0x5b0] sm:$0xff]
    %v350 = vld [vmem:[#allocation7 + $0x5b8] sm:$0xff]
    %v351 = vld [vmem:[#allocation7 + $0x5c0] sm:$0xff]
    %v352 = vld [vmem:[#allocation7 + $0x5c8] sm:$0xff]
    %v353 = vld [vmem:[#allocation7 + $0x5d0] sm:$0xff]
    %v354 = vld [vmem:[#allocation7 + $0x5d8] sm:$0xff]
    %v355 = vld [vmem:[#allocation7 + $0x5e0] sm:$0xff]
    %v356 = vld [vmem:[#allocation7 + $0x5e8] sm:$0xff]
    %v357 = vld [vmem:[#allocation7 + $0x5f0] sm:$0xff]
    %v358 = vld [vmem:[#allocation7 + $0x5f8] sm:$0xff]
    %v359 = vld [vmem:[#allocation7 + $0x600] sm:$0xff]
    %v360 = vld [vmem:[#allocation7 + $0x608] sm:$0xff]
    %v361 = vld [vmem:[#allocation7 + $0x610] sm:$0xff]
    %v362 = vld [vmem:[#allocation7 + $0x618] sm:$0xff]
    %v363 = vld [vmem:[#allocation7 + $0x620] sm:$0xff]
    %v364 = vld [vmem:[#allocation7 + $0x628] sm:$0xff]
    %v365 = vld [vmem:[#allocation7 + $0x630] sm:$0xff]
    %v366 = vld [vmem:[#allocation7 + $0x638] sm:$0xff]
    %v367 = vld [vmem:[#allocation7 + $0x640] sm:$0xff]
    %v368 = vld [vmem:[#allocation7 + $0x648] sm:$0xff]
    %v369 = vld [vmem:[#allocation7 + $0x650] sm:$0xff]
    %v370 = vld [vmem:[#allocation7 + $0x658] sm:$0xff]
    %v371 = vld [vmem:[#allocation7 + $0x660] sm:$0xff]
    %v372 = vld [vmem:[#allocation7 + $0x668] sm:$0xff]
    %v373 = vld [vmem:[#allocation7 + $0x670] sm:$0xff]
    %v374 = vld [vmem:[#allocation7 + $0x678] sm:$0xff]
    %v375 = vld [vmem:[#allocation7 + $0x680] sm:$0xff]
    %v376 = vld [vmem:[#allocation7 + $0x688] sm:$0xff]
    %v377 = vld [vmem:[#allocation7 + $0x690] sm:$0xff]
    %v378 = vld [vmem:[#allocation7 + $0x698] sm:$0xff]
    %v379 = vld [vmem:[#allocation7 + $0x6a0] sm:$0xff]
    %v380 = vld [vmem:[#allocation7 + $0x6a8] sm:$0xff]
    %v381 = vld [vmem:[#allocation7 + $0x6b0] sm:$0xff]
    %v382 = vld [vmem:[#allocation7 + $0x6b8] sm:$0xff]
    %v383 = vld [vmem:[#allocation7 + $0x6c0] sm:$0xff]
    %v384 = vld [vmem:[#allocation7 + $0x6c8] sm:$0xff]
    %v385 = vld [vmem:[#allocation7 + $0x6d0] sm:$0xff]
    %v386 = vld [vmem:[#allocation7 + $0x6d8] sm:$0xff]
    %v387 = vld [vmem:[#allocation7 + $0x6e0] sm:$0xff]
    %v388 = vld [vmem:[#allocation7 + $0x6e8] sm:$0xff]
    %v389 = vld [vmem:[#allocation7 + $0x6f0] sm:$0xff]
    %v390 = vld [vmem:[#allocation7 + $0x6f8] sm:$0xff]
    %v391 = vld [vmem:[#allocation7 + $0x700] sm:$0xff]
    %v392 = vld [vmem:[#allocation7 + $0x708] sm:$0xff]
    %v393 = vld [vmem:[#allocation7 + $0x710] sm:$0xff]
    %v394 = vld [vmem:[#allocation7 + $0x718] sm:$0xff]
    %v395 = vld [vmem:[#allocation7 + $0x720] sm:$0xff]
    %v396 = vld [vmem:[#allocation7 + $0x728] sm:$0xff]
    %v397 = vld [vmem:[#allocation7 + $0x730] sm:$0xff]
    %v398 = vld [vmem:[#allocation7 + $0x738] sm:$0xff]
    %v399 = vld [vmem:[#allocation7 + $0x740] sm:$0xff]
    %v400 = vld [vmem:[#allocation7 + $0x748] sm:$0xff]
    %v401 = vld [vmem:[#allocation7 + $0x750] sm:$0xff]
    %v402 = vld [vmem:[#allocation7 + $0x758] sm:$0xff]
    %v403 = vld [vmem:[#allocation7 + $0x760] sm:$0xff]
    %v404 = vld [vmem:[#allocation7 + $0x768] sm:$0xff]
    %v405 = vld [vmem:[#allocation7 + $0x770] sm:$0xff]
    %v406 = vld [vmem:[#allocation7 + $0x778] sm:$0xff]
    %v407 = vld [vmem:[#allocation7 + $0x780] sm:$0xff]
    %v408 = vld [vmem:[#allocation7 + $0x788] sm:$0xff]
    %v409 = vld [vmem:[#allocation7 + $0x790] sm:$0xff]
    %v410 = vld [vmem:[#allocation7 + $0x798] sm:$0xff]
    %v411 = vld [vmem:[#allocation7 + $0x7a0] sm:$0xff]
    %v412 = vld [vmem:[#allocation7 + $0x7a8] sm:$0xff]
    %v413 = vld [vmem:[#allocation7 + $0x7b0] sm:$0xff]
    %v414 = vld [vmem:[#allocation7 + $0x7b8] sm:$0xff]
    %v415 = vld [vmem:[#allocation7 + $0x7c0] sm:$0xff]
    %v416 = vld [vmem:[#allocation7 + $0x7c8] sm:$0xff]
    %v417 = vld [vmem:[#allocation7 + $0x7d0] sm:$0xff]
    %v418 = vld [vmem:[#allocation7 + $0x7d8] sm:$0xff]
    %v419 = vld [vmem:[#allocation7 + $0x7e0] sm:$0xff]
    %v420 = vld [vmem:[#allocation7 + $0x7e8] sm:$0xff]
    %v421 = vld [vmem:[#allocation7 + $0x7f0] sm:$0xff]
    %v422 = vld [vmem:[#allocation7 + $0x7f8] sm:$0xff]
    %v423 = vld [vmem:[#allocation7 + $0x800] sm:$0xff]
    %v424 = vld [vmem:[#allocation7 + $0x808] sm:$0xff]
    %v425 = vld [vmem:[#allocation7 + $0x810] sm:$0xff]
    %v426 = vld [vmem:[#allocation7 + $0x818] sm:$0xff]
    %v427 = vld [vmem:[#allocation7 + $0x820] sm:$0xff]
    %v428 = vld [vmem:[#allocation7 + $0x828] sm:$0xff]
    %v429 = vld [vmem:[#allocation7 + $0x830] sm:$0xff]
    %v430 = vld [vmem:[#allocation7 + $0x838] sm:$0xff]
    %v431 = vld [vmem:[#allocation7 + $0x840] sm:$0xff]
    %v432 = vld [vmem:[#allocation7 + $0x848] sm:$0xff]
    %v433 = vld [vmem:[#allocation7 + $0x850] sm:$0xff]
    %v434 = vld [vmem:[#allocation7 + $0x858] sm:$0xff]
    %v435 = vld [vmem:[#allocation7 + $0x860] sm:$0xff]
    %v436 = vld [vmem:[#allocation7 + $0x868] sm:$0xff]
    %v437 = vld [vmem:[#allocation7 + $0x870] sm:$0xff]
    %v438 = vld [vmem:[#allocation7 + $0x878] sm:$0xff]
    %v439 = vld [vmem:[#allocation7 + $0x880] sm:$0xff]
    %v440 = vld [vmem:[#allocation7 + $0x888] sm:$0xff]
    %v441 = vld [vmem:[#allocation7 + $0x890] sm:$0xff]
    %v442 = vld [vmem:[#allocation7 + $0x898] sm:$0xff]
    %v443 = vld [vmem:[#allocation7 + $0x8a0] sm:$0xff]
    %v444 = vld [vmem:[#allocation7 + $0x8a8] sm:$0xff]
    %v445 = vld [vmem:[#allocation7 + $0x8b0] sm:$0xff]
    %v446 = vld [vmem:[#allocation7 + $0x8b8] sm:$0xff]
    %v447 = vld [vmem:[#allocation7 + $0x8c0] sm:$0xff]
    %v448 = vld [vmem:[#allocation7 + $0x8c8] sm:$0xff]
    %v449 = vld [vmem:[#allocation7 + $0x8d0] sm:$0xff]
    %v450 = vld [vmem:[#allocation7 + $0x8d8] sm:$0xff]
    %v451 = vld [vmem:[#allocation7 + $0x8e0] sm:$0xff]
    %v452 = vld [vmem:[#allocation7 + $0x8e8] sm:$0xff]
    %v453 = vld [vmem:[#allocation7 + $0x8f0] sm:$0xff]
    %v454 = vld [vmem:[#allocation7 + $0x8f8] sm:$0xff]
    %v455 = vld [vmem:[#allocation8] sm:$0x3f]
    %v457 = vperm.slane %v455, 0
    %v458 = vperm.slane %v455, 1
    %v459 = vperm.slane %v455, 2
    %v460 = vperm.slane %v455, 3
    %v461 = vperm.slane %v455, 4
    %v462 = vperm.slane %v455, 5
    %v757 = vunpack.c.l.b16 %v167
    %v758 = vunpack.c.h.b16 %v167
    %v759 = vunpack.c.l.b16 %v168
    %v760 = vunpack.c.h.b16 %v168
    %v761 = vunpack.c.l.b16 %v169
    %v762 = vunpack.c.h.b16 %v169
    %v763 = vunpack.c.l.b16 %v170
    %v764 = vunpack.c.h.b16 %v170
    %v765 = vunpack.c.l.b16 %v171
    %v766 = vunpack.c.h.b16 %v171
    %v767 = vunpack.c.l.b16 %v172
    %v768 = vunpack.c.h.b16 %v172
    %v769 = vunpack.c.l.b16 %v173
    %v770 = vunpack.c.h.b16 %v173
    %v771 = vunpack.c.l.b16 %v174
    %v772 = vunpack.c.h.b16 %v174
    %v773 = vunpack.c.l.b16 %v175
    %v774 = vunpack.c.h.b16 %v175
    %v775 = vunpack.c.l.b16 %v176
    %v776 = vunpack.c.h.b16 %v176
    %v777 = vunpack.c.l.b16 %v177
    %v778 = vunpack.c.h.b16 %v177
    %v779 = vunpack.c.l.b16 %v178
    %v780 = vunpack.c.h.b16 %v178
    %v781 = vunpack.c.l.b16 %v179
    %v782 = vunpack.c.h.b16 %v179
    %v783 = vunpack.c.l.b16 %v180
    %v784 = vunpack.c.h.b16 %v180
    %v785 = vunpack.c.l.b16 %v181
    %v786 = vunpack.c.h.b16 %v181
    %v787 = vunpack.c.l.b16 %v182
    %v788 = vunpack.c.h.b16 %v182
    %v789 = vunpack.c.l.b16 %v183
    %v790 = vunpack.c.h.b16 %v183
    %v791 = vunpack.c.l.b16 %v184
    %v792 = vunpack.c.h.b16 %v184
    %v793 = vunpack.c.l.b16 %v185
    %v794 = vunpack.c.h.b16 %v185
    %v795 = vunpack.c.l.b16 %v186
    %v796 = vunpack.c.h.b16 %v186
    %v797 = vunpack.c.l.b16 %v187
    %v798 = vunpack.c.h.b16 %v187
    %v799 = vunpack.c.l.b16 %v188
    %v800 = vunpack.c.h.b16 %v188
    %v801 = vunpack.c.l.b16 %v189
    %v802 = vunpack.c.h.b16 %v189
    %v803 = vunpack.c.l.b16 %v190
    %v804 = vunpack.c.h.b16 %v190
    %v805 = vunpack.c.l.b16 %v191
    %v806 = vunpack.c.h.b16 %v191
    %v807 = vunpack.c.l.b16 %v192
    %v808 = vunpack.c.h.b16 %v192
    %v809 = vunpack.c.l.b16 %v193
    %v810 = vunpack.c.h.b16 %v193
    %v811 = vunpack.c.l.b16 %v194
    %v812 = vunpack.c.h.b16 %v194
    %v813 = vunpack.c.l.b16 %v195
    %v814 = vunpack.c.h.b16 %v195
    %v815 = vunpack.c.l.b16 %v196
    %v816 = vunpack.c.h.b16 %v196
    %v817 = vunpack.c.l.b16 %v197
    %v818 = vunpack.c.h.b16 %v197
    %v819 = vunpack.c.l.b16 %v198
    %v820 = vunpack.c.h.b16 %v198
    %v821 = vunpack.c.l.b16 %v199
    %v822 = vunpack.c.h.b16 %v199
    %v823 = vunpack.c.l.b16 %v200
    %v824 = vunpack.c.h.b16 %v200
    %v825 = vunpack.c.l.b16 %v201
    %v826 = vunpack.c.h.b16 %v201
    %v827 = vunpack.c.l.b16 %v202
    %v828 = vunpack.c.h.b16 %v202
    %v829 = vunpack.c.l.b16 %v203
    %v830 = vunpack.c.h.b16 %v203
    %v831 = vunpack.c.l.b16 %v204
    %v832 = vunpack.c.h.b16 %v204
    %v833 = vunpack.c.l.b16 %v205
    %v834 = vunpack.c.h.b16 %v205
    %v835 = vunpack.c.l.b16 %v206
    %v836 = vunpack.c.h.b16 %v206
    %v837 = vunpack.c.l.b16 %v207
    %v838 = vunpack.c.h.b16 %v207
    %v839 = vunpack.c.l.b16 %v208
    %v840 = vunpack.c.h.b16 %v208
    %v841 = vunpack.c.l.b16 %v209
    %v842 = vunpack.c.h.b16 %v209
    %v843 = vunpack.c.l.b16 %v210
    %v844 = vunpack.c.h.b16 %v210
    %v845 = vunpack.c.l.b16 %v211
    %v846 = vunpack.c.h.b16 %v211
    %v847 = vunpack.c.l.b16 %v212
    %v848 = vunpack.c.h.b16 %v212
    %v849 = vunpack.c.l.b16 %v213
    %v850 = vunpack.c.h.b16 %v213
    %v851 = vunpack.c.l.b16 %v214
    %v852 = vunpack.c.h.b16 %v214
    %v853 = vunpack.c.l.b16 %v215
    %v854 = vunpack.c.h.b16 %v215
    %v855 = vunpack.c.l.b16 %v216
    %v856 = vunpack.c.h.b16 %v216
    %v857 = vunpack.c.l.b16 %v217
    %v858 = vunpack.c.h.b16 %v217
    %v859 = vunpack.c.l.b16 %v218
    %v860 = vunpack.c.h.b16 %v218
    %v861 = vunpack.c.l.b16 %v219
    %v862 = vunpack.c.h.b16 %v219
    %v863 = vunpack.c.l.b16 %v220
    %v864 = vunpack.c.h.b16 %v220
    %v865 = vunpack.c.l.b16 %v221
    %v866 = vunpack.c.h.b16 %v221
    %v867 = vunpack.c.l.b16 %v222
    %v868 = vunpack.c.h.b16 %v222
    %v869 = vunpack.c.l.b16 %v223
    %v870 = vunpack.c.h.b16 %v223
    %v871 = vunpack.c.l.b16 %v224
    %v872 = vunpack.c.h.b16 %v224
    %v873 = vunpack.c.l.b16 %v225
    %v874 = vunpack.c.h.b16 %v225
    %v875 = vunpack.c.l.b16 %v226
    %v876 = vunpack.c.h.b16 %v226
    %v877 = vunpack.c.l.b16 %v227
    %v878 = vunpack.c.h.b16 %v227
    %v879 = vunpack.c.l.b16 %v228
    %v880 = vunpack.c.h.b16 %v228
    %v881 = vunpack.c.l.b16 %v229
    %v882 = vunpack.c.h.b16 %v229
    %v883 = vunpack.c.l.b16 %v230
    %v884 = vunpack.c.h.b16 %v230
    %v885 = vunpack.c.l.b16 %v231
    %v886 = vunpack.c.h.b16 %v231
    %v887 = vunpack.c.l.b16 %v232
    %v888 = vunpack.c.h.b16 %v232
    %v889 = vunpack.c.l.b16 %v233
    %v890 = vunpack.c.h.b16 %v233
    %v891 = vunpack.c.l.b16 %v234
    %v892 = vunpack.c.h.b16 %v234
    %v893 = vunpack.c.l.b16 %v235
    %v894 = vunpack.c.h.b16 %v235
    %v895 = vunpack.c.l.b16 %v236
    %v896 = vunpack.c.h.b16 %v236
    %v897 = vunpack.c.l.b16 %v237
    %v898 = vunpack.c.h.b16 %v237
    %v899 = vunpack.c.l.b16 %v238
    %v900 = vunpack.c.h.b16 %v238
    %v901 = vunpack.c.l.b16 %v239
    %v902 = vunpack.c.h.b16 %v239
    %v903 = vunpack.c.l.b16 %v240
    %v904 = vunpack.c.h.b16 %v240
    %v905 = vunpack.c.l.b16 %v241
    %v906 = vunpack.c.h.b16 %v241
    %v907 = vunpack.c.l.b16 %v242
    %v908 = vunpack.c.h.b16 %v242
    %v909 = vunpack.c.l.b16 %v243
    %v910 = vunpack.c.h.b16 %v243
    %v911 = vunpack.c.l.b16 %v244
    %v912 = vunpack.c.h.b16 %v244
    %v913 = vunpack.c.l.b16 %v245
    %v914 = vunpack.c.h.b16 %v245
    %v915 = vunpack.c.l.b16 %v246
    %v916 = vunpack.c.h.b16 %v246
    %v917 = vunpack.c.l.b16 %v247
    %v918 = vunpack.c.h.b16 %v247
    %v919 = vunpack.c.l.b16 %v248
    %v920 = vunpack.c.h.b16 %v248
    %v921 = vunpack.c.l.b16 %v249
    %v922 = vunpack.c.h.b16 %v249
    %v923 = vunpack.c.l.b16 %v250
    %v924 = vunpack.c.h.b16 %v250
    %v925 = vunpack.c.l.b16 %v251
    %v926 = vunpack.c.h.b16 %v251
    %v927 = vunpack.c.l.b16 %v252
    %v928 = vunpack.c.h.b16 %v252
    %v929 = vunpack.c.l.b16 %v253
    %v930 = vunpack.c.h.b16 %v253
    %v931 = vunpack.c.l.b16 %v254
    %v932 = vunpack.c.h.b16 %v254
    %v933 = vunpack.c.l.b16 %v255
    %v934 = vunpack.c.h.b16 %v255
    %v935 = vunpack.c.l.b16 %v256
    %v936 = vunpack.c.h.b16 %v256
    %v937 = vunpack.c.l.b16 %v257
    %v938 = vunpack.c.h.b16 %v257
    %v939 = vunpack.c.l.b16 %v258
    %v940 = vunpack.c.h.b16 %v258
    %v941 = vunpack.c.l.b16 %v259
    %v942 = vunpack.c.h.b16 %v259
    %v943 = vunpack.c.l.b16 %v260
    %v944 = vunpack.c.h.b16 %v260
    %v945 = vunpack.c.l.b16 %v261
    %v946 = vunpack.c.h.b16 %v261
    %v947 = vunpack.c.l.b16 %v262
    %v948 = vunpack.c.h.b16 %v262
    %v949 = vunpack.c.l.b16 %v263
    %v950 = vunpack.c.h.b16 %v263
    %v951 = vunpack.c.l.b16 %v264
    %v952 = vunpack.c.h.b16 %v264
    %v953 = vunpack.c.l.b16 %v265
    %v954 = vunpack.c.h.b16 %v265
    %v955 = vunpack.c.l.b16 %v266
    %v956 = vunpack.c.h.b16 %v266
    %v957 = vunpack.c.l.b16 %v267
    %v958 = vunpack.c.h.b16 %v267
    %v959 = vunpack.c.l.b16 %v268
    %v960 = vunpack.c.h.b16 %v268
    %v961 = vunpack.c.l.b16 %v269
    %v962 = vunpack.c.h.b16 %v269
    %v963 = vunpack.c.l.b16 %v270
    %v964 = vunpack.c.h.b16 %v270
    %v965 = vunpack.c.l.b16 %v271
    %v966 = vunpack.c.h.b16 %v271
    %v967 = vunpack.c.l.b16 %v272
    %v968 = vunpack.c.h.b16 %v272
    %v969 = vunpack.c.l.b16 %v273
    %v970 = vunpack.c.h.b16 %v273
    %v971 = vunpack.c.l.b16 %v274
    %v972 = vunpack.c.h.b16 %v274
    %v973 = vunpack.c.l.b16 %v275
    %v974 = vunpack.c.h.b16 %v275
    %v975 = vunpack.c.l.b16 %v276
    %v976 = vunpack.c.h.b16 %v276
    %v977 = vunpack.c.l.b16 %v277
    %v978 = vunpack.c.h.b16 %v277
    %v979 = vunpack.c.l.b16 %v278
    %v980 = vunpack.c.h.b16 %v278
    %v981 = vunpack.c.l.b16 %v279
    %v982 = vunpack.c.h.b16 %v279
    %v983 = vunpack.c.l.b16 %v280
    %v984 = vunpack.c.h.b16 %v280
    %v985 = vunpack.c.l.b16 %v281
    %v986 = vunpack.c.h.b16 %v281
    %v987 = vunpack.c.l.b16 %v282
    %v988 = vunpack.c.h.b16 %v282
    %v989 = vunpack.c.l.b16 %v283
    %v990 = vunpack.c.h.b16 %v283
    %v991 = vunpack.c.l.b16 %v284
    %v992 = vunpack.c.h.b16 %v284
    %v993 = vunpack.c.l.b16 %v285
    %v994 = vunpack.c.h.b16 %v285
    %v995 = vunpack.c.l.b16 %v286
    %v996 = vunpack.c.h.b16 %v286
    %v997 = vunpack.c.l.b16 %v287
    %v998 = vunpack.c.h.b16 %v287
    %v999 = vunpack.c.l.b16 %v288
    %v1000 = vunpack.c.h.b16 %v288
    %v1001 = vunpack.c.l.b16 %v289
    %v1002 = vunpack.c.h.b16 %v289
    %v1003 = vunpack.c.l.b16 %v290
    %v1004 = vunpack.c.h.b16 %v290
    %v1005 = vunpack.c.l.b16 %v291
    %v1006 = vunpack.c.h.b16 %v291
    %v1007 = vunpack.c.l.b16 %v292
    %v1008 = vunpack.c.h.b16 %v292
    %v1009 = vunpack.c.l.b16 %v293
    %v1010 = vunpack.c.h.b16 %v293
    %v1011 = vunpack.c.l.b16 %v294
    %v1012 = vunpack.c.h.b16 %v294
    %v1013 = vunpack.c.l.b16 %v295
    %v1014 = vunpack.c.h.b16 %v295
    %v1015 = vunpack.c.l.b16 %v296
    %v1016 = vunpack.c.h.b16 %v296
    %v1017 = vunpack.c.l.b16 %v297
    %v1018 = vunpack.c.h.b16 %v297
    %v1019 = vunpack.c.l.b16 %v298
    %v1020 = vunpack.c.h.b16 %v298
    %v1021 = vunpack.c.l.b16 %v299
    %v1022 = vunpack.c.h.b16 %v299
    %v1023 = vunpack.c.l.b16 %v300
    %v1024 = vunpack.c.h.b16 %v300
    %v1025 = vunpack.c.l.b16 %v301
    %v1026 = vunpack.c.h.b16 %v301
    %v1027 = vunpack.c.l.b16 %v302
    %v1028 = vunpack.c.h.b16 %v302
    %v1029 = vunpack.c.l.b16 %v303
    %v1030 = vunpack.c.h.b16 %v303
    %v1031 = vunpack.c.l.b16 %v304
    %v1032 = vunpack.c.h.b16 %v304
    %v1033 = vunpack.c.l.b16 %v305
    %v1034 = vunpack.c.h.b16 %v305
    %v1035 = vunpack.c.l.b16 %v306
    %v1036 = vunpack.c.h.b16 %v306
    %v1037 = vunpack.c.l.b16 %v307
    %v1038 = vunpack.c.h.b16 %v307
    %v1039 = vunpack.c.l.b16 %v308
    %v1040 = vunpack.c.h.b16 %v308
    %v1041 = vunpack.c.l.b16 %v309
    %v1042 = vunpack.c.h.b16 %v309
    %v1043 = vunpack.c.l.b16 %v310
    %v1044 = vunpack.c.h.b16 %v310
    %v1045 = vunpack.c.l.b16 %v311
    %v1046 = vunpack.c.h.b16 %v311
    %v1047 = vunpack.c.l.b16 %v312
    %v1048 = vunpack.c.h.b16 %v312
    %v1049 = vunpack.c.l.b16 %v313
    %v1050 = vunpack.c.h.b16 %v313
    %v1051 = vunpack.c.l.b16 %v314
    %v1052 = vunpack.c.h.b16 %v314
    %v1053 = vunpack.c.l.b16 %v315
    %v1054 = vunpack.c.h.b16 %v315
    %v1055 = vunpack.c.l.b16 %v316
    %v1056 = vunpack.c.h.b16 %v316
    %v1057 = vunpack.c.l.b16 %v317
    %v1058 = vunpack.c.h.b16 %v317
    %v1059 = vunpack.c.l.b16 %v318
    %v1060 = vunpack.c.h.b16 %v318
    %v1061 = vunpack.c.l.b16 %v319
    %v1062 = vunpack.c.h.b16 %v319
    %v1063 = vunpack.c.l.b16 %v320
    %v1064 = vunpack.c.h.b16 %v320
    %v1065 = vunpack.c.l.b16 %v321
    %v1066 = vunpack.c.h.b16 %v321
    %v1067 = vunpack.c.l.b16 %v322
    %v1068 = vunpack.c.h.b16 %v322
    %v1069 = vunpack.c.l.b16 %v323
    %v1070 = vunpack.c.h.b16 %v323
    %v1071 = vunpack.c.l.b16 %v324
    %v1072 = vunpack.c.h.b16 %v324
    %v1073 = vunpack.c.l.b16 %v325
    %v1074 = vunpack.c.h.b16 %v325
    %v1075 = vunpack.c.l.b16 %v326
    %v1076 = vunpack.c.h.b16 %v326
    %v1077 = vunpack.c.l.b16 %v327
    %v1078 = vunpack.c.h.b16 %v327
    %v1079 = vunpack.c.l.b16 %v328
    %v1080 = vunpack.c.h.b16 %v328
    %v1081 = vunpack.c.l.b16 %v329
    %v1082 = vunpack.c.h.b16 %v329
    %v1083 = vunpack.c.l.b16 %v330
    %v1084 = vunpack.c.h.b16 %v330
    %v1085 = vunpack.c.l.b16 %v331
    %v1086 = vunpack.c.h.b16 %v331
    %v1087 = vunpack.c.l.b16 %v332
    %v1088 = vunpack.c.h.b16 %v332
    %v1089 = vunpack.c.l.b16 %v333
    %v1090 = vunpack.c.h.b16 %v333
    %v1091 = vunpack.c.l.b16 %v334
    %v1092 = vunpack.c.h.b16 %v334
    %v1093 = vunpack.c.l.b16 %v335
    %v1094 = vunpack.c.h.b16 %v335
    %v1095 = vunpack.c.l.b16 %v336
    %v1096 = vunpack.c.h.b16 %v336
    %v1097 = vunpack.c.l.b16 %v337
    %v1098 = vunpack.c.h.b16 %v337
    %v1099 = vunpack.c.l.b16 %v338
    %v1100 = vunpack.c.h.b16 %v338
    %v1101 = vunpack.c.l.b16 %v339
    %v1102 = vunpack.c.h.b16 %v339
    %v1103 = vunpack.c.l.b16 %v340
    %v1104 = vunpack.c.h.b16 %v340
    %v1105 = vunpack.c.l.b16 %v341
    %v1106 = vunpack.c.h.b16 %v341
    %v1107 = vunpack.c.l.b16 %v342
    %v1108 = vunpack.c.h.b16 %v342
    %v1109 = vunpack.c.l.b16 %v343
    %v1110 = vunpack.c.h.b16 %v343
    %v1111 = vunpack.c.l.b16 %v344
    %v1112 = vunpack.c.h.b16 %v344
    %v1113 = vunpack.c.l.b16 %v345
    %v1114 = vunpack.c.h.b16 %v345
    %v1115 = vunpack.c.l.b16 %v346
    %v1116 = vunpack.c.h.b16 %v346
    %v1117 = vunpack.c.l.b16 %v347
    %v1118 = vunpack.c.h.b16 %v347
    %v1119 = vunpack.c.l.b16 %v348
    %v1120 = vunpack.c.h.b16 %v348
    %v1121 = vunpack.c.l.b16 %v349
    %v1122 = vunpack.c.h.b16 %v349
    %v1123 = vunpack.c.l.b16 %v350
    %v1124 = vunpack.c.h.b16 %v350
    %v1125 = vunpack.c.l.b16 %v351
    %v1126 = vunpack.c.h.b16 %v351
    %v1127 = vunpack.c.l.b16 %v352
    %v1128 = vunpack.c.h.b16 %v352
    %v1129 = vunpack.c.l.b16 %v353
    %v1130 = vunpack.c.h.b16 %v353
    %v1131 = vunpack.c.l.b16 %v354
    %v1132 = vunpack.c.h.b16 %v354
    %v1133 = vunpack.c.l.b16 %v355
    %v1134 = vunpack.c.h.b16 %v355
    %v1135 = vunpack.c.l.b16 %v356
    %v1136 = vunpack.c.h.b16 %v356
    %v1137 = vunpack.c.l.b16 %v357
    %v1138 = vunpack.c.h.b16 %v357
    %v1139 = vunpack.c.l.b16 %v358
    %v1140 = vunpack.c.h.b16 %v358
    %v1141 = vunpack.c.l.b16 %v359
    %v1142 = vunpack.c.h.b16 %v359
    %v1143 = vunpack.c.l.b16 %v360
    %v1144 = vunpack.c.h.b16 %v360
    %v1145 = vunpack.c.l.b16 %v361
    %v1146 = vunpack.c.h.b16 %v361
    %v1147 = vunpack.c.l.b16 %v362
    %v1148 = vunpack.c.h.b16 %v362
    %v1149 = vunpack.c.l.b16 %v363
    %v1150 = vunpack.c.h.b16 %v363
    %v1151 = vunpack.c.l.b16 %v364
    %v1152 = vunpack.c.h.b16 %v364
    %v1153 = vunpack.c.l.b16 %v365
    %v1154 = vunpack.c.h.b16 %v365
    %v1155 = vunpack.c.l.b16 %v366
    %v1156 = vunpack.c.h.b16 %v366
    %v1157 = vunpack.c.l.b16 %v367
    %v1158 = vunpack.c.h.b16 %v367
    %v1159 = vunpack.c.l.b16 %v368
    %v1160 = vunpack.c.h.b16 %v368
    %v1161 = vunpack.c.l.b16 %v369
    %v1162 = vunpack.c.h.b16 %v369
    %v1163 = vunpack.c.l.b16 %v370
    %v1164 = vunpack.c.h.b16 %v370
    %v1165 = vunpack.c.l.b16 %v371
    %v1166 = vunpack.c.h.b16 %v371
    %v1167 = vunpack.c.l.b16 %v372
    %v1168 = vunpack.c.h.b16 %v372
    %v1169 = vunpack.c.l.b16 %v373
    %v1170 = vunpack.c.h.b16 %v373
    %v1171 = vunpack.c.l.b16 %v374
    %v1172 = vunpack.c.h.b16 %v374
    %v1173 = vunpack.c.l.b16 %v375
    %v1174 = vunpack.c.h.b16 %v375
    %v1175 = vunpack.c.l.b16 %v376
    %v1176 = vunpack.c.h.b16 %v376
    %v1177 = vunpack.c.l.b16 %v377
    %v1178 = vunpack.c.h.b16 %v377
    %v1179 = vunpack.c.l.b16 %v378
    %v1180 = vunpack.c.h.b16 %v378
    %v1181 = vunpack.c.l.b16 %v379
    %v1182 = vunpack.c.h.b16 %v379
    %v1183 = vunpack.c.l.b16 %v380
    %v1184 = vunpack.c.h.b16 %v380
    %v1185 = vunpack.c.l.b16 %v381
    %v1186 = vunpack.c.h.b16 %v381
    %v1187 = vunpack.c.l.b16 %v382
    %v1188 = vunpack.c.h.b16 %v382
    %v1189 = vunpack.c.l.b16 %v383
    %v1190 = vunpack.c.h.b16 %v383
    %v1191 = vunpack.c.l.b16 %v384
    %v1192 = vunpack.c.h.b16 %v384
    %v1193 = vunpack.c.l.b16 %v385
    %v1194 = vunpack.c.h.b16 %v385
    %v1195 = vunpack.c.l.b16 %v386
    %v1196 = vunpack.c.h.b16 %v386
    %v1197 = vunpack.c.l.b16 %v387
    %v1198 = vunpack.c.h.b16 %v387
    %v1199 = vunpack.c.l.b16 %v388
    %v1200 = vunpack.c.h.b16 %v388
    %v1201 = vunpack.c.l.b16 %v389
    %v1202 = vunpack.c.h.b16 %v389
    %v1203 = vunpack.c.l.b16 %v390
    %v1204 = vunpack.c.h.b16 %v390
    %v1205 = vunpack.c.l.b16 %v391
    %v1206 = vunpack.c.h.b16 %v391
    %v1207 = vunpack.c.l.b16 %v392
    %v1208 = vunpack.c.h.b16 %v392
    %v1209 = vunpack.c.l.b16 %v393
    %v1210 = vunpack.c.h.b16 %v393
    %v1211 = vunpack.c.l.b16 %v394
    %v1212 = vunpack.c.h.b16 %v394
    %v1213 = vunpack.c.l.b16 %v395
    %v1214 = vunpack.c.h.b16 %v395
    %v1215 = vunpack.c.l.b16 %v396
    %v1216 = vunpack.c.h.b16 %v396
    %v1217 = vunpack.c.l.b16 %v397
    %v1218 = vunpack.c.h.b16 %v397
    %v1219 = vunpack.c.l.b16 %v398
    %v1220 = vunpack.c.h.b16 %v398
    %v1221 = vunpack.c.l.b16 %v399
    %v1222 = vunpack.c.h.b16 %v399
    %v1223 = vunpack.c.l.b16 %v400
    %v1224 = vunpack.c.h.b16 %v400
    %v1225 = vunpack.c.l.b16 %v401
    %v1226 = vunpack.c.h.b16 %v401
    %v1227 = vunpack.c.l.b16 %v402
    %v1228 = vunpack.c.h.b16 %v402
    %v1229 = vunpack.c.l.b16 %v403
    %v1230 = vunpack.c.h.b16 %v403
    %v1231 = vunpack.c.l.b16 %v404
    %v1232 = vunpack.c.h.b16 %v404
    %v1233 = vunpack.c.l.b16 %v405
    %v1234 = vunpack.c.h.b16 %v405
    %v1235 = vunpack.c.l.b16 %v406
    %v1236 = vunpack.c.h.b16 %v406
    %v1237 = vunpack.c.l.b16 %v407
    %v1238 = vunpack.c.h.b16 %v407
    %v1239 = vunpack.c.l.b16 %v408
    %v1240 = vunpack.c.h.b16 %v408
    %v1241 = vunpack.c.l.b16 %v409
    %v1242 = vunpack.c.h.b16 %v409
    %v1243 = vunpack.c.l.b16 %v410
    %v1244 = vunpack.c.h.b16 %v410
    %v1245 = vunpack.c.l.b16 %v411
    %v1246 = vunpack.c.h.b16 %v411
    %v1247 = vunpack.c.l.b16 %v412
    %v1248 = vunpack.c.h.b16 %v412
    %v1249 = vunpack.c.l.b16 %v413
    %v1250 = vunpack.c.h.b16 %v413
    %v1251 = vunpack.c.l.b16 %v414
    %v1252 = vunpack.c.h.b16 %v414
    %v1253 = vunpack.c.l.b16 %v415
    %v1254 = vunpack.c.h.b16 %v415
    %v1255 = vunpack.c.l.b16 %v416
    %v1256 = vunpack.c.h.b16 %v416
    %v1257 = vunpack.c.l.b16 %v417
    %v1258 = vunpack.c.h.b16 %v417
    %v1259 = vunpack.c.l.b16 %v418
    %v1260 = vunpack.c.h.b16 %v418
    %v1261 = vunpack.c.l.b16 %v419
    %v1262 = vunpack.c.h.b16 %v419
    %v1263 = vunpack.c.l.b16 %v420
    %v1264 = vunpack.c.h.b16 %v420
    %v1265 = vunpack.c.l.b16 %v421
    %v1266 = vunpack.c.h.b16 %v421
    %v1267 = vunpack.c.l.b16 %v422
    %v1268 = vunpack.c.h.b16 %v422
    %v1269 = vunpack.c.l.b16 %v423
    %v1270 = vunpack.c.h.b16 %v423
    %v1271 = vunpack.c.l.b16 %v424
    %v1272 = vunpack.c.h.b16 %v424
    %v1273 = vunpack.c.l.b16 %v425
    %v1274 = vunpack.c.h.b16 %v425
    %v1275 = vunpack.c.l.b16 %v426
    %v1276 = vunpack.c.h.b16 %v426
    %v1277 = vunpack.c.l.b16 %v427
    %v1278 = vunpack.c.h.b16 %v427
    %v1279 = vunpack.c.l.b16 %v428
    %v1280 = vunpack.c.h.b16 %v428
    %v1281 = vunpack.c.l.b16 %v429
    %v1282 = vunpack.c.h.b16 %v429
    %v1283 = vunpack.c.l.b16 %v430
    %v1284 = vunpack.c.h.b16 %v430
    %v1285 = vunpack.c.l.b16 %v431
    %v1286 = vunpack.c.h.b16 %v431
    %v1287 = vunpack.c.l.b16 %v432
    %v1288 = vunpack.c.h.b16 %v432
    %v1289 = vunpack.c.l.b16 %v433
    %v1290 = vunpack.c.h.b16 %v433
    %v1291 = vunpack.c.l.b16 %v434
    %v1292 = vunpack.c.h.b16 %v434
    %v1293 = vunpack.c.l.b16 %v435
    %v1294 = vunpack.c.h.b16 %v435
    %v1295 = vunpack.c.l.b16 %v436
    %v1296 = vunpack.c.h.b16 %v436
    %v1297 = vunpack.c.l.b16 %v437
    %v1298 = vunpack.c.h.b16 %v437
    %v1299 = vunpack.c.l.b16 %v438
    %v1300 = vunpack.c.h.b16 %v438
    %v1301 = vunpack.c.l.b16 %v439
    %v1302 = vunpack.c.h.b16 %v439
    %v1303 = vunpack.c.l.b16 %v440
    %v1304 = vunpack.c.h.b16 %v440
    %v1305 = vunpack.c.l.b16 %v441
    %v1306 = vunpack.c.h.b16 %v441
    %v1307 = vunpack.c.l.b16 %v442
    %v1308 = vunpack.c.h.b16 %v442
    %v1309 = vunpack.c.l.b16 %v443
    %v1310 = vunpack.c.h.b16 %v443
    %v1311 = vunpack.c.l.b16 %v444
    %v1312 = vunpack.c.h.b16 %v444
    %v1313 = vunpack.c.l.b16 %v445
    %v1314 = vunpack.c.h.b16 %v445
    %v1315 = vunpack.c.l.b16 %v446
    %v1316 = vunpack.c.h.b16 %v446
    %v1317 = vunpack.c.l.b16 %v447
    %v1318 = vunpack.c.h.b16 %v447
    %v1319 = vunpack.c.l.b16 %v448
    %v1320 = vunpack.c.h.b16 %v448
    %v1321 = vunpack.c.l.b16 %v449
    %v1322 = vunpack.c.h.b16 %v449
    %v1323 = vunpack.c.l.b16 %v450
    %v1324 = vunpack.c.h.b16 %v450
    %v1325 = vunpack.c.l.b16 %v451
    %v1326 = vunpack.c.h.b16 %v451
    %v1327 = vunpack.c.l.b16 %v452
    %v1328 = vunpack.c.h.b16 %v452
    %v1329 = vunpack.c.l.b16 %v453
    %v1330 = vunpack.c.h.b16 %v453
    %v1331 = vunpack.c.l.b16 %v454
    %v1332 = vunpack.c.h.b16 %v454
    %v1333 = vpack.c.b16 %v763, %v757
    %v1334 = vpack.c.b16 %v764, %v758
    %v1335 = vpack.c.b16 %v765, %v759
    %v1336 = vpack.c.b16 %v766, %v760
    %v1337 = vpack.c.b16 %v767, %v761
    %v1338 = vpack.c.b16 %v768, %v762
    %v1339 = vpack.c.b16 %v775, %v769
    %v1340 = vpack.c.b16 %v776, %v770
    %v1341 = vpack.c.b16 %v777, %v771
    %v1342 = vpack.c.b16 %v778, %v772
    %v1343 = vpack.c.b16 %v779, %v773
    %v1344 = vpack.c.b16 %v780, %v774
    %v1345 = vpack.c.b16 %v787, %v781
    %v1346 = vpack.c.b16 %v788, %v782
    %v1347 = vpack.c.b16 %v789, %v783
    %v1348 = vpack.c.b16 %v790, %v784
    %v1349 = vpack.c.b16 %v791, %v785
    %v1350 = vpack.c.b16 %v792, %v786
    %v1351 = vpack.c.b16 %v799, %v793
    %v1352 = vpack.c.b16 %v800, %v794
    %v1353 = vpack.c.b16 %v801, %v795
    %v1354 = vpack.c.b16 %v802, %v796
    %v1355 = vpack.c.b16 %v803, %v797
    %v1356 = vpack.c.b16 %v804, %v798
    %v1357 = vpack.c.b16 %v811, %v805
    %v1358 = vpack.c.b16 %v812, %v806
    %v1359 = vpack.c.b16 %v813, %v807
    %v1360 = vpack.c.b16 %v814, %v808
    %v1361 = vpack.c.b16 %v815, %v809
    %v1362 = vpack.c.b16 %v816, %v810
    %v1363 = vpack.c.b16 %v823, %v817
    %v1364 = vpack.c.b16 %v824, %v818
    %v1365 = vpack.c.b16 %v825, %v819
    %v1366 = vpack.c.b16 %v826, %v820
    %v1367 = vpack.c.b16 %v827, %v821
    %v1368 = vpack.c.b16 %v828, %v822
    %v1369 = vpack.c.b16 %v835, %v829
    %v1370 = vpack.c.b16 %v836, %v830
    %v1371 = vpack.c.b16 %v837, %v831
    %v1372 = vpack.c.b16 %v838, %v832
    %v1373 = vpack.c.b16 %v839, %v833
    %v1374 = vpack.c.b16 %v840, %v834
    %v1375 = vpack.c.b16 %v847, %v841
    %v1376 = vpack.c.b16 %v848, %v842
    %v1377 = vpack.c.b16 %v849, %v843
    %v1378 = vpack.c.b16 %v850, %v844
    %v1379 = vpack.c.b16 %v851, %v845
    %v1380 = vpack.c.b16 %v852, %v846
    %v1381 = vpack.c.b16 %v859, %v853
    %v1382 = vpack.c.b16 %v860, %v854
    %v1383 = vpack.c.b16 %v861, %v855
    %v1384 = vpack.c.b16 %v862, %v856
    %v1385 = vpack.c.b16 %v863, %v857
    %v1386 = vpack.c.b16 %v864, %v858
    %v1387 = vpack.c.b16 %v871, %v865
    %v1388 = vpack.c.b16 %v872, %v866
    %v1389 = vpack.c.b16 %v873, %v867
    %v1390 = vpack.c.b16 %v874, %v868
    %v1391 = vpack.c.b16 %v875, %v869
    %v1392 = vpack.c.b16 %v876, %v870
    %v1393 = vpack.c.b16 %v883, %v877
    %v1394 = vpack.c.b16 %v884, %v878
    %v1395 = vpack.c.b16 %v885, %v879
    %v1396 = vpack.c.b16 %v886, %v880
    %v1397 = vpack.c.b16 %v887, %v881
    %v1398 = vpack.c.b16 %v888, %v882
    %v1399 = vpack.c.b16 %v895, %v889
    %v1400 = vpack.c.b16 %v896, %v890
    %v1401 = vpack.c.b16 %v897, %v891
    %v1402 = vpack.c.b16 %v898, %v892
    %v1403 = vpack.c.b16 %v899, %v893
    %v1404 = vpack.c.b16 %v900, %v894
    %v1405 = vpack.c.b16 %v907, %v901
    %v1406 = vpack.c.b16 %v908, %v902
    %v1407 = vpack.c.b16 %v909, %v903
    %v1408 = vpack.c.b16 %v910, %v904
    %v1409 = vpack.c.b16 %v911, %v905
    %v1410 = vpack.c.b16 %v912, %v906
    %v1411 = vpack.c.b16 %v919, %v913
    %v1412 = vpack.c.b16 %v920, %v914
    %v1413 = vpack.c.b16 %v921, %v915
    %v1414 = vpack.c.b16 %v922, %v916
    %v1415 = vpack.c.b16 %v923, %v917
    %v1416 = vpack.c.b16 %v924, %v918
    %v1417 = vpack.c.b16 %v931, %v925
    %v1418 = vpack.c.b16 %v932, %v926
    %v1419 = vpack.c.b16 %v933, %v927
    %v1420 = vpack.c.b16 %v934, %v928
    %v1421 = vpack.c.b16 %v935, %v929
    %v1422 = vpack.c.b16 %v936, %v930
    %v1423 = vpack.c.b16 %v943, %v937
    %v1424 = vpack.c.b16 %v944, %v938
    %v1425 = vpack.c.b16 %v945, %v939
    %v1426 = vpack.c.b16 %v946, %v940
    %v1427 = vpack.c.b16 %v947, %v941
    %v1428 = vpack.c.b16 %v948, %v942
    %v1429 = vpack.c.b16 %v955, %v949
    %v1430 = vpack.c.b16 %v956, %v950
    %v1431 = vpack.c.b16 %v957, %v951
    %v1432 = vpack.c.b16 %v958, %v952
    %v1433 = vpack.c.b16 %v959, %v953
    %v1434 = vpack.c.b16 %v960, %v954
    %v1435 = vpack.c.b16 %v967, %v961
    %v1436 = vpack.c.b16 %v968, %v962
    %v1437 = vpack.c.b16 %v969, %v963
    %v1438 = vpack.c.b16 %v970, %v964
    %v1439 = vpack.c.b16 %v971, %v965
    %v1440 = vpack.c.b16 %v972, %v966
    %v1441 = vpack.c.b16 %v979, %v973
    %v1442 = vpack.c.b16 %v980, %v974
    %v1443 = vpack.c.b16 %v981, %v975
    %v1444 = vpack.c.b16 %v982, %v976
    %v1445 = vpack.c.b16 %v983, %v977
    %v1446 = vpack.c.b16 %v984, %v978
    %v1447 = vpack.c.b16 %v991, %v985
    %v1448 = vpack.c.b16 %v992, %v986
    %v1449 = vpack.c.b16 %v993, %v987
    %v1450 = vpack.c.b16 %v994, %v988
    %v1451 = vpack.c.b16 %v995, %v989
    %v1452 = vpack.c.b16 %v996, %v990
    %v1453 = vpack.c.b16 %v1003, %v997
    %v1454 = vpack.c.b16 %v1004, %v998
    %v1455 = vpack.c.b16 %v1005, %v999
    %v1456 = vpack.c.b16 %v1006, %v1000
    %v1457 = vpack.c.b16 %v1007, %v1001
    %v1458 = vpack.c.b16 %v1008, %v1002
    %v1459 = vpack.c.b16 %v1015, %v1009
    %v1460 = vpack.c.b16 %v1016, %v1010
    %v1461 = vpack.c.b16 %v1017, %v1011
    %v1462 = vpack.c.b16 %v1018, %v1012
    %v1463 = vpack.c.b16 %v1019, %v1013
    %v1464 = vpack.c.b16 %v1020, %v1014
    %v1465 = vpack.c.b16 %v1027, %v1021
    %v1466 = vpack.c.b16 %v1028, %v1022
    %v1467 = vpack.c.b16 %v1029, %v1023
    %v1468 = vpack.c.b16 %v1030, %v1024
    %v1469 = vpack.c.b16 %v1031, %v1025
    %v1470 = vpack.c.b16 %v1032, %v1026
    %v1471 = vpack.c.b16 %v1039, %v1033
    %v1472 = vpack.c.b16 %v1040, %v1034
    %v1473 = vpack.c.b16 %v1041, %v1035
    %v1474 = vpack.c.b16 %v1042, %v1036
    %v1475 = vpack.c.b16 %v1043, %v1037
    %v1476 = vpack.c.b16 %v1044, %v1038
    %v1477 = vpack.c.b16 %v1051, %v1045
    %v1478 = vpack.c.b16 %v1052, %v1046
    %v1479 = vpack.c.b16 %v1053, %v1047
    %v1480 = vpack.c.b16 %v1054, %v1048
    %v1481 = vpack.c.b16 %v1055, %v1049
    %v1482 = vpack.c.b16 %v1056, %v1050
    %v1483 = vpack.c.b16 %v1063, %v1057
    %v1484 = vpack.c.b16 %v1064, %v1058
    %v1485 = vpack.c.b16 %v1065, %v1059
    %v1486 = vpack.c.b16 %v1066, %v1060
    %v1487 = vpack.c.b16 %v1067, %v1061
    %v1488 = vpack.c.b16 %v1068, %v1062
    %v1489 = vpack.c.b16 %v1075, %v1069
    %v1490 = vpack.c.b16 %v1076, %v1070
    %v1491 = vpack.c.b16 %v1077, %v1071
    %v1492 = vpack.c.b16 %v1078, %v1072
    %v1493 = vpack.c.b16 %v1079, %v1073
    %v1494 = vpack.c.b16 %v1080, %v1074
    %v1495 = vpack.c.b16 %v1087, %v1081
    %v1496 = vpack.c.b16 %v1088, %v1082
    %v1497 = vpack.c.b16 %v1089, %v1083
    %v1498 = vpack.c.b16 %v1090, %v1084
    %v1499 = vpack.c.b16 %v1091, %v1085
    %v1500 = vpack.c.b16 %v1092, %v1086
    %v1501 = vpack.c.b16 %v1099, %v1093
    %v1502 = vpack.c.b16 %v1100, %v1094
    %v1503 = vpack.c.b16 %v1101, %v1095
    %v1504 = vpack.c.b16 %v1102, %v1096
    %v1505 = vpack.c.b16 %v1103, %v1097
    %v1506 = vpack.c.b16 %v1104, %v1098
    %v1507 = vpack.c.b16 %v1111, %v1105
    %v1508 = vpack.c.b16 %v1112, %v1106
    %v1509 = vpack.c.b16 %v1113, %v1107
    %v1510 = vpack.c.b16 %v1114, %v1108
    %v1511 = vpack.c.b16 %v1115, %v1109
    %v1512 = vpack.c.b16 %v1116, %v1110
    %v1513 = vpack.c.b16 %v1123, %v1117
    %v1514 = vpack.c.b16 %v1124, %v1118
    %v1515 = vpack.c.b16 %v1125, %v1119
    %v1516 = vpack.c.b16 %v1126, %v1120
    %v1517 = vpack.c.b16 %v1127, %v1121
    %v1518 = vpack.c.b16 %v1128, %v1122
    %v1519 = vpack.c.b16 %v1135, %v1129
    %v1520 = vpack.c.b16 %v1136, %v1130
    %v1521 = vpack.c.b16 %v1137, %v1131
    %v1522 = vpack.c.b16 %v1138, %v1132
    %v1523 = vpack.c.b16 %v1139, %v1133
    %v1524 = vpack.c.b16 %v1140, %v1134
    %v1525 = vpack.c.b16 %v1147, %v1141
    %v1526 = vpack.c.b16 %v1148, %v1142
    %v1527 = vpack.c.b16 %v1149, %v1143
    %v1528 = vpack.c.b16 %v1150, %v1144
    %v1529 = vpack.c.b16 %v1151, %v1145
    %v1530 = vpack.c.b16 %v1152, %v1146
    %v1531 = vpack.c.b16 %v1159, %v1153
    %v1532 = vpack.c.b16 %v1160, %v1154
    %v1533 = vpack.c.b16 %v1161, %v1155
    %v1534 = vpack.c.b16 %v1162, %v1156
    %v1535 = vpack.c.b16 %v1163, %v1157
    %v1536 = vpack.c.b16 %v1164, %v1158
    %v1537 = vpack.c.b16 %v1171, %v1165
    %v1538 = vpack.c.b16 %v1172, %v1166
    %v1539 = vpack.c.b16 %v1173, %v1167
    %v1540 = vpack.c.b16 %v1174, %v1168
    %v1541 = vpack.c.b16 %v1175, %v1169
    %v1542 = vpack.c.b16 %v1176, %v1170
    %v1543 = vpack.c.b16 %v1183, %v1177
    %v1544 = vpack.c.b16 %v1184, %v1178
    %v1545 = vpack.c.b16 %v1185, %v1179
    %v1546 = vpack.c.b16 %v1186, %v1180
    %v1547 = vpack.c.b16 %v1187, %v1181
    %v1548 = vpack.c.b16 %v1188, %v1182
    %v1549 = vpack.c.b16 %v1195, %v1189
    %v1550 = vpack.c.b16 %v1196, %v1190
    %v1551 = vpack.c.b16 %v1197, %v1191
    %v1552 = vpack.c.b16 %v1198, %v1192
    %v1553 = vpack.c.b16 %v1199, %v1193
    %v1554 = vpack.c.b16 %v1200, %v1194
    %v1555 = vpack.c.b16 %v1207, %v1201
    %v1556 = vpack.c.b16 %v1208, %v1202
    %v1557 = vpack.c.b16 %v1209, %v1203
    %v1558 = vpack.c.b16 %v1210, %v1204
    %v1559 = vpack.c.b16 %v1211, %v1205
    %v1560 = vpack.c.b16 %v1212, %v1206
    %v1561 = vpack.c.b16 %v1219, %v1213
    %v1562 = vpack.c.b16 %v1220, %v1214
    %v1563 = vpack.c.b16 %v1221, %v1215
    %v1564 = vpack.c.b16 %v1222, %v1216
    %v1565 = vpack.c.b16 %v1223, %v1217
    %v1566 = vpack.c.b16 %v1224, %v1218
    %v1567 = vpack.c.b16 %v1231, %v1225
    %v1568 = vpack.c.b16 %v1232, %v1226
    %v1569 = vpack.c.b16 %v1233, %v1227
    %v1570 = vpack.c.b16 %v1234, %v1228
    %v1571 = vpack.c.b16 %v1235, %v1229
    %v1572 = vpack.c.b16 %v1236, %v1230
    %v1573 = vpack.c.b16 %v1243, %v1237
    %v1574 = vpack.c.b16 %v1244, %v1238
    %v1575 = vpack.c.b16 %v1245, %v1239
    %v1576 = vpack.c.b16 %v1246, %v1240
    %v1577 = vpack.c.b16 %v1247, %v1241
    %v1578 = vpack.c.b16 %v1248, %v1242
    %v1579 = vpack.c.b16 %v1255, %v1249
    %v1580 = vpack.c.b16 %v1256, %v1250
    %v1581 = vpack.c.b16 %v1257, %v1251
    %v1582 = vpack.c.b16 %v1258, %v1252
    %v1583 = vpack.c.b16 %v1259, %v1253
    %v1584 = vpack.c.b16 %v1260, %v1254
    %v1585 = vpack.c.b16 %v1267, %v1261
    %v1586 = vpack.c.b16 %v1268, %v1262
    %v1587 = vpack.c.b16 %v1269, %v1263
    %v1588 = vpack.c.b16 %v1270, %v1264
    %v1589 = vpack.c.b16 %v1271, %v1265
    %v1590 = vpack.c.b16 %v1272, %v1266
    %v1591 = vpack.c.b16 %v1279, %v1273
    %v1592 = vpack.c.b16 %v1280, %v1274
    %v1593 = vpack.c.b16 %v1281, %v1275
    %v1594 = vpack.c.b16 %v1282, %v1276
    %v1595 = vpack.c.b16 %v1283, %v1277
    %v1596 = vpack.c.b16 %v1284, %v1278
    %v1597 = vpack.c.b16 %v1291, %v1285
    %v1598 = vpack.c.b16 %v1292, %v1286
    %v1599 = vpack.c.b16 %v1293, %v1287
    %v1600 = vpack.c.b16 %v1294, %v1288
    %v1601 = vpack.c.b16 %v1295, %v1289
    %v1602 = vpack.c.b16 %v1296, %v1290
    %v1603 = vpack.c.b16 %v1303, %v1297
    %v1604 = vpack.c.b16 %v1304, %v1298
    %v1605 = vpack.c.b16 %v1305, %v1299
    %v1606 = vpack.c.b16 %v1306, %v1300
    %v1607 = vpack.c.b16 %v1307, %v1301
    %v1608 = vpack.c.b16 %v1308, %v1302
    %v1609 = vpack.c.b16 %v1315, %v1309
    %v1610 = vpack.c.b16 %v1316, %v1310
    %v1611 = vpack.c.b16 %v1317, %v1311
    %v1612 = vpack.c.b16 %v1318, %v1312
    %v1613 = vpack.c.b16 %v1319, %v1313
    %v1614 = vpack.c.b16 %v1320, %v1314
    %v1615 = vpack.c.b16 %v1327, %v1321
    %v1616 = vpack.c.b16 %v1328, %v1322
    %v1617 = vpack.c.b16 %v1329, %v1323
    %v1618 = vpack.c.b16 %v1330, %v1324
    %v1619 = vpack.c.b16 %v1331, %v1325
    %v1620 = vpack.c.b16 %v1332, %v1326
    %1909 = vmatpush.bf16.msra.mxu0 %v1375
    %1910 = vmatpush.bf16.msra.mxu0 %v1369
    %1911 = vmatpush.bf16.msra.mxu0 %v1363
    %1912 = vmatpush.bf16.msra.mxu0 %v1357
    %1913 = vmatpush.bf16.msra.mxu0 %v1351
    %1914 = vmatpush.bf16.msra.mxu0 %v1345
    %1915 = vmatpush.bf16.msra.mxu0 %v1339
    %1916 = vmatpush.bf16.msra.mxu0 %v1333
    %1917 = vmatmul.bf16.gmra.mxu0 %v161
    %v1918 = vpop.f32.mrf.mxu0
    %v1919 = vadd.f32 %v457, %v1918
    %v1920 = vpop.f32.mrf.mxu0
    %1921 = vdwg.mxu0
    %1922 = vmatpush.bf16.msra.mxu0 %v1423
    %1923 = vmatpush.bf16.msra.mxu0 %v1417
    %1924 = vmatpush.bf16.msra.mxu0 %v1411
    %1925 = vmatpush.bf16.msra.mxu0 %v1405
    %1926 = vmatpush.bf16.msra.mxu0 %v1399
    %1927 = vmatpush.bf16.msra.mxu0 %v1393
    %1928 = vmatpush.bf16.msra.mxu0 %v1387
    %1929 = vmatpush.bf16.msra.mxu0 %v1381
    %1930 = vmatmul.bf16.gmra.mxu0 %v162
    %v1931 = vpop.f32.mrf.mxu0
    %v1932 = vadd.f32 %v1919, %v1931
    %v1933 = vpop.f32.mrf.mxu0
    %1934 = vdwg.mxu0
    %1935 = vmatpush.bf16.msra.mxu0 %v1471
    %1936 = vmatpush.bf16.msra.mxu0 %v1465
    %1937 = vmatpush.bf16.msra.mxu0 %v1459
    %1938 = vmatpush.bf16.msra.mxu0 %v1453
    %1939 = vmatpush.bf16.msra.mxu0 %v1447
    %1940 = vmatpush.bf16.msra.mxu0 %v1441
    %1941 = vmatpush.bf16.msra.mxu0 %v1435
    %1942 = vmatpush.bf16.msra.mxu0 %v1429
    %1943 = vmatmul.bf16.gmra.mxu0 %v163
    %v1944 = vpop.f32.mrf.mxu0
    %v1945 = vadd.f32 %v1932, %v1944
    %v1946 = vpop.f32.mrf.mxu0
    %1947 = vdwg.mxu0
    %1948 = vmatpush.bf16.msra.mxu0 %v1519
    %1949 = vmatpush.bf16.msra.mxu0 %v1513
    %1950 = vmatpush.bf16.msra.mxu0 %v1507
    %1951 = vmatpush.bf16.msra.mxu0 %v1501
    %1952 = vmatpush.bf16.msra.mxu0 %v1495
    %1953 = vmatpush.bf16.msra.mxu0 %v1489
    %1954 = vmatpush.bf16.msra.mxu0 %v1483
    %1955 = vmatpush.bf16.msra.mxu0 %v1477
    %1956 = vmatmul.bf16.gmra.mxu0 %v164
    %v1957 = vpop.f32.mrf.mxu0
    %v1958 = vadd.f32 %v1945, %v1957
    %v1959 = vpop.f32.mrf.mxu0
    %1960 = vdwg.mxu0
    %1961 = vmatpush.bf16.msra.mxu0 %v1567
    %1962 = vmatpush.bf16.msra.mxu0 %v1561
    %1963 = vmatpush.bf16.msra.mxu0 %v1555
    %1964 = vmatpush.bf16.msra.mxu0 %v1549
    %1965 = vmatpush.bf16.msra.mxu0 %v1543
    %1966 = vmatpush.bf16.msra.mxu0 %v1537
    %1967 = vmatpush.bf16.msra.mxu0 %v1531
    %1968 = vmatpush.bf16.msra.mxu0 %v1525
    %1969 = vmatmul.bf16.gmra.mxu0 %v165
    %v1970 = vpop.f32.mrf.mxu0
    %v1971 = vadd.f32 %v1958, %v1970
    %v1972 = vpop.f32.mrf.mxu0
    %1973 = vdwg.mxu0
    %1974 = vmatpush.bf16.msra.mxu0 %v1615
    %1975 = vmatpush.bf16.msra.mxu0 %v1609
    %1976 = vmatpush.bf16.msra.mxu0 %v1603
    %1977 = vmatpush.bf16.msra.mxu0 %v1597
    %1978 = vmatpush.bf16.msra.mxu0 %v1591
    %1979 = vmatpush.bf16.msra.mxu0 %v1585
    %1980 = vmatpush.bf16.msra.mxu0 %v1579
    %1981 = vmatpush.bf16.msra.mxu0 %v1573
    %1982 = vmatmul.bf16.gmra.mxu0 %v166
    %v1983 = vpop.f32.mrf.mxu0
    %v1984 = vadd.f32 %v1971, %v1983
    %v1985 = vpop.f32.mrf.mxu0
    %1986 = vdwg.mxu0
    %1987 = vmatpush.bf16.msra.mxu0 %v1376
    %1988 = vmatpush.bf16.msra.mxu0 %v1370
    %1989 = vmatpush.bf16.msra.mxu0 %v1364
    %1990 = vmatpush.bf16.msra.mxu0 %v1358
    %1991 = vmatpush.bf16.msra.mxu0 %v1352
    %1992 = vmatpush.bf16.msra.mxu0 %v1346
    %1993 = vmatpush.bf16.msra.mxu0 %v1340
    %1994 = vmatpush.bf16.msra.mxu0 %v1334
    %1995 = vmatmul.bf16.gmra.mxu0 %v161
    %v1996 = vpop.f32.mrf.mxu0
    %v1997 = vadd.f32 %v458, %v1996
    %v1998 = vpop.f32.mrf.mxu0
    %1999 = vdwg.mxu0
    %2000 = vmatpush.bf16.msra.mxu0 %v1424
    %2001 = vmatpush.bf16.msra.mxu0 %v1418
    %2002 = vmatpush.bf16.msra.mxu0 %v1412
    %2003 = vmatpush.bf16.msra.mxu0 %v1406
    %2004 = vmatpush.bf16.msra.mxu0 %v1400
    %2005 = vmatpush.bf16.msra.mxu0 %v1394
    %2006 = vmatpush.bf16.msra.mxu0 %v1388
    %2007 = vmatpush.bf16.msra.mxu0 %v1382
    %2008 = vmatmul.bf16.gmra.mxu0 %v162
    %v2009 = vpop.f32.mrf.mxu0
    %v2010 = vadd.f32 %v1997, %v2009
    %v2011 = vpop.f32.mrf.mxu0
    %2012 = vdwg.mxu0
    %2013 = vmatpush.bf16.msra.mxu0 %v1472
    %2014 = vmatpush.bf16.msra.mxu0 %v1466
    %2015 = vmatpush.bf16.msra.mxu0 %v1460
    %2016 = vmatpush.bf16.msra.mxu0 %v1454
    %2017 = vmatpush.bf16.msra.mxu0 %v1448
    %2018 = vmatpush.bf16.msra.mxu0 %v1442
    %2019 = vmatpush.bf16.msra.mxu0 %v1436
    %2020 = vmatpush.bf16.msra.mxu0 %v1430
    %2021 = vmatmul.bf16.gmra.mxu0 %v163
    %v2022 = vpop.f32.mrf.mxu0
    %v2023 = vadd.f32 %v2010, %v2022
    %v2024 = vpop.f32.mrf.mxu0
    %2025 = vdwg.mxu0
    %2026 = vmatpush.bf16.msra.mxu0 %v1520
    %2027 = vmatpush.bf16.msra.mxu0 %v1514
    %2028 = vmatpush.bf16.msra.mxu0 %v1508
    %2029 = vmatpush.bf16.msra.mxu0 %v1502
    %2030 = vmatpush.bf16.msra.mxu0 %v1496
    %2031 = vmatpush.bf16.msra.mxu0 %v1490
    %2032 = vmatpush.bf16.msra.mxu0 %v1484
    %2033 = vmatpush.bf16.msra.mxu0 %v1478
    %2034 = vmatmul.bf16.gmra.mxu0 %v164
    %v2035 = vpop.f32.mrf.mxu0
    %v2036 = vadd.f32 %v2023, %v2035
    %v2037 = vpop.f32.mrf.mxu0
    %2038 = vdwg.mxu0
    %2039 = vmatpush.bf16.msra.mxu0 %v1568
    %2040 = vmatpush.bf16.msra.mxu0 %v1562
    %2041 = vmatpush.bf16.msra.mxu0 %v1556
    %2042 = vmatpush.bf16.msra.mxu0 %v1550
    %2043 = vmatpush.bf16.msra.mxu0 %v1544
    %2044 = vmatpush.bf16.msra.mxu0 %v1538
    %2045 = vmatpush.bf16.msra.mxu0 %v1532
    %2046 = vmatpush.bf16.msra.mxu0 %v1526
    %2047 = vmatmul.bf16.gmra.mxu0 %v165
    %v2048 = vpop.f32.mrf.mxu0
    %v2049 = vadd.f32 %v2036, %v2048
    %v2050 = vpop.f32.mrf.mxu0
    %2051 = vdwg.mxu0
    %2052 = vmatpush.bf16.msra.mxu0 %v1616
    %2053 = vmatpush.bf16.msra.mxu0 %v1610
    %2054 = vmatpush.bf16.msra.mxu0 %v1604
    %2055 = vmatpush.bf16.msra.mxu0 %v1598
    %2056 = vmatpush.bf16.msra.mxu0 %v1592
    %2057 = vmatpush.bf16.msra.mxu0 %v1586
    %2058 = vmatpush.bf16.msra.mxu0 %v1580
    %2059 = vmatpush.bf16.msra.mxu0 %v1574
    %2060 = vmatmul.bf16.gmra.mxu0 %v166
    %v2061 = vpop.f32.mrf.mxu0
    %v2062 = vadd.f32 %v2049, %v2061
    %v2063 = vpop.f32.mrf.mxu0
    %2064 = vdwg.mxu0
    %2065 = vmatpush.bf16.msra.mxu0 %v1377
    %2066 = vmatpush.bf16.msra.mxu0 %v1371
    %2067 = vmatpush.bf16.msra.mxu0 %v1365
    %2068 = vmatpush.bf16.msra.mxu0 %v1359
    %2069 = vmatpush.bf16.msra.mxu0 %v1353
    %2070 = vmatpush.bf16.msra.mxu0 %v1347
    %2071 = vmatpush.bf16.msra.mxu0 %v1341
    %2072 = vmatpush.bf16.msra.mxu0 %v1335
    %2073 = vmatmul.bf16.gmra.mxu0 %v161
    %v2074 = vpop.f32.mrf.mxu0
    %v2075 = vadd.f32 %v459, %v2074
    %v2076 = vpop.f32.mrf.mxu0
    %2077 = vdwg.mxu0
    %2078 = vmatpush.bf16.msra.mxu0 %v1425
    %2079 = vmatpush.bf16.msra.mxu0 %v1419
    %2080 = vmatpush.bf16.msra.mxu0 %v1413
    %2081 = vmatpush.bf16.msra.mxu0 %v1407
    %2082 = vmatpush.bf16.msra.mxu0 %v1401
    %2083 = vmatpush.bf16.msra.mxu0 %v1395
    %2084 = vmatpush.bf16.msra.mxu0 %v1389
    %2085 = vmatpush.bf16.msra.mxu0 %v1383
    %2086 = vmatmul.bf16.gmra.mxu0 %v162
    %v2087 = vpop.f32.mrf.mxu0
    %v2088 = vadd.f32 %v2075, %v2087
    %v2089 = vpop.f32.mrf.mxu0
    %2090 = vdwg.mxu0
    %2091 = vmatpush.bf16.msra.mxu0 %v1473
    %2092 = vmatpush.bf16.msra.mxu0 %v1467
    %2093 = vmatpush.bf16.msra.mxu0 %v1461
    %2094 = vmatpush.bf16.msra.mxu0 %v1455
    %2095 = vmatpush.bf16.msra.mxu0 %v1449
    %2096 = vmatpush.bf16.msra.mxu0 %v1443
    %2097 = vmatpush.bf16.msra.mxu0 %v1437
    %2098 = vmatpush.bf16.msra.mxu0 %v1431
    %2099 = vmatmul.bf16.gmra.mxu0 %v163
    %v2100 = vpop.f32.mrf.mxu0
    %v2101 = vadd.f32 %v2088, %v2100
    %v2102 = vpop.f32.mrf.mxu0
    %2103 = vdwg.mxu0
    %2104 = vmatpush.bf16.msra.mxu0 %v1521
    %2105 = vmatpush.bf16.msra.mxu0 %v1515
    %2106 = vmatpush.bf16.msra.mxu0 %v1509
    %2107 = vmatpush.bf16.msra.mxu0 %v1503
    %2108 = vmatpush.bf16.msra.mxu0 %v1497
    %2109 = vmatpush.bf16.msra.mxu0 %v1491
    %2110 = vmatpush.bf16.msra.mxu0 %v1485
    %2111 = vmatpush.bf16.msra.mxu0 %v1479
    %2112 = vmatmul.bf16.gmra.mxu0 %v164
    %v2113 = vpop.f32.mrf.mxu0
    %v2114 = vadd.f32 %v2101, %v2113
    %v2115 = vpop.f32.mrf.mxu0
    %2116 = vdwg.mxu0
    %2117 = vmatpush.bf16.msra.mxu0 %v1569
    %2118 = vmatpush.bf16.msra.mxu0 %v1563
    %2119 = vmatpush.bf16.msra.mxu0 %v1557
    %2120 = vmatpush.bf16.msra.mxu0 %v1551
    %2121 = vmatpush.bf16.msra.mxu0 %v1545
    %2122 = vmatpush.bf16.msra.mxu0 %v1539
    %2123 = vmatpush.bf16.msra.mxu0 %v1533
    %2124 = vmatpush.bf16.msra.mxu0 %v1527
    %2125 = vmatmul.bf16.gmra.mxu0 %v165
    %v2126 = vpop.f32.mrf.mxu0
    %v2127 = vadd.f32 %v2114, %v2126
    %v2128 = vpop.f32.mrf.mxu0
    %2129 = vdwg.mxu0
    %2130 = vmatpush.bf16.msra.mxu0 %v1617
    %2131 = vmatpush.bf16.msra.mxu0 %v1611
    %2132 = vmatpush.bf16.msra.mxu0 %v1605
    %2133 = vmatpush.bf16.msra.mxu0 %v1599
    %2134 = vmatpush.bf16.msra.mxu0 %v1593
    %2135 = vmatpush.bf16.msra.mxu0 %v1587
    %2136 = vmatpush.bf16.msra.mxu0 %v1581
    %2137 = vmatpush.bf16.msra.mxu0 %v1575
    %2138 = vmatmul.bf16.gmra.mxu0 %v166
    %v2139 = vpop.f32.mrf.mxu0
    %v2140 = vadd.f32 %v2127, %v2139
    %v2141 = vpop.f32.mrf.mxu0
    %2142 = vdwg.mxu0
    %2143 = vmatpush.bf16.msra.mxu0 %v1378
    %2144 = vmatpush.bf16.msra.mxu0 %v1372
    %2145 = vmatpush.bf16.msra.mxu0 %v1366
    %2146 = vmatpush.bf16.msra.mxu0 %v1360
    %2147 = vmatpush.bf16.msra.mxu0 %v1354
    %2148 = vmatpush.bf16.msra.mxu0 %v1348
    %2149 = vmatpush.bf16.msra.mxu0 %v1342
    %2150 = vmatpush.bf16.msra.mxu0 %v1336
    %2151 = vmatmul.bf16.gmra.mxu0 %v161
    %v2152 = vpop.f32.mrf.mxu0
    %v2153 = vadd.f32 %v460, %v2152
    %v2154 = vpop.f32.mrf.mxu0
    %2155 = vdwg.mxu0
    %2156 = vmatpush.bf16.msra.mxu0 %v1426
    %2157 = vmatpush.bf16.msra.mxu0 %v1420
    %2158 = vmatpush.bf16.msra.mxu0 %v1414
    %2159 = vmatpush.bf16.msra.mxu0 %v1408
    %2160 = vmatpush.bf16.msra.mxu0 %v1402
    %2161 = vmatpush.bf16.msra.mxu0 %v1396
    %2162 = vmatpush.bf16.msra.mxu0 %v1390
    %2163 = vmatpush.bf16.msra.mxu0 %v1384
    %2164 = vmatmul.bf16.gmra.mxu0 %v162
    %v2165 = vpop.f32.mrf.mxu0
    %v2166 = vadd.f32 %v2153, %v2165
    %v2167 = vpop.f32.mrf.mxu0
    %2168 = vdwg.mxu0
    %2169 = vmatpush.bf16.msra.mxu0 %v1474
    %2170 = vmatpush.bf16.msra.mxu0 %v1468
    %2171 = vmatpush.bf16.msra.mxu0 %v1462
    %2172 = vmatpush.bf16.msra.mxu0 %v1456
    %2173 = vmatpush.bf16.msra.mxu0 %v1450
    %2174 = vmatpush.bf16.msra.mxu0 %v1444
    %2175 = vmatpush.bf16.msra.mxu0 %v1438
    %2176 = vmatpush.bf16.msra.mxu0 %v1432
    %2177 = vmatmul.bf16.gmra.mxu0 %v163
    %v2178 = vpop.f32.mrf.mxu0
    %v2179 = vadd.f32 %v2166, %v2178
    %v2180 = vpop.f32.mrf.mxu0
    %2181 = vdwg.mxu0
    %2182 = vmatpush.bf16.msra.mxu0 %v1522
    %2183 = vmatpush.bf16.msra.mxu0 %v1516
    %2184 = vmatpush.bf16.msra.mxu0 %v1510
    %2185 = vmatpush.bf16.msra.mxu0 %v1504
    %2186 = vmatpush.bf16.msra.mxu0 %v1498
    %2187 = vmatpush.bf16.msra.mxu0 %v1492
    %2188 = vmatpush.bf16.msra.mxu0 %v1486
    %2189 = vmatpush.bf16.msra.mxu0 %v1480
    %2190 = vmatmul.bf16.gmra.mxu0 %v164
    %v2191 = vpop.f32.mrf.mxu0
    %v2192 = vadd.f32 %v2179, %v2191
    %v2193 = vpop.f32.mrf.mxu0
    %2194 = vdwg.mxu0
    %2195 = vmatpush.bf16.msra.mxu0 %v1570
    %2196 = vmatpush.bf16.msra.mxu0 %v1564
    %2197 = vmatpush.bf16.msra.mxu0 %v1558
    %2198 = vmatpush.bf16.msra.mxu0 %v1552
    %2199 = vmatpush.bf16.msra.mxu0 %v1546
    %2200 = vmatpush.bf16.msra.mxu0 %v1540
    %2201 = vmatpush.bf16.msra.mxu0 %v1534
    %2202 = vmatpush.bf16.msra.mxu0 %v1528
    %2203 = vmatmul.bf16.gmra.mxu0 %v165
    %v2204 = vpop.f32.mrf.mxu0
    %v2205 = vadd.f32 %v2192, %v2204
    %v2206 = vpop.f32.mrf.mxu0
    %2207 = vdwg.mxu0
    %2208 = vmatpush.bf16.msra.mxu0 %v1618
    %2209 = vmatpush.bf16.msra.mxu0 %v1612
    %2210 = vmatpush.bf16.msra.mxu0 %v1606
    %2211 = vmatpush.bf16.msra.mxu0 %v1600
    %2212 = vmatpush.bf16.msra.mxu0 %v1594
    %2213 = vmatpush.bf16.msra.mxu0 %v1588
    %2214 = vmatpush.bf16.msra.mxu0 %v1582
    %2215 = vmatpush.bf16.msra.mxu0 %v1576
    %2216 = vmatmul.bf16.gmra.mxu0 %v166
    %v2217 = vpop.f32.mrf.mxu0
    %v2218 = vadd.f32 %v2205, %v2217
    %v2219 = vpop.f32.mrf.mxu0
    %2220 = vdwg.mxu0
    %2221 = vmatpush.bf16.msra.mxu0 %v1379
    %2222 = vmatpush.bf16.msra.mxu0 %v1373
    %2223 = vmatpush.bf16.msra.mxu0 %v1367
    %2224 = vmatpush.bf16.msra.mxu0 %v1361
    %2225 = vmatpush.bf16.msra.mxu0 %v1355
    %2226 = vmatpush.bf16.msra.mxu0 %v1349
    %2227 = vmatpush.bf16.msra.mxu0 %v1343
    %2228 = vmatpush.bf16.msra.mxu0 %v1337
    %2229 = vmatmul.bf16.gmra.mxu0 %v161
    %v2230 = vpop.f32.mrf.mxu0
    %v2231 = vadd.f32 %v461, %v2230
    %v2232 = vpop.f32.mrf.mxu0
    %2233 = vdwg.mxu0
    %2234 = vmatpush.bf16.msra.mxu0 %v1427
    %2235 = vmatpush.bf16.msra.mxu0 %v1421
    %2236 = vmatpush.bf16.msra.mxu0 %v1415
    %2237 = vmatpush.bf16.msra.mxu0 %v1409
    %2238 = vmatpush.bf16.msra.mxu0 %v1403
    %2239 = vmatpush.bf16.msra.mxu0 %v1397
    %2240 = vmatpush.bf16.msra.mxu0 %v1391
    %2241 = vmatpush.bf16.msra.mxu0 %v1385
    %2242 = vmatmul.bf16.gmra.mxu0 %v162
    %v2243 = vpop.f32.mrf.mxu0
    %v2244 = vadd.f32 %v2231, %v2243
    %v2245 = vpop.f32.mrf.mxu0
    %2246 = vdwg.mxu0
    %2247 = vmatpush.bf16.msra.mxu0 %v1475
    %2248 = vmatpush.bf16.msra.mxu0 %v1469
    %2249 = vmatpush.bf16.msra.mxu0 %v1463
    %2250 = vmatpush.bf16.msra.mxu0 %v1457
    %2251 = vmatpush.bf16.msra.mxu0 %v1451
    %2252 = vmatpush.bf16.msra.mxu0 %v1445
    %2253 = vmatpush.bf16.msra.mxu0 %v1439
    %2254 = vmatpush.bf16.msra.mxu0 %v1433
    %2255 = vmatmul.bf16.gmra.mxu0 %v163
    %v2256 = vpop.f32.mrf.mxu0
    %v2257 = vadd.f32 %v2244, %v2256
    %v2258 = vpop.f32.mrf.mxu0
    %2259 = vdwg.mxu0
    %2260 = vmatpush.bf16.msra.mxu0 %v1523
    %2261 = vmatpush.bf16.msra.mxu0 %v1517
    %2262 = vmatpush.bf16.msra.mxu0 %v1511
    %2263 = vmatpush.bf16.msra.mxu0 %v1505
    %2264 = vmatpush.bf16.msra.mxu0 %v1499
    %2265 = vmatpush.bf16.msra.mxu0 %v1493
    %2266 = vmatpush.bf16.msra.mxu0 %v1487
    %2267 = vmatpush.bf16.msra.mxu0 %v1481
    %2268 = vmatmul.bf16.gmra.mxu0 %v164
    %v2269 = vpop.f32.mrf.mxu0
    %v2270 = vadd.f32 %v2257, %v2269
    %v2271 = vpop.f32.mrf.mxu0
    %2272 = vdwg.mxu0
    %2273 = vmatpush.bf16.msra.mxu0 %v1571
    %2274 = vmatpush.bf16.msra.mxu0 %v1565
    %2275 = vmatpush.bf16.msra.mxu0 %v1559
    %2276 = vmatpush.bf16.msra.mxu0 %v1553
    %2277 = vmatpush.bf16.msra.mxu0 %v1547
    %2278 = vmatpush.bf16.msra.mxu0 %v1541
    %2279 = vmatpush.bf16.msra.mxu0 %v1535
    %2280 = vmatpush.bf16.msra.mxu0 %v1529
    %2281 = vmatmul.bf16.gmra.mxu0 %v165
    %v2282 = vpop.f32.mrf.mxu0
    %v2283 = vadd.f32 %v2270, %v2282
    %v2284 = vpop.f32.mrf.mxu0
    %2285 = vdwg.mxu0
    %2286 = vmatpush.bf16.msra.mxu0 %v1619
    %2287 = vmatpush.bf16.msra.mxu0 %v1613
    %2288 = vmatpush.bf16.msra.mxu0 %v1607
    %2289 = vmatpush.bf16.msra.mxu0 %v1601
    %2290 = vmatpush.bf16.msra.mxu0 %v1595
    %2291 = vmatpush.bf16.msra.mxu0 %v1589
    %2292 = vmatpush.bf16.msra.mxu0 %v1583
    %2293 = vmatpush.bf16.msra.mxu0 %v1577
    %2294 = vmatmul.bf16.gmra.mxu0 %v166
    %v2295 = vpop.f32.mrf.mxu0
    %v2296 = vadd.f32 %v2283, %v2295
    %v2297 = vpop.f32.mrf.mxu0
    %2298 = vdwg.mxu0
    %2299 = vmatpush.bf16.msra.mxu0 %v1380
    %2300 = vmatpush.bf16.msra.mxu0 %v1374
    %2301 = vmatpush.bf16.msra.mxu0 %v1368
    %2302 = vmatpush.bf16.msra.mxu0 %v1362
    %2303 = vmatpush.bf16.msra.mxu0 %v1356
    %2304 = vmatpush.bf16.msra.mxu0 %v1350
    %2305 = vmatpush.bf16.msra.mxu0 %v1344
    %2306 = vmatpush.bf16.msra.mxu0 %v1338
    %2307 = vmatmul.bf16.gmra.mxu0 %v161
    %v2308 = vpop.f32.mrf.mxu0
    %v2309 = vadd.f32 %v462, %v2308
    %v2310 = vpop.f32.mrf.mxu0
    %2311 = vdwg.mxu0
    %2312 = vmatpush.bf16.msra.mxu0 %v1428
    %2313 = vmatpush.bf16.msra.mxu0 %v1422
    %2314 = vmatpush.bf16.msra.mxu0 %v1416
    %2315 = vmatpush.bf16.msra.mxu0 %v1410
    %2316 = vmatpush.bf16.msra.mxu0 %v1404
    %2317 = vmatpush.bf16.msra.mxu0 %v1398
    %2318 = vmatpush.bf16.msra.mxu0 %v1392
    %2319 = vmatpush.bf16.msra.mxu0 %v1386
    %2320 = vmatmul.bf16.gmra.mxu0 %v162
    %v2321 = vpop.f32.mrf.mxu0
    %v2322 = vadd.f32 %v2309, %v2321
    %v2323 = vpop.f32.mrf.mxu0
    %2324 = vdwg.mxu0
    %2325 = vmatpush.bf16.msra.mxu0 %v1476
    %2326 = vmatpush.bf16.msra.mxu0 %v1470
    %2327 = vmatpush.bf16.msra.mxu0 %v1464
    %2328 = vmatpush.bf16.msra.mxu0 %v1458
    %2329 = vmatpush.bf16.msra.mxu0 %v1452
    %2330 = vmatpush.bf16.msra.mxu0 %v1446
    %2331 = vmatpush.bf16.msra.mxu0 %v1440
    %2332 = vmatpush.bf16.msra.mxu0 %v1434
    %2333 = vmatmul.bf16.gmra.mxu0 %v163
    %v2334 = vpop.f32.mrf.mxu0
    %v2335 = vadd.f32 %v2322, %v2334
    %v2336 = vpop.f32.mrf.mxu0
    %2337 = vdwg.mxu0
    %2338 = vmatpush.bf16.msra.mxu0 %v1524
    %2339 = vmatpush.bf16.msra.mxu0 %v1518
    %2340 = vmatpush.bf16.msra.mxu0 %v1512
    %2341 = vmatpush.bf16.msra.mxu0 %v1506
    %2342 = vmatpush.bf16.msra.mxu0 %v1500
    %2343 = vmatpush.bf16.msra.mxu0 %v1494
    %2344 = vmatpush.bf16.msra.mxu0 %v1488
    %2345 = vmatpush.bf16.msra.mxu0 %v1482
    %2346 = vmatmul.bf16.gmra.mxu0 %v164
    %v2347 = vpop.f32.mrf.mxu0
    %v2348 = vadd.f32 %v2335, %v2347
    %v2349 = vpop.f32.mrf.mxu0
    %2350 = vdwg.mxu0
    %2351 = vmatpush.bf16.msra.mxu0 %v1572
    %2352 = vmatpush.bf16.msra.mxu0 %v1566
    %2353 = vmatpush.bf16.msra.mxu0 %v1560
    %2354 = vmatpush.bf16.msra.mxu0 %v1554
    %2355 = vmatpush.bf16.msra.mxu0 %v1548
    %2356 = vmatpush.bf16.msra.mxu0 %v1542
    %2357 = vmatpush.bf16.msra.mxu0 %v1536
    %2358 = vmatpush.bf16.msra.mxu0 %v1530
    %2359 = vmatmul.bf16.gmra.mxu0 %v165
    %v2360 = vpop.f32.mrf.mxu0
    %v2361 = vadd.f32 %v2348, %v2360
    %v2362 = vpop.f32.mrf.mxu0
    %2363 = vdwg.mxu0
    %2364 = vmatpush.bf16.msra.mxu0 %v1620
    %2365 = vmatpush.bf16.msra.mxu0 %v1614
    %2366 = vmatpush.bf16.msra.mxu0 %v1608
    %2367 = vmatpush.bf16.msra.mxu0 %v1602
    %2368 = vmatpush.bf16.msra.mxu0 %v1596
    %2369 = vmatpush.bf16.msra.mxu0 %v1590
    %2370 = vmatpush.bf16.msra.mxu0 %v1584
    %2371 = vmatpush.bf16.msra.mxu0 %v1578
    %2372 = vmatmul.bf16.gmra.mxu0 %v166
    %v2373 = vpop.f32.mrf.mxu0
    %v2374 = vadd.f32 %v2361, %v2373
    %v2375 = vpop.f32.mrf.mxu0
    %2376 = vdwg.mxu0
    %v2377 = vmax.f32 %v1984, 0.0
    %v2378 = vmax.f32 %v2062, 0.0
    %v2379 = vmax.f32 %v2140, 0.0
    %v2380 = vmax.f32 %v2218, 0.0
    %v2381 = vmax.f32 %v2296, 0.0
    %v2382 = vmax.f32 %v2374, 0.0
    %v2383 = vpack.c.bf16 %v2377, %v2377
    %v2384 = vpack.c.bf16 %v2378, %v2378
    %v2385 = vpack.c.bf16 %v2379, %v2379
    %v2386 = vpack.c.bf16 %v2380, %v2380
    %v2387 = vpack.c.bf16 %v2381, %v2381
    %v2388 = vpack.c.bf16 %v2382, %v2382
    %v2389 = vld [vmem:[#allocation10] sm:$0xff]
    %v2390 = vld [vmem:[#allocation10 + $0x8] sm:$0xff]
    %v2391 = vld [vmem:[#allocation10 + $0x10] sm:$0xff]
    %v2392 = vld [vmem:[#allocation10 + $0x18] sm:$0xff]
    %v2393 = vld [vmem:[#allocation10 + $0x20] sm:$0xff]
    %v2394 = vld [vmem:[#allocation10 + $0x28] sm:$0xff]
    %v2395 = vld [vmem:[#allocation10 + $0x30] sm:$0xff]
    %v2396 = vld [vmem:[#allocation10 + $0x38] sm:$0xff]
    %v2397 = vld [vmem:[#allocation10 + $0x40] sm:$0xff]
    %v2398 = vld [vmem:[#allocation10 + $0x48] sm:$0xff]
    %v2399 = vld [vmem:[#allocation10 + $0x50] sm:$0xff]
    %v2400 = vld [vmem:[#allocation10 + $0x58] sm:$0xff]
    %v2401 = vld [vmem:[#allocation10 + $0x60] sm:$0xff]
    %v2402 = vld [vmem:[#allocation10 + $0x68] sm:$0xff]
    %v2403 = vld [vmem:[#allocation10 + $0x70] sm:$0xff]
    %v2404 = vld [vmem:[#allocation10 + $0x78] sm:$0xff]
    %v2405 = vld [vmem:[#allocation10 + $0x80] sm:$0xff]
    %v2406 = vld [vmem:[#allocation10 + $0x88] sm:$0xff]
    %v2407 = vld [vmem:[#allocation10 + $0x90] sm:$0xff]
    %v2408 = vld [vmem:[#allocation10 + $0x98] sm:$0xff]
    %v2409 = vld [vmem:[#allocation10 + $0xa0] sm:$0xff]
    %v2410 = vld [vmem:[#allocation10 + $0xa8] sm:$0xff]
    %v2411 = vld [vmem:[#allocation10 + $0xb0] sm:$0xff]
    %v2412 = vld [vmem:[#allocation10 + $0xb8] sm:$0xff]
    %v2413 = vld [vmem:[#allocation10 + $0xc0] sm:$0xff]
    %v2414 = vld [vmem:[#allocation10 + $0xc8] sm:$0xff]
    %v2415 = vld [vmem:[#allocation10 + $0xd0] sm:$0xff]
    %v2416 = vld [vmem:[#allocation10 + $0xd8] sm:$0xff]
    %v2417 = vld [vmem:[#allocation10 + $0xe0] sm:$0xff]
    %v2418 = vld [vmem:[#allocation10 + $0xe8] sm:$0xff]
    %v2419 = vld [vmem:[#allocation10 + $0xf0] sm:$0xff]
    %v2420 = vld [vmem:[#allocation10 + $0xf8] sm:$0xff]
    %v2421 = vld [vmem:[#allocation10 + $0x100] sm:$0xff]
    %v2422 = vld [vmem:[#allocation10 + $0x108] sm:$0xff]
    %v2423 = vld [vmem:[#allocation10 + $0x110] sm:$0xff]
    %v2424 = vld [vmem:[#allocation10 + $0x118] sm:$0xff]
    %v2425 = vld [vmem:[#allocation10 + $0x120] sm:$0xff]
    %v2426 = vld [vmem:[#allocation10 + $0x128] sm:$0xff]
    %v2427 = vld [vmem:[#allocation10 + $0x130] sm:$0xff]
    %v2428 = vld [vmem:[#allocation10 + $0x138] sm:$0xff]
    %v2429 = vld [vmem:[#allocation10 + $0x140] sm:$0xff]
    %v2430 = vld [vmem:[#allocation10 + $0x148] sm:$0xff]
    %v2431 = vld [vmem:[#allocation10 + $0x150] sm:$0xff]
    %v2432 = vld [vmem:[#allocation10 + $0x158] sm:$0xff]
    %v2433 = vld [vmem:[#allocation10 + $0x160] sm:$0xff]
    %v2434 = vld [vmem:[#allocation10 + $0x168] sm:$0xff]
    %v2435 = vld [vmem:[#allocation10 + $0x170] sm:$0xff]
    %v2436 = vld [vmem:[#allocation10 + $0x178] sm:$0xff]
    %v2437 = vld [vmem:[#allocation10 + $0x180] sm:$0xff]
    %v2438 = vld [vmem:[#allocation10 + $0x188] sm:$0xff]
    %v2439 = vld [vmem:[#allocation10 + $0x190] sm:$0xff]
    %v2440 = vld [vmem:[#allocation10 + $0x198] sm:$0xff]
    %v2441 = vld [vmem:[#allocation10 + $0x1a0] sm:$0xff]
    %v2442 = vld [vmem:[#allocation10 + $0x1a8] sm:$0xff]
    %v2443 = vld [vmem:[#allocation10 + $0x1b0] sm:$0xff]
    %v2444 = vld [vmem:[#allocation10 + $0x1b8] sm:$0xff]
    %v2445 = vld [vmem:[#allocation10 + $0x1c0] sm:$0xff]
    %v2446 = vld [vmem:[#allocation10 + $0x1c8] sm:$0xff]
    %v2447 = vld [vmem:[#allocation10 + $0x1d0] sm:$0xff]
    %v2448 = vld [vmem:[#allocation10 + $0x1d8] sm:$0xff]
    %v2449 = vld [vmem:[#allocation10 + $0x1e0] sm:$0xff]
    %v2450 = vld [vmem:[#allocation10 + $0x1e8] sm:$0xff]
    %v2451 = vld [vmem:[#allocation10 + $0x1f0] sm:$0xff]
    %v2452 = vld [vmem:[#allocation10 + $0x1f8] sm:$0xff]
    %v2453 = vld [vmem:[#allocation10 + $0x200] sm:$0xff]
    %v2454 = vld [vmem:[#allocation10 + $0x208] sm:$0xff]
    %v2455 = vld [vmem:[#allocation10 + $0x210] sm:$0xff]
    %v2456 = vld [vmem:[#allocation10 + $0x218] sm:$0xff]
    %v2457 = vld [vmem:[#allocation10 + $0x220] sm:$0xff]
    %v2458 = vld [vmem:[#allocation10 + $0x228] sm:$0xff]
    %v2459 = vld [vmem:[#allocation10 + $0x230] sm:$0xff]
    %v2460 = vld [vmem:[#allocation10 + $0x238] sm:$0xff]
    %v2461 = vld [vmem:[#allocation10 + $0x240] sm:$0xff]
    %v2462 = vld [vmem:[#allocation10 + $0x248] sm:$0xff]
    %v2463 = vld [vmem:[#allocation10 + $0x250] sm:$0xff]
    %v2464 = vld [vmem:[#allocation10 + $0x258] sm:$0xff]
    %v2465 = vld [vmem:[#allocation10 + $0x260] sm:$0xff]
    %v2466 = vld [vmem:[#allocation10 + $0x268] sm:$0xff]
    %v2467 = vld [vmem:[#allocation10 + $0x270] sm:$0xff]
    %v2468 = vld [vmem:[#allocation10 + $0x278] sm:$0xff]
    %v2469 = vld [vmem:[#allocation10 + $0x280] sm:$0xff]
    %v2470 = vld [vmem:[#allocation10 + $0x288] sm:$0xff]
    %v2471 = vld [vmem:[#allocation10 + $0x290] sm:$0xff]
    %v2472 = vld [vmem:[#allocation10 + $0x298] sm:$0xff]
    %v2473 = vld [vmem:[#allocation10 + $0x2a0] sm:$0xff]
    %v2474 = vld [vmem:[#allocation10 + $0x2a8] sm:$0xff]
    %v2475 = vld [vmem:[#allocation10 + $0x2b0] sm:$0xff]
    %v2476 = vld [vmem:[#allocation10 + $0x2b8] sm:$0xff]
    %v2477 = vld [vmem:[#allocation10 + $0x2c0] sm:$0xff]
    %v2478 = vld [vmem:[#allocation10 + $0x2c8] sm:$0xff]
    %v2479 = vld [vmem:[#allocation10 + $0x2d0] sm:$0xff]
    %v2480 = vld [vmem:[#allocation10 + $0x2d8] sm:$0xff]
    %v2481 = vld [vmem:[#allocation10 + $0x2e0] sm:$0xff]
    %v2482 = vld [vmem:[#allocation10 + $0x2e8] sm:$0xff]
    %v2483 = vld [vmem:[#allocation10 + $0x2f0] sm:$0xff]
    %v2484 = vld [vmem:[#allocation10 + $0x2f8] sm:$0xff]
    %v2485 = vld [vmem:[#allocation10 + $0x300] sm:$0xff]
    %v2486 = vld [vmem:[#allocation10 + $0x308] sm:$0xff]
    %v2487 = vld [vmem:[#allocation10 + $0x310] sm:$0xff]
    %v2488 = vld [vmem:[#allocation10 + $0x318] sm:$0xff]
    %v2489 = vld [vmem:[#allocation10 + $0x320] sm:$0xff]
    %v2490 = vld [vmem:[#allocation10 + $0x328] sm:$0xff]
    %v2491 = vld [vmem:[#allocation10 + $0x330] sm:$0xff]
    %v2492 = vld [vmem:[#allocation10 + $0x338] sm:$0xff]
    %v2493 = vld [vmem:[#allocation10 + $0x340] sm:$0xff]
    %v2494 = vld [vmem:[#allocation10 + $0x348] sm:$0xff]
    %v2495 = vld [vmem:[#allocation10 + $0x350] sm:$0xff]
    %v2496 = vld [vmem:[#allocation10 + $0x358] sm:$0xff]
    %v2497 = vld [vmem:[#allocation10 + $0x360] sm:$0xff]
    %v2498 = vld [vmem:[#allocation10 + $0x368] sm:$0xff]
    %v2499 = vld [vmem:[#allocation10 + $0x370] sm:$0xff]
    %v2500 = vld [vmem:[#allocation10 + $0x378] sm:$0xff]
    %v2501 = vld [vmem:[#allocation10 + $0x380] sm:$0xff]
    %v2502 = vld [vmem:[#allocation10 + $0x388] sm:$0xff]
    %v2503 = vld [vmem:[#allocation10 + $0x390] sm:$0xff]
    %v2504 = vld [vmem:[#allocation10 + $0x398] sm:$0xff]
    %v2505 = vld [vmem:[#allocation10 + $0x3a0] sm:$0xff]
    %v2506 = vld [vmem:[#allocation10 + $0x3a8] sm:$0xff]
    %v2507 = vld [vmem:[#allocation10 + $0x3b0] sm:$0xff]
    %v2508 = vld [vmem:[#allocation10 + $0x3b8] sm:$0xff]
    %v2509 = vld [vmem:[#allocation10 + $0x3c0] sm:$0xff]
    %v2510 = vld [vmem:[#allocation10 + $0x3c8] sm:$0xff]
    %v2511 = vld [vmem:[#allocation10 + $0x3d0] sm:$0xff]
    %v2512 = vld [vmem:[#allocation10 + $0x3d8] sm:$0xff]
    %v2513 = vld [vmem:[#allocation10 + $0x3e0] sm:$0xff]
    %v2514 = vld [vmem:[#allocation10 + $0x3e8] sm:$0xff]
    %v2515 = vld [vmem:[#allocation10 + $0x3f0] sm:$0xff]
    %v2516 = vld [vmem:[#allocation10 + $0x3f8] sm:$0xff]
    %v2517 = vld [vmem:[#allocation10 + $0x400] sm:$0xff]
    %v2518 = vld [vmem:[#allocation10 + $0x408] sm:$0xff]
    %v2519 = vld [vmem:[#allocation10 + $0x410] sm:$0xff]
    %v2520 = vld [vmem:[#allocation10 + $0x418] sm:$0xff]
    %v2521 = vld [vmem:[#allocation10 + $0x420] sm:$0xff]
    %v2522 = vld [vmem:[#allocation10 + $0x428] sm:$0xff]
    %v2523 = vld [vmem:[#allocation10 + $0x430] sm:$0xff]
    %v2524 = vld [vmem:[#allocation10 + $0x438] sm:$0xff]
    %v2525 = vld [vmem:[#allocation10 + $0x440] sm:$0xff]
    %v2526 = vld [vmem:[#allocation10 + $0x448] sm:$0xff]
    %v2527 = vld [vmem:[#allocation10 + $0x450] sm:$0xff]
    %v2528 = vld [vmem:[#allocation10 + $0x458] sm:$0xff]
    %v2529 = vld [vmem:[#allocation10 + $0x460] sm:$0xff]
    %v2530 = vld [vmem:[#allocation10 + $0x468] sm:$0xff]
    %v2531 = vld [vmem:[#allocation10 + $0x470] sm:$0xff]
    %v2532 = vld [vmem:[#allocation10 + $0x478] sm:$0xff]
    %v2533 = vld [vmem:[#allocation10 + $0x480] sm:$0xff]
    %v2534 = vld [vmem:[#allocation10 + $0x488] sm:$0xff]
    %v2535 = vld [vmem:[#allocation10 + $0x490] sm:$0xff]
    %v2536 = vld [vmem:[#allocation10 + $0x498] sm:$0xff]
    %v2537 = vld [vmem:[#allocation10 + $0x4a0] sm:$0xff]
    %v2538 = vld [vmem:[#allocation10 + $0x4a8] sm:$0xff]
    %v2539 = vld [vmem:[#allocation10 + $0x4b0] sm:$0xff]
    %v2540 = vld [vmem:[#allocation10 + $0x4b8] sm:$0xff]
    %v2541 = vld [vmem:[#allocation10 + $0x4c0] sm:$0xff]
    %v2542 = vld [vmem:[#allocation10 + $0x4c8] sm:$0xff]
    %v2543 = vld [vmem:[#allocation10 + $0x4d0] sm:$0xff]
    %v2544 = vld [vmem:[#allocation10 + $0x4d8] sm:$0xff]
    %v2545 = vld [vmem:[#allocation10 + $0x4e0] sm:$0xff]
    %v2546 = vld [vmem:[#allocation10 + $0x4e8] sm:$0xff]
    %v2547 = vld [vmem:[#allocation10 + $0x4f0] sm:$0xff]
    %v2548 = vld [vmem:[#allocation10 + $0x4f8] sm:$0xff]
    %v2549 = vld [vmem:[#allocation10 + $0x500] sm:$0xff]
    %v2550 = vld [vmem:[#allocation10 + $0x508] sm:$0xff]
    %v2551 = vld [vmem:[#allocation10 + $0x510] sm:$0xff]
    %v2552 = vld [vmem:[#allocation10 + $0x518] sm:$0xff]
    %v2553 = vld [vmem:[#allocation10 + $0x520] sm:$0xff]
    %v2554 = vld [vmem:[#allocation10 + $0x528] sm:$0xff]
    %v2555 = vld [vmem:[#allocation10 + $0x530] sm:$0xff]
    %v2556 = vld [vmem:[#allocation10 + $0x538] sm:$0xff]
    %v2557 = vld [vmem:[#allocation10 + $0x540] sm:$0xff]
    %v2558 = vld [vmem:[#allocation10 + $0x548] sm:$0xff]
    %v2559 = vld [vmem:[#allocation10 + $0x550] sm:$0xff]
    %v2560 = vld [vmem:[#allocation10 + $0x558] sm:$0xff]
    %v2561 = vld [vmem:[#allocation10 + $0x560] sm:$0xff]
    %v2562 = vld [vmem:[#allocation10 + $0x568] sm:$0xff]
    %v2563 = vld [vmem:[#allocation10 + $0x570] sm:$0xff]
    %v2564 = vld [vmem:[#allocation10 + $0x578] sm:$0xff]
    %v2565 = vld [vmem:[#allocation10 + $0x580] sm:$0xff]
    %v2566 = vld [vmem:[#allocation10 + $0x588] sm:$0xff]
    %v2567 = vld [vmem:[#allocation10 + $0x590] sm:$0xff]
    %v2568 = vld [vmem:[#allocation10 + $0x598] sm:$0xff]
    %v2569 = vld [vmem:[#allocation10 + $0x5a0] sm:$0xff]
    %v2570 = vld [vmem:[#allocation10 + $0x5a8] sm:$0xff]
    %v2571 = vld [vmem:[#allocation10 + $0x5b0] sm:$0xff]
    %v2572 = vld [vmem:[#allocation10 + $0x5b8] sm:$0xff]
    %v2573 = vld [vmem:[#allocation10 + $0x5c0] sm:$0xff]
    %v2574 = vld [vmem:[#allocation10 + $0x5c8] sm:$0xff]
    %v2575 = vld [vmem:[#allocation10 + $0x5d0] sm:$0xff]
    %v2576 = vld [vmem:[#allocation10 + $0x5d8] sm:$0xff]
    %v2577 = vld [vmem:[#allocation10 + $0x5e0] sm:$0xff]
    %v2578 = vld [vmem:[#allocation10 + $0x5e8] sm:$0xff]
    %v2579 = vld [vmem:[#allocation10 + $0x5f0] sm:$0xff]
    %v2580 = vld [vmem:[#allocation10 + $0x5f8] sm:$0xff]
    %v2581 = vld [vmem:[#allocation10 + $0x600] sm:$0xff]
    %v2582 = vld [vmem:[#allocation10 + $0x608] sm:$0xff]
    %v2583 = vld [vmem:[#allocation10 + $0x610] sm:$0xff]
    %v2584 = vld [vmem:[#allocation10 + $0x618] sm:$0xff]
    %v2585 = vld [vmem:[#allocation10 + $0x620] sm:$0xff]
    %v2586 = vld [vmem:[#allocation10 + $0x628] sm:$0xff]
    %v2587 = vld [vmem:[#allocation10 + $0x630] sm:$0xff]
    %v2588 = vld [vmem:[#allocation10 + $0x638] sm:$0xff]
    %v2589 = vld [vmem:[#allocation10 + $0x640] sm:$0xff]
    %v2590 = vld [vmem:[#allocation10 + $0x648] sm:$0xff]
    %v2591 = vld [vmem:[#allocation10 + $0x650] sm:$0xff]
    %v2592 = vld [vmem:[#allocation10 + $0x658] sm:$0xff]
    %v2593 = vld [vmem:[#allocation10 + $0x660] sm:$0xff]
    %v2594 = vld [vmem:[#allocation10 + $0x668] sm:$0xff]
    %v2595 = vld [vmem:[#allocation10 + $0x670] sm:$0xff]
    %v2596 = vld [vmem:[#allocation10 + $0x678] sm:$0xff]
    %v2597 = vld [vmem:[#allocation10 + $0x680] sm:$0xff]
    %v2598 = vld [vmem:[#allocation10 + $0x688] sm:$0xff]
    %v2599 = vld [vmem:[#allocation10 + $0x690] sm:$0xff]
    %v2600 = vld [vmem:[#allocation10 + $0x698] sm:$0xff]
    %v2601 = vld [vmem:[#allocation10 + $0x6a0] sm:$0xff]
    %v2602 = vld [vmem:[#allocation10 + $0x6a8] sm:$0xff]
    %v2603 = vld [vmem:[#allocation10 + $0x6b0] sm:$0xff]
    %v2604 = vld [vmem:[#allocation10 + $0x6b8] sm:$0xff]
    %v2605 = vld [vmem:[#allocation10 + $0x6c0] sm:$0xff]
    %v2606 = vld [vmem:[#allocation10 + $0x6c8] sm:$0xff]
    %v2607 = vld [vmem:[#allocation10 + $0x6d0] sm:$0xff]
    %v2608 = vld [vmem:[#allocation10 + $0x6d8] sm:$0xff]
    %v2609 = vld [vmem:[#allocation10 + $0x6e0] sm:$0xff]
    %v2610 = vld [vmem:[#allocation10 + $0x6e8] sm:$0xff]
    %v2611 = vld [vmem:[#allocation10 + $0x6f0] sm:$0xff]
    %v2612 = vld [vmem:[#allocation10 + $0x6f8] sm:$0xff]
    %v2613 = vld [vmem:[#allocation10 + $0x700] sm:$0xff]
    %v2614 = vld [vmem:[#allocation10 + $0x708] sm:$0xff]
    %v2615 = vld [vmem:[#allocation10 + $0x710] sm:$0xff]
    %v2616 = vld [vmem:[#allocation10 + $0x718] sm:$0xff]
    %v2617 = vld [vmem:[#allocation10 + $0x720] sm:$0xff]
    %v2618 = vld [vmem:[#allocation10 + $0x728] sm:$0xff]
    %v2619 = vld [vmem:[#allocation10 + $0x730] sm:$0xff]
    %v2620 = vld [vmem:[#allocation10 + $0x738] sm:$0xff]
    %v2621 = vld [vmem:[#allocation10 + $0x740] sm:$0xff]
    %v2622 = vld [vmem:[#allocation10 + $0x748] sm:$0xff]
    %v2623 = vld [vmem:[#allocation10 + $0x750] sm:$0xff]
    %v2624 = vld [vmem:[#allocation10 + $0x758] sm:$0xff]
    %v2625 = vld [vmem:[#allocation10 + $0x760] sm:$0xff]
    %v2626 = vld [vmem:[#allocation10 + $0x768] sm:$0xff]
    %v2627 = vld [vmem:[#allocation10 + $0x770] sm:$0xff]
    %v2628 = vld [vmem:[#allocation10 + $0x778] sm:$0xff]
    %v2629 = vld [vmem:[#allocation10 + $0x780] sm:$0xff]
    %v2630 = vld [vmem:[#allocation10 + $0x788] sm:$0xff]
    %v2631 = vld [vmem:[#allocation10 + $0x790] sm:$0xff]
    %v2632 = vld [vmem:[#allocation10 + $0x798] sm:$0xff]
    %v2633 = vld [vmem:[#allocation10 + $0x7a0] sm:$0xff]
    %v2634 = vld [vmem:[#allocation10 + $0x7a8] sm:$0xff]
    %v2635 = vld [vmem:[#allocation10 + $0x7b0] sm:$0xff]
    %v2636 = vld [vmem:[#allocation10 + $0x7b8] sm:$0xff]
    %v2637 = vld [vmem:[#allocation10 + $0x7c0] sm:$0xff]
    %v2638 = vld [vmem:[#allocation10 + $0x7c8] sm:$0xff]
    %v2639 = vld [vmem:[#allocation10 + $0x7d0] sm:$0xff]
    %v2640 = vld [vmem:[#allocation10 + $0x7d8] sm:$0xff]
    %v2641 = vld [vmem:[#allocation10 + $0x7e0] sm:$0xff]
    %v2642 = vld [vmem:[#allocation10 + $0x7e8] sm:$0xff]
    %v2643 = vld [vmem:[#allocation10 + $0x7f0] sm:$0xff]
    %v2644 = vld [vmem:[#allocation10 + $0x7f8] sm:$0xff]
    %v2645 = vld [vmem:[#allocation10 + $0x800] sm:$0xff]
    %v2646 = vld [vmem:[#allocation10 + $0x808] sm:$0xff]
    %v2647 = vld [vmem:[#allocation10 + $0x810] sm:$0xff]
    %v2648 = vld [vmem:[#allocation10 + $0x818] sm:$0xff]
    %v2649 = vld [vmem:[#allocation10 + $0x820] sm:$0xff]
    %v2650 = vld [vmem:[#allocation10 + $0x828] sm:$0xff]
    %v2651 = vld [vmem:[#allocation10 + $0x830] sm:$0xff]
    %v2652 = vld [vmem:[#allocation10 + $0x838] sm:$0xff]
    %v2653 = vld [vmem:[#allocation10 + $0x840] sm:$0xff]
    %v2654 = vld [vmem:[#allocation10 + $0x848] sm:$0xff]
    %v2655 = vld [vmem:[#allocation10 + $0x850] sm:$0xff]
    %v2656 = vld [vmem:[#allocation10 + $0x858] sm:$0xff]
    %v2657 = vld [vmem:[#allocation10 + $0x860] sm:$0xff]
    %v2658 = vld [vmem:[#allocation10 + $0x868] sm:$0xff]
    %v2659 = vld [vmem:[#allocation10 + $0x870] sm:$0xff]
    %v2660 = vld [vmem:[#allocation10 + $0x878] sm:$0xff]
    %v2661 = vld [vmem:[#allocation10 + $0x880] sm:$0xff]
    %v2662 = vld [vmem:[#allocation10 + $0x888] sm:$0xff]
    %v2663 = vld [vmem:[#allocation10 + $0x890] sm:$0xff]
    %v2664 = vld [vmem:[#allocation10 + $0x898] sm:$0xff]
    %v2665 = vld [vmem:[#allocation10 + $0x8a0] sm:$0xff]
    %v2666 = vld [vmem:[#allocation10 + $0x8a8] sm:$0xff]
    %v2667 = vld [vmem:[#allocation10 + $0x8b0] sm:$0xff]
    %v2668 = vld [vmem:[#allocation10 + $0x8b8] sm:$0xff]
    %v2669 = vld [vmem:[#allocation10 + $0x8c0] sm:$0xff]
    %v2670 = vld [vmem:[#allocation10 + $0x8c8] sm:$0xff]
    %v2671 = vld [vmem:[#allocation10 + $0x8d0] sm:$0xff]
    %v2672 = vld [vmem:[#allocation10 + $0x8d8] sm:$0xff]
    %v2673 = vld [vmem:[#allocation10 + $0x8e0] sm:$0xff]
    %v2674 = vld [vmem:[#allocation10 + $0x8e8] sm:$0xff]
    %v2675 = vld [vmem:[#allocation10 + $0x8f0] sm:$0xff]
    %v2676 = vld [vmem:[#allocation10 + $0x8f8] sm:$0xff]
    %v2677 = vld [vmem:[#allocation11] sm:$0x3f]
    %v2679 = vperm.slane %v2677, 0
    %v2680 = vperm.slane %v2677, 1
    %v2681 = vperm.slane %v2677, 2
    %v2682 = vperm.slane %v2677, 3
    %v2683 = vperm.slane %v2677, 4
    %v2684 = vperm.slane %v2677, 5
    %v2979 = vunpack.c.l.b16 %v2389
    %v2980 = vunpack.c.h.b16 %v2389
    %v2981 = vunpack.c.l.b16 %v2390
    %v2982 = vunpack.c.h.b16 %v2390
    %v2983 = vunpack.c.l.b16 %v2391
    %v2984 = vunpack.c.h.b16 %v2391
    %v2985 = vunpack.c.l.b16 %v2392
    %v2986 = vunpack.c.h.b16 %v2392
    %v2987 = vunpack.c.l.b16 %v2393
    %v2988 = vunpack.c.h.b16 %v2393
    %v2989 = vunpack.c.l.b16 %v2394
    %v2990 = vunpack.c.h.b16 %v2394
    %v2991 = vunpack.c.l.b16 %v2395
    %v2992 = vunpack.c.h.b16 %v2395
    %v2993 = vunpack.c.l.b16 %v2396
    %v2994 = vunpack.c.h.b16 %v2396
    %v2995 = vunpack.c.l.b16 %v2397
    %v2996 = vunpack.c.h.b16 %v2397
    %v2997 = vunpack.c.l.b16 %v2398
    %v2998 = vunpack.c.h.b16 %v2398
    %v2999 = vunpack.c.l.b16 %v2399
    %v3000 = vunpack.c.h.b16 %v2399
    %v3001 = vunpack.c.l.b16 %v2400
    %v3002 = vunpack.c.h.b16 %v2400
    %v3003 = vunpack.c.l.b16 %v2401
    %v3004 = vunpack.c.h.b16 %v2401
    %v3005 = vunpack.c.l.b16 %v2402
    %v3006 = vunpack.c.h.b16 %v2402
    %v3007 = vunpack.c.l.b16 %v2403
    %v3008 = vunpack.c.h.b16 %v2403
    %v3009 = vunpack.c.l.b16 %v2404
    %v3010 = vunpack.c.h.b16 %v2404
    %v3011 = vunpack.c.l.b16 %v2405
    %v3012 = vunpack.c.h.b16 %v2405
    %v3013 = vunpack.c.l.b16 %v2406
    %v3014 = vunpack.c.h.b16 %v2406
    %v3015 = vunpack.c.l.b16 %v2407
    %v3016 = vunpack.c.h.b16 %v2407
    %v3017 = vunpack.c.l.b16 %v2408
    %v3018 = vunpack.c.h.b16 %v2408
    %v3019 = vunpack.c.l.b16 %v2409
    %v3020 = vunpack.c.h.b16 %v2409
    %v3021 = vunpack.c.l.b16 %v2410
    %v3022 = vunpack.c.h.b16 %v2410
    %v3023 = vunpack.c.l.b16 %v2411
    %v3024 = vunpack.c.h.b16 %v2411
    %v3025 = vunpack.c.l.b16 %v2412
    %v3026 = vunpack.c.h.b16 %v2412
    %v3027 = vunpack.c.l.b16 %v2413
    %v3028 = vunpack.c.h.b16 %v2413
    %v3029 = vunpack.c.l.b16 %v2414
    %v3030 = vunpack.c.h.b16 %v2414
    %v3031 = vunpack.c.l.b16 %v2415
    %v3032 = vunpack.c.h.b16 %v2415
    %v3033 = vunpack.c.l.b16 %v2416
    %v3034 = vunpack.c.h.b16 %v2416
    %v3035 = vunpack.c.l.b16 %v2417
    %v3036 = vunpack.c.h.b16 %v2417
    %v3037 = vunpack.c.l.b16 %v2418
    %v3038 = vunpack.c.h.b16 %v2418
    %v3039 = vunpack.c.l.b16 %v2419
    %v3040 = vunpack.c.h.b16 %v2419
    %v3041 = vunpack.c.l.b16 %v2420
    %v3042 = vunpack.c.h.b16 %v2420
    %v3043 = vunpack.c.l.b16 %v2421
    %v3044 = vunpack.c.h.b16 %v2421
    %v3045 = vunpack.c.l.b16 %v2422
    %v3046 = vunpack.c.h.b16 %v2422
    %v3047 = vunpack.c.l.b16 %v2423
    %v3048 = vunpack.c.h.b16 %v2423
    %v3049 = vunpack.c.l.b16 %v2424
    %v3050 = vunpack.c.h.b16 %v2424
    %v3051 = vunpack.c.l.b16 %v2425
    %v3052 = vunpack.c.h.b16 %v2425
    %v3053 = vunpack.c.l.b16 %v2426
    %v3054 = vunpack.c.h.b16 %v2426
    %v3055 = vunpack.c.l.b16 %v2427
    %v3056 = vunpack.c.h.b16 %v2427
    %v3057 = vunpack.c.l.b16 %v2428
    %v3058 = vunpack.c.h.b16 %v2428
    %v3059 = vunpack.c.l.b16 %v2429
    %v3060 = vunpack.c.h.b16 %v2429
    %v3061 = vunpack.c.l.b16 %v2430
    %v3062 = vunpack.c.h.b16 %v2430
    %v3063 = vunpack.c.l.b16 %v2431
    %v3064 = vunpack.c.h.b16 %v2431
    %v3065 = vunpack.c.l.b16 %v2432
    %v3066 = vunpack.c.h.b16 %v2432
    %v3067 = vunpack.c.l.b16 %v2433
    %v3068 = vunpack.c.h.b16 %v2433
    %v3069 = vunpack.c.l.b16 %v2434
    %v3070 = vunpack.c.h.b16 %v2434
    %v3071 = vunpack.c.l.b16 %v2435
    %v3072 = vunpack.c.h.b16 %v2435
    %v3073 = vunpack.c.l.b16 %v2436
    %v3074 = vunpack.c.h.b16 %v2436
    %v3075 = vunpack.c.l.b16 %v2437
    %v3076 = vunpack.c.h.b16 %v2437
    %v3077 = vunpack.c.l.b16 %v2438
    %v3078 = vunpack.c.h.b16 %v2438
    %v3079 = vunpack.c.l.b16 %v2439
    %v3080 = vunpack.c.h.b16 %v2439
    %v3081 = vunpack.c.l.b16 %v2440
    %v3082 = vunpack.c.h.b16 %v2440
    %v3083 = vunpack.c.l.b16 %v2441
    %v3084 = vunpack.c.h.b16 %v2441
    %v3085 = vunpack.c.l.b16 %v2442
    %v3086 = vunpack.c.h.b16 %v2442
    %v3087 = vunpack.c.l.b16 %v2443
    %v3088 = vunpack.c.h.b16 %v2443
    %v3089 = vunpack.c.l.b16 %v2444
    %v3090 = vunpack.c.h.b16 %v2444
    %v3091 = vunpack.c.l.b16 %v2445
    %v3092 = vunpack.c.h.b16 %v2445
    %v3093 = vunpack.c.l.b16 %v2446
    %v3094 = vunpack.c.h.b16 %v2446
    %v3095 = vunpack.c.l.b16 %v2447
    %v3096 = vunpack.c.h.b16 %v2447
    %v3097 = vunpack.c.l.b16 %v2448
    %v3098 = vunpack.c.h.b16 %v2448
    %v3099 = vunpack.c.l.b16 %v2449
    %v3100 = vunpack.c.h.b16 %v2449
    %v3101 = vunpack.c.l.b16 %v2450
    %v3102 = vunpack.c.h.b16 %v2450
    %v3103 = vunpack.c.l.b16 %v2451
    %v3104 = vunpack.c.h.b16 %v2451
    %v3105 = vunpack.c.l.b16 %v2452
    %v3106 = vunpack.c.h.b16 %v2452
    %v3107 = vunpack.c.l.b16 %v2453
    %v3108 = vunpack.c.h.b16 %v2453
    %v3109 = vunpack.c.l.b16 %v2454
    %v3110 = vunpack.c.h.b16 %v2454
    %v3111 = vunpack.c.l.b16 %v2455
    %v3112 = vunpack.c.h.b16 %v2455
    %v3113 = vunpack.c.l.b16 %v2456
    %v3114 = vunpack.c.h.b16 %v2456
    %v3115 = vunpack.c.l.b16 %v2457
    %v3116 = vunpack.c.h.b16 %v2457
    %v3117 = vunpack.c.l.b16 %v2458
    %v3118 = vunpack.c.h.b16 %v2458
    %v3119 = vunpack.c.l.b16 %v2459
    %v3120 = vunpack.c.h.b16 %v2459
    %v3121 = vunpack.c.l.b16 %v2460
    %v3122 = vunpack.c.h.b16 %v2460
    %v3123 = vunpack.c.l.b16 %v2461
    %v3124 = vunpack.c.h.b16 %v2461
    %v3125 = vunpack.c.l.b16 %v2462
    %v3126 = vunpack.c.h.b16 %v2462
    %v3127 = vunpack.c.l.b16 %v2463
    %v3128 = vunpack.c.h.b16 %v2463
    %v3129 = vunpack.c.l.b16 %v2464
    %v3130 = vunpack.c.h.b16 %v2464
    %v3131 = vunpack.c.l.b16 %v2465
    %v3132 = vunpack.c.h.b16 %v2465
    %v3133 = vunpack.c.l.b16 %v2466
    %v3134 = vunpack.c.h.b16 %v2466
    %v3135 = vunpack.c.l.b16 %v2467
    %v3136 = vunpack.c.h.b16 %v2467
    %v3137 = vunpack.c.l.b16 %v2468
    %v3138 = vunpack.c.h.b16 %v2468
    %v3139 = vunpack.c.l.b16 %v2469
    %v3140 = vunpack.c.h.b16 %v2469
    %v3141 = vunpack.c.l.b16 %v2470
    %v3142 = vunpack.c.h.b16 %v2470
    %v3143 = vunpack.c.l.b16 %v2471
    %v3144 = vunpack.c.h.b16 %v2471
    %v3145 = vunpack.c.l.b16 %v2472
    %v3146 = vunpack.c.h.b16 %v2472
    %v3147 = vunpack.c.l.b16 %v2473
    %v3148 = vunpack.c.h.b16 %v2473
    %v3149 = vunpack.c.l.b16 %v2474
    %v3150 = vunpack.c.h.b16 %v2474
    %v3151 = vunpack.c.l.b16 %v2475
    %v3152 = vunpack.c.h.b16 %v2475
    %v3153 = vunpack.c.l.b16 %v2476
    %v3154 = vunpack.c.h.b16 %v2476
    %v3155 = vunpack.c.l.b16 %v2477
    %v3156 = vunpack.c.h.b16 %v2477
    %v3157 = vunpack.c.l.b16 %v2478
    %v3158 = vunpack.c.h.b16 %v2478
    %v3159 = vunpack.c.l.b16 %v2479
    %v3160 = vunpack.c.h.b16 %v2479
    %v3161 = vunpack.c.l.b16 %v2480
    %v3162 = vunpack.c.h.b16 %v2480
    %v3163 = vunpack.c.l.b16 %v2481
    %v3164 = vunpack.c.h.b16 %v2481
    %v3165 = vunpack.c.l.b16 %v2482
    %v3166 = vunpack.c.h.b16 %v2482
    %v3167 = vunpack.c.l.b16 %v2483
    %v3168 = vunpack.c.h.b16 %v2483
    %v3169 = vunpack.c.l.b16 %v2484
    %v3170 = vunpack.c.h.b16 %v2484
    %v3171 = vunpack.c.l.b16 %v2485
    %v3172 = vunpack.c.h.b16 %v2485
    %v3173 = vunpack.c.l.b16 %v2486
    %v3174 = vunpack.c.h.b16 %v2486
    %v3175 = vunpack.c.l.b16 %v2487
    %v3176 = vunpack.c.h.b16 %v2487
    %v3177 = vunpack.c.l.b16 %v2488
    %v3178 = vunpack.c.h.b16 %v2488
    %v3179 = vunpack.c.l.b16 %v2489
    %v3180 = vunpack.c.h.b16 %v2489
    %v3181 = vunpack.c.l.b16 %v2490
    %v3182 = vunpack.c.h.b16 %v2490
    %v3183 = vunpack.c.l.b16 %v2491
    %v3184 = vunpack.c.h.b16 %v2491
    %v3185 = vunpack.c.l.b16 %v2492
    %v3186 = vunpack.c.h.b16 %v2492
    %v3187 = vunpack.c.l.b16 %v2493
    %v3188 = vunpack.c.h.b16 %v2493
    %v3189 = vunpack.c.l.b16 %v2494
    %v3190 = vunpack.c.h.b16 %v2494
    %v3191 = vunpack.c.l.b16 %v2495
    %v3192 = vunpack.c.h.b16 %v2495
    %v3193 = vunpack.c.l.b16 %v2496
    %v3194 = vunpack.c.h.b16 %v2496
    %v3195 = vunpack.c.l.b16 %v2497
    %v3196 = vunpack.c.h.b16 %v2497
    %v3197 = vunpack.c.l.b16 %v2498
    %v3198 = vunpack.c.h.b16 %v2498
    %v3199 = vunpack.c.l.b16 %v2499
    %v3200 = vunpack.c.h.b16 %v2499
    %v3201 = vunpack.c.l.b16 %v2500
    %v3202 = vunpack.c.h.b16 %v2500
    %v3203 = vunpack.c.l.b16 %v2501
    %v3204 = vunpack.c.h.b16 %v2501
    %v3205 = vunpack.c.l.b16 %v2502
    %v3206 = vunpack.c.h.b16 %v2502
    %v3207 = vunpack.c.l.b16 %v2503
    %v3208 = vunpack.c.h.b16 %v2503
    %v3209 = vunpack.c.l.b16 %v2504
    %v3210 = vunpack.c.h.b16 %v2504
    %v3211 = vunpack.c.l.b16 %v2505
    %v3212 = vunpack.c.h.b16 %v2505
    %v3213 = vunpack.c.l.b16 %v2506
    %v3214 = vunpack.c.h.b16 %v2506
    %v3215 = vunpack.c.l.b16 %v2507
    %v3216 = vunpack.c.h.b16 %v2507
    %v3217 = vunpack.c.l.b16 %v2508
    %v3218 = vunpack.c.h.b16 %v2508
    %v3219 = vunpack.c.l.b16 %v2509
    %v3220 = vunpack.c.h.b16 %v2509
    %v3221 = vunpack.c.l.b16 %v2510
    %v3222 = vunpack.c.h.b16 %v2510
    %v3223 = vunpack.c.l.b16 %v2511
    %v3224 = vunpack.c.h.b16 %v2511
    %v3225 = vunpack.c.l.b16 %v2512
    %v3226 = vunpack.c.h.b16 %v2512
    %v3227 = vunpack.c.l.b16 %v2513
    %v3228 = vunpack.c.h.b16 %v2513
    %v3229 = vunpack.c.l.b16 %v2514
    %v3230 = vunpack.c.h.b16 %v2514
    %v3231 = vunpack.c.l.b16 %v2515
    %v3232 = vunpack.c.h.b16 %v2515
    %v3233 = vunpack.c.l.b16 %v2516
    %v3234 = vunpack.c.h.b16 %v2516
    %v3235 = vunpack.c.l.b16 %v2517
    %v3236 = vunpack.c.h.b16 %v2517
    %v3237 = vunpack.c.l.b16 %v2518
    %v3238 = vunpack.c.h.b16 %v2518
    %v3239 = vunpack.c.l.b16 %v2519
    %v3240 = vunpack.c.h.b16 %v2519
    %v3241 = vunpack.c.l.b16 %v2520
    %v3242 = vunpack.c.h.b16 %v2520
    %v3243 = vunpack.c.l.b16 %v2521
    %v3244 = vunpack.c.h.b16 %v2521
    %v3245 = vunpack.c.l.b16 %v2522
    %v3246 = vunpack.c.h.b16 %v2522
    %v3247 = vunpack.c.l.b16 %v2523
    %v3248 = vunpack.c.h.b16 %v2523
    %v3249 = vunpack.c.l.b16 %v2524
    %v3250 = vunpack.c.h.b16 %v2524
    %v3251 = vunpack.c.l.b16 %v2525
    %v3252 = vunpack.c.h.b16 %v2525
    %v3253 = vunpack.c.l.b16 %v2526
    %v3254 = vunpack.c.h.b16 %v2526
    %v3255 = vunpack.c.l.b16 %v2527
    %v3256 = vunpack.c.h.b16 %v2527
    %v3257 = vunpack.c.l.b16 %v2528
    %v3258 = vunpack.c.h.b16 %v2528
    %v3259 = vunpack.c.l.b16 %v2529
    %v3260 = vunpack.c.h.b16 %v2529
    %v3261 = vunpack.c.l.b16 %v2530
    %v3262 = vunpack.c.h.b16 %v2530
    %v3263 = vunpack.c.l.b16 %v2531
    %v3264 = vunpack.c.h.b16 %v2531
    %v3265 = vunpack.c.l.b16 %v2532
    %v3266 = vunpack.c.h.b16 %v2532
    %v3267 = vunpack.c.l.b16 %v2533
    %v3268 = vunpack.c.h.b16 %v2533
    %v3269 = vunpack.c.l.b16 %v2534
    %v3270 = vunpack.c.h.b16 %v2534
    %v3271 = vunpack.c.l.b16 %v2535
    %v3272 = vunpack.c.h.b16 %v2535
    %v3273 = vunpack.c.l.b16 %v2536
    %v3274 = vunpack.c.h.b16 %v2536
    %v3275 = vunpack.c.l.b16 %v2537
    %v3276 = vunpack.c.h.b16 %v2537
    %v3277 = vunpack.c.l.b16 %v2538
    %v3278 = vunpack.c.h.b16 %v2538
    %v3279 = vunpack.c.l.b16 %v2539
    %v3280 = vunpack.c.h.b16 %v2539
    %v3281 = vunpack.c.l.b16 %v2540
    %v3282 = vunpack.c.h.b16 %v2540
    %v3283 = vunpack.c.l.b16 %v2541
    %v3284 = vunpack.c.h.b16 %v2541
    %v3285 = vunpack.c.l.b16 %v2542
    %v3286 = vunpack.c.h.b16 %v2542
    %v3287 = vunpack.c.l.b16 %v2543
    %v3288 = vunpack.c.h.b16 %v2543
    %v3289 = vunpack.c.l.b16 %v2544
    %v3290 = vunpack.c.h.b16 %v2544
    %v3291 = vunpack.c.l.b16 %v2545
    %v3292 = vunpack.c.h.b16 %v2545
    %v3293 = vunpack.c.l.b16 %v2546
    %v3294 = vunpack.c.h.b16 %v2546
    %v3295 = vunpack.c.l.b16 %v2547
    %v3296 = vunpack.c.h.b16 %v2547
    %v3297 = vunpack.c.l.b16 %v2548
    %v3298 = vunpack.c.h.b16 %v2548
    %v3299 = vunpack.c.l.b16 %v2549
    %v3300 = vunpack.c.h.b16 %v2549
    %v3301 = vunpack.c.l.b16 %v2550
    %v3302 = vunpack.c.h.b16 %v2550
    %v3303 = vunpack.c.l.b16 %v2551
    %v3304 = vunpack.c.h.b16 %v2551
    %v3305 = vunpack.c.l.b16 %v2552
    %v3306 = vunpack.c.h.b16 %v2552
    %v3307 = vunpack.c.l.b16 %v2553
    %v3308 = vunpack.c.h.b16 %v2553
    %v3309 = vunpack.c.l.b16 %v2554
    %v3310 = vunpack.c.h.b16 %v2554
    %v3311 = vunpack.c.l.b16 %v2555
    %v3312 = vunpack.c.h.b16 %v2555
    %v3313 = vunpack.c.l.b16 %v2556
    %v3314 = vunpack.c.h.b16 %v2556
    %v3315 = vunpack.c.l.b16 %v2557
    %v3316 = vunpack.c.h.b16 %v2557
    %v3317 = vunpack.c.l.b16 %v2558
    %v3318 = vunpack.c.h.b16 %v2558
    %v3319 = vunpack.c.l.b16 %v2559
    %v3320 = vunpack.c.h.b16 %v2559
    %v3321 = vunpack.c.l.b16 %v2560
    %v3322 = vunpack.c.h.b16 %v2560
    %v3323 = vunpack.c.l.b16 %v2561
    %v3324 = vunpack.c.h.b16 %v2561
    %v3325 = vunpack.c.l.b16 %v2562
    %v3326 = vunpack.c.h.b16 %v2562
    %v3327 = vunpack.c.l.b16 %v2563
    %v3328 = vunpack.c.h.b16 %v2563
    %v3329 = vunpack.c.l.b16 %v2564
    %v3330 = vunpack.c.h.b16 %v2564
    %v3331 = vunpack.c.l.b16 %v2565
    %v3332 = vunpack.c.h.b16 %v2565
    %v3333 = vunpack.c.l.b16 %v2566
    %v3334 = vunpack.c.h.b16 %v2566
    %v3335 = vunpack.c.l.b16 %v2567
    %v3336 = vunpack.c.h.b16 %v2567
    %v3337 = vunpack.c.l.b16 %v2568
    %v3338 = vunpack.c.h.b16 %v2568
    %v3339 = vunpack.c.l.b16 %v2569
    %v3340 = vunpack.c.h.b16 %v2569
    %v3341 = vunpack.c.l.b16 %v2570
    %v3342 = vunpack.c.h.b16 %v2570
    %v3343 = vunpack.c.l.b16 %v2571
    %v3344 = vunpack.c.h.b16 %v2571
    %v3345 = vunpack.c.l.b16 %v2572
    %v3346 = vunpack.c.h.b16 %v2572
    %v3347 = vunpack.c.l.b16 %v2573
    %v3348 = vunpack.c.h.b16 %v2573
    %v3349 = vunpack.c.l.b16 %v2574
    %v3350 = vunpack.c.h.b16 %v2574
    %v3351 = vunpack.c.l.b16 %v2575
    %v3352 = vunpack.c.h.b16 %v2575
    %v3353 = vunpack.c.l.b16 %v2576
    %v3354 = vunpack.c.h.b16 %v2576
    %v3355 = vunpack.c.l.b16 %v2577
    %v3356 = vunpack.c.h.b16 %v2577
    %v3357 = vunpack.c.l.b16 %v2578
    %v3358 = vunpack.c.h.b16 %v2578
    %v3359 = vunpack.c.l.b16 %v2579
    %v3360 = vunpack.c.h.b16 %v2579
    %v3361 = vunpack.c.l.b16 %v2580
    %v3362 = vunpack.c.h.b16 %v2580
    %v3363 = vunpack.c.l.b16 %v2581
    %v3364 = vunpack.c.h.b16 %v2581
    %v3365 = vunpack.c.l.b16 %v2582
    %v3366 = vunpack.c.h.b16 %v2582
    %v3367 = vunpack.c.l.b16 %v2583
    %v3368 = vunpack.c.h.b16 %v2583
    %v3369 = vunpack.c.l.b16 %v2584
    %v3370 = vunpack.c.h.b16 %v2584
    %v3371 = vunpack.c.l.b16 %v2585
    %v3372 = vunpack.c.h.b16 %v2585
    %v3373 = vunpack.c.l.b16 %v2586
    %v3374 = vunpack.c.h.b16 %v2586
    %v3375 = vunpack.c.l.b16 %v2587
    %v3376 = vunpack.c.h.b16 %v2587
    %v3377 = vunpack.c.l.b16 %v2588
    %v3378 = vunpack.c.h.b16 %v2588
    %v3379 = vunpack.c.l.b16 %v2589
    %v3380 = vunpack.c.h.b16 %v2589
    %v3381 = vunpack.c.l.b16 %v2590
    %v3382 = vunpack.c.h.b16 %v2590
    %v3383 = vunpack.c.l.b16 %v2591
    %v3384 = vunpack.c.h.b16 %v2591
    %v3385 = vunpack.c.l.b16 %v2592
    %v3386 = vunpack.c.h.b16 %v2592
    %v3387 = vunpack.c.l.b16 %v2593
    %v3388 = vunpack.c.h.b16 %v2593
    %v3389 = vunpack.c.l.b16 %v2594
    %v3390 = vunpack.c.h.b16 %v2594
    %v3391 = vunpack.c.l.b16 %v2595
    %v3392 = vunpack.c.h.b16 %v2595
    %v3393 = vunpack.c.l.b16 %v2596
    %v3394 = vunpack.c.h.b16 %v2596
    %v3395 = vunpack.c.l.b16 %v2597
    %v3396 = vunpack.c.h.b16 %v2597
    %v3397 = vunpack.c.l.b16 %v2598
    %v3398 = vunpack.c.h.b16 %v2598
    %v3399 = vunpack.c.l.b16 %v2599
    %v3400 = vunpack.c.h.b16 %v2599
    %v3401 = vunpack.c.l.b16 %v2600
    %v3402 = vunpack.c.h.b16 %v2600
    %v3403 = vunpack.c.l.b16 %v2601
    %v3404 = vunpack.c.h.b16 %v2601
    %v3405 = vunpack.c.l.b16 %v2602
    %v3406 = vunpack.c.h.b16 %v2602
    %v3407 = vunpack.c.l.b16 %v2603
    %v3408 = vunpack.c.h.b16 %v2603
    %v3409 = vunpack.c.l.b16 %v2604
    %v3410 = vunpack.c.h.b16 %v2604
    %v3411 = vunpack.c.l.b16 %v2605
    %v3412 = vunpack.c.h.b16 %v2605
    %v3413 = vunpack.c.l.b16 %v2606
    %v3414 = vunpack.c.h.b16 %v2606
    %v3415 = vunpack.c.l.b16 %v2607
    %v3416 = vunpack.c.h.b16 %v2607
    %v3417 = vunpack.c.l.b16 %v2608
    %v3418 = vunpack.c.h.b16 %v2608
    %v3419 = vunpack.c.l.b16 %v2609
    %v3420 = vunpack.c.h.b16 %v2609
    %v3421 = vunpack.c.l.b16 %v2610
    %v3422 = vunpack.c.h.b16 %v2610
    %v3423 = vunpack.c.l.b16 %v2611
    %v3424 = vunpack.c.h.b16 %v2611
    %v3425 = vunpack.c.l.b16 %v2612
    %v3426 = vunpack.c.h.b16 %v2612
    %v3427 = vunpack.c.l.b16 %v2613
    %v3428 = vunpack.c.h.b16 %v2613
    %v3429 = vunpack.c.l.b16 %v2614
    %v3430 = vunpack.c.h.b16 %v2614
    %v3431 = vunpack.c.l.b16 %v2615
    %v3432 = vunpack.c.h.b16 %v2615
    %v3433 = vunpack.c.l.b16 %v2616
    %v3434 = vunpack.c.h.b16 %v2616
    %v3435 = vunpack.c.l.b16 %v2617
    %v3436 = vunpack.c.h.b16 %v2617
    %v3437 = vunpack.c.l.b16 %v2618
    %v3438 = vunpack.c.h.b16 %v2618
    %v3439 = vunpack.c.l.b16 %v2619
    %v3440 = vunpack.c.h.b16 %v2619
    %v3441 = vunpack.c.l.b16 %v2620
    %v3442 = vunpack.c.h.b16 %v2620
    %v3443 = vunpack.c.l.b16 %v2621
    %v3444 = vunpack.c.h.b16 %v2621
    %v3445 = vunpack.c.l.b16 %v2622
    %v3446 = vunpack.c.h.b16 %v2622
    %v3447 = vunpack.c.l.b16 %v2623
    %v3448 = vunpack.c.h.b16 %v2623
    %v3449 = vunpack.c.l.b16 %v2624
    %v3450 = vunpack.c.h.b16 %v2624
    %v3451 = vunpack.c.l.b16 %v2625
    %v3452 = vunpack.c.h.b16 %v2625
    %v3453 = vunpack.c.l.b16 %v2626
    %v3454 = vunpack.c.h.b16 %v2626
    %v3455 = vunpack.c.l.b16 %v2627
    %v3456 = vunpack.c.h.b16 %v2627
    %v3457 = vunpack.c.l.b16 %v2628
    %v3458 = vunpack.c.h.b16 %v2628
    %v3459 = vunpack.c.l.b16 %v2629
    %v3460 = vunpack.c.h.b16 %v2629
    %v3461 = vunpack.c.l.b16 %v2630
    %v3462 = vunpack.c.h.b16 %v2630
    %v3463 = vunpack.c.l.b16 %v2631
    %v3464 = vunpack.c.h.b16 %v2631
    %v3465 = vunpack.c.l.b16 %v2632
    %v3466 = vunpack.c.h.b16 %v2632
    %v3467 = vunpack.c.l.b16 %v2633
    %v3468 = vunpack.c.h.b16 %v2633
    %v3469 = vunpack.c.l.b16 %v2634
    %v3470 = vunpack.c.h.b16 %v2634
    %v3471 = vunpack.c.l.b16 %v2635
    %v3472 = vunpack.c.h.b16 %v2635
    %v3473 = vunpack.c.l.b16 %v2636
    %v3474 = vunpack.c.h.b16 %v2636
    %v3475 = vunpack.c.l.b16 %v2637
    %v3476 = vunpack.c.h.b16 %v2637
    %v3477 = vunpack.c.l.b16 %v2638
    %v3478 = vunpack.c.h.b16 %v2638
    %v3479 = vunpack.c.l.b16 %v2639
    %v3480 = vunpack.c.h.b16 %v2639
    %v3481 = vunpack.c.l.b16 %v2640
    %v3482 = vunpack.c.h.b16 %v2640
    %v3483 = vunpack.c.l.b16 %v2641
    %v3484 = vunpack.c.h.b16 %v2641
    %v3485 = vunpack.c.l.b16 %v2642
    %v3486 = vunpack.c.h.b16 %v2642
    %v3487 = vunpack.c.l.b16 %v2643
    %v3488 = vunpack.c.h.b16 %v2643
    %v3489 = vunpack.c.l.b16 %v2644
    %v3490 = vunpack.c.h.b16 %v2644
    %v3491 = vunpack.c.l.b16 %v2645
    %v3492 = vunpack.c.h.b16 %v2645
    %v3493 = vunpack.c.l.b16 %v2646
    %v3494 = vunpack.c.h.b16 %v2646
    %v3495 = vunpack.c.l.b16 %v2647
    %v3496 = vunpack.c.h.b16 %v2647
    %v3497 = vunpack.c.l.b16 %v2648
    %v3498 = vunpack.c.h.b16 %v2648
    %v3499 = vunpack.c.l.b16 %v2649
    %v3500 = vunpack.c.h.b16 %v2649
    %v3501 = vunpack.c.l.b16 %v2650
    %v3502 = vunpack.c.h.b16 %v2650
    %v3503 = vunpack.c.l.b16 %v2651
    %v3504 = vunpack.c.h.b16 %v2651
    %v3505 = vunpack.c.l.b16 %v2652
    %v3506 = vunpack.c.h.b16 %v2652
    %v3507 = vunpack.c.l.b16 %v2653
    %v3508 = vunpack.c.h.b16 %v2653
    %v3509 = vunpack.c.l.b16 %v2654
    %v3510 = vunpack.c.h.b16 %v2654
    %v3511 = vunpack.c.l.b16 %v2655
    %v3512 = vunpack.c.h.b16 %v2655
    %v3513 = vunpack.c.l.b16 %v2656
    %v3514 = vunpack.c.h.b16 %v2656
    %v3515 = vunpack.c.l.b16 %v2657
    %v3516 = vunpack.c.h.b16 %v2657
    %v3517 = vunpack.c.l.b16 %v2658
    %v3518 = vunpack.c.h.b16 %v2658
    %v3519 = vunpack.c.l.b16 %v2659
    %v3520 = vunpack.c.h.b16 %v2659
    %v3521 = vunpack.c.l.b16 %v2660
    %v3522 = vunpack.c.h.b16 %v2660
    %v3523 = vunpack.c.l.b16 %v2661
    %v3524 = vunpack.c.h.b16 %v2661
    %v3525 = vunpack.c.l.b16 %v2662
    %v3526 = vunpack.c.h.b16 %v2662
    %v3527 = vunpack.c.l.b16 %v2663
    %v3528 = vunpack.c.h.b16 %v2663
    %v3529 = vunpack.c.l.b16 %v2664
    %v3530 = vunpack.c.h.b16 %v2664
    %v3531 = vunpack.c.l.b16 %v2665
    %v3532 = vunpack.c.h.b16 %v2665
    %v3533 = vunpack.c.l.b16 %v2666
    %v3534 = vunpack.c.h.b16 %v2666
    %v3535 = vunpack.c.l.b16 %v2667
    %v3536 = vunpack.c.h.b16 %v2667
    %v3537 = vunpack.c.l.b16 %v2668
    %v3538 = vunpack.c.h.b16 %v2668
    %v3539 = vunpack.c.l.b16 %v2669
    %v3540 = vunpack.c.h.b16 %v2669
    %v3541 = vunpack.c.l.b16 %v2670
    %v3542 = vunpack.c.h.b16 %v2670
    %v3543 = vunpack.c.l.b16 %v2671
    %v3544 = vunpack.c.h.b16 %v2671
    %v3545 = vunpack.c.l.b16 %v2672
    %v3546 = vunpack.c.h.b16 %v2672
    %v3547 = vunpack.c.l.b16 %v2673
    %v3548 = vunpack.c.h.b16 %v2673
    %v3549 = vunpack.c.l.b16 %v2674
    %v3550 = vunpack.c.h.b16 %v2674
    %v3551 = vunpack.c.l.b16 %v2675
    %v3552 = vunpack.c.h.b16 %v2675
    %v3553 = vunpack.c.l.b16 %v2676
    %v3554 = vunpack.c.h.b16 %v2676
    %v3555 = vpack.c.b16 %v2985, %v2979
    %v3556 = vpack.c.b16 %v2986, %v2980
    %v3557 = vpack.c.b16 %v2987, %v2981
    %v3558 = vpack.c.b16 %v2988, %v2982
    %v3559 = vpack.c.b16 %v2989, %v2983
    %v3560 = vpack.c.b16 %v2990, %v2984
    %v3561 = vpack.c.b16 %v2997, %v2991
    %v3562 = vpack.c.b16 %v2998, %v2992
    %v3563 = vpack.c.b16 %v2999, %v2993
    %v3564 = vpack.c.b16 %v3000, %v2994
    %v3565 = vpack.c.b16 %v3001, %v2995
    %v3566 = vpack.c.b16 %v3002, %v2996
    %v3567 = vpack.c.b16 %v3009, %v3003
    %v3568 = vpack.c.b16 %v3010, %v3004
    %v3569 = vpack.c.b16 %v3011, %v3005
    %v3570 = vpack.c.b16 %v3012, %v3006
    %v3571 = vpack.c.b16 %v3013, %v3007
    %v3572 = vpack.c.b16 %v3014, %v3008
    %v3573 = vpack.c.b16 %v3021, %v3015
    %v3574 = vpack.c.b16 %v3022, %v3016
    %v3575 = vpack.c.b16 %v3023, %v3017
    %v3576 = vpack.c.b16 %v3024, %v3018
    %v3577 = vpack.c.b16 %v3025, %v3019
    %v3578 = vpack.c.b16 %v3026, %v3020
    %v3579 = vpack.c.b16 %v3033, %v3027
    %v3580 = vpack.c.b16 %v3034, %v3028
    %v3581 = vpack.c.b16 %v3035, %v3029
    %v3582 = vpack.c.b16 %v3036, %v3030
    %v3583 = vpack.c.b16 %v3037, %v3031
    %v3584 = vpack.c.b16 %v3038, %v3032
    %v3585 = vpack.c.b16 %v3045, %v3039
    %v3586 = vpack.c.b16 %v3046, %v3040
    %v3587 = vpack.c.b16 %v3047, %v3041
    %v3588 = vpack.c.b16 %v3048, %v3042
    %v3589 = vpack.c.b16 %v3049, %v3043
    %v3590 = vpack.c.b16 %v3050, %v3044
    %v3591 = vpack.c.b16 %v3057, %v3051
    %v3592 = vpack.c.b16 %v3058, %v3052
    %v3593 = vpack.c.b16 %v3059, %v3053
    %v3594 = vpack.c.b16 %v3060, %v3054
    %v3595 = vpack.c.b16 %v3061, %v3055
    %v3596 = vpack.c.b16 %v3062, %v3056
    %v3597 = vpack.c.b16 %v3069, %v3063
    %v3598 = vpack.c.b16 %v3070, %v3064
    %v3599 = vpack.c.b16 %v3071, %v3065
    %v3600 = vpack.c.b16 %v3072, %v3066
    %v3601 = vpack.c.b16 %v3073, %v3067
    %v3602 = vpack.c.b16 %v3074, %v3068
    %v3603 = vpack.c.b16 %v3081, %v3075
    %v3604 = vpack.c.b16 %v3082, %v3076
    %v3605 = vpack.c.b16 %v3083, %v3077
    %v3606 = vpack.c.b16 %v3084, %v3078
    %v3607 = vpack.c.b16 %v3085, %v3079
    %v3608 = vpack.c.b16 %v3086, %v3080
    %v3609 = vpack.c.b16 %v3093, %v3087
    %v3610 = vpack.c.b16 %v3094, %v3088
    %v3611 = vpack.c.b16 %v3095, %v3089
    %v3612 = vpack.c.b16 %v3096, %v3090
    %v3613 = vpack.c.b16 %v3097, %v3091
    %v3614 = vpack.c.b16 %v3098, %v3092
    %v3615 = vpack.c.b16 %v3105, %v3099
    %v3616 = vpack.c.b16 %v3106, %v3100
    %v3617 = vpack.c.b16 %v3107, %v3101
    %v3618 = vpack.c.b16 %v3108, %v3102
    %v3619 = vpack.c.b16 %v3109, %v3103
    %v3620 = vpack.c.b16 %v3110, %v3104
    %v3621 = vpack.c.b16 %v3117, %v3111
    %v3622 = vpack.c.b16 %v3118, %v3112
    %v3623 = vpack.c.b16 %v3119, %v3113
    %v3624 = vpack.c.b16 %v3120, %v3114
    %v3625 = vpack.c.b16 %v3121, %v3115
    %v3626 = vpack.c.b16 %v3122, %v3116
    %v3627 = vpack.c.b16 %v3129, %v3123
    %v3628 = vpack.c.b16 %v3130, %v3124
    %v3629 = vpack.c.b16 %v3131, %v3125
    %v3630 = vpack.c.b16 %v3132, %v3126
    %v3631 = vpack.c.b16 %v3133, %v3127
    %v3632 = vpack.c.b16 %v3134, %v3128
    %v3633 = vpack.c.b16 %v3141, %v3135
    %v3634 = vpack.c.b16 %v3142, %v3136
    %v3635 = vpack.c.b16 %v3143, %v3137
    %v3636 = vpack.c.b16 %v3144, %v3138
    %v3637 = vpack.c.b16 %v3145, %v3139
    %v3638 = vpack.c.b16 %v3146, %v3140
    %v3639 = vpack.c.b16 %v3153, %v3147
    %v3640 = vpack.c.b16 %v3154, %v3148
    %v3641 = vpack.c.b16 %v3155, %v3149
    %v3642 = vpack.c.b16 %v3156, %v3150
    %v3643 = vpack.c.b16 %v3157, %v3151
    %v3644 = vpack.c.b16 %v3158, %v3152
    %v3645 = vpack.c.b16 %v3165, %v3159
    %v3646 = vpack.c.b16 %v3166, %v3160
    %v3647 = vpack.c.b16 %v3167, %v3161
    %v3648 = vpack.c.b16 %v3168, %v3162
    %v3649 = vpack.c.b16 %v3169, %v3163
    %v3650 = vpack.c.b16 %v3170, %v3164
    %v3651 = vpack.c.b16 %v3177, %v3171
    %v3652 = vpack.c.b16 %v3178, %v3172
    %v3653 = vpack.c.b16 %v3179, %v3173
    %v3654 = vpack.c.b16 %v3180, %v3174
    %v3655 = vpack.c.b16 %v3181, %v3175
    %v3656 = vpack.c.b16 %v3182, %v3176
    %v3657 = vpack.c.b16 %v3189, %v3183
    %v3658 = vpack.c.b16 %v3190, %v3184
    %v3659 = vpack.c.b16 %v3191, %v3185
    %v3660 = vpack.c.b16 %v3192, %v3186
    %v3661 = vpack.c.b16 %v3193, %v3187
    %v3662 = vpack.c.b16 %v3194, %v3188
    %v3663 = vpack.c.b16 %v3201, %v3195
    %v3664 = vpack.c.b16 %v3202, %v3196
    %v3665 = vpack.c.b16 %v3203, %v3197
    %v3666 = vpack.c.b16 %v3204, %v3198
    %v3667 = vpack.c.b16 %v3205, %v3199
    %v3668 = vpack.c.b16 %v3206, %v3200
    %v3669 = vpack.c.b16 %v3213, %v3207
    %v3670 = vpack.c.b16 %v3214, %v3208
    %v3671 = vpack.c.b16 %v3215, %v3209
    %v3672 = vpack.c.b16 %v3216, %v3210
    %v3673 = vpack.c.b16 %v3217, %v3211
    %v3674 = vpack.c.b16 %v3218, %v3212
    %v3675 = vpack.c.b16 %v3225, %v3219
    %v3676 = vpack.c.b16 %v3226, %v3220
    %v3677 = vpack.c.b16 %v3227, %v3221
    %v3678 = vpack.c.b16 %v3228, %v3222
    %v3679 = vpack.c.b16 %v3229, %v3223
    %v3680 = vpack.c.b16 %v3230, %v3224
    %v3681 = vpack.c.b16 %v3237, %v3231
    %v3682 = vpack.c.b16 %v3238, %v3232
    %v3683 = vpack.c.b16 %v3239, %v3233
    %v3684 = vpack.c.b16 %v3240, %v3234
    %v3685 = vpack.c.b16 %v3241, %v3235
    %v3686 = vpack.c.b16 %v3242, %v3236
    %v3687 = vpack.c.b16 %v3249, %v3243
    %v3688 = vpack.c.b16 %v3250, %v3244
    %v3689 = vpack.c.b16 %v3251, %v3245
    %v3690 = vpack.c.b16 %v3252, %v3246
    %v3691 = vpack.c.b16 %v3253, %v3247
    %v3692 = vpack.c.b16 %v3254, %v3248
    %v3693 = vpack.c.b16 %v3261, %v3255
    %v3694 = vpack.c.b16 %v3262, %v3256
    %v3695 = vpack.c.b16 %v3263, %v3257
    %v3696 = vpack.c.b16 %v3264, %v3258
    %v3697 = vpack.c.b16 %v3265, %v3259
    %v3698 = vpack.c.b16 %v3266, %v3260
    %v3699 = vpack.c.b16 %v3273, %v3267
    %v3700 = vpack.c.b16 %v3274, %v3268
    %v3701 = vpack.c.b16 %v3275, %v3269
    %v3702 = vpack.c.b16 %v3276, %v3270
    %v3703 = vpack.c.b16 %v3277, %v3271
    %v3704 = vpack.c.b16 %v3278, %v3272
    %v3705 = vpack.c.b16 %v3285, %v3279
    %v3706 = vpack.c.b16 %v3286, %v3280
    %v3707 = vpack.c.b16 %v3287, %v3281
    %v3708 = vpack.c.b16 %v3288, %v3282
    %v3709 = vpack.c.b16 %v3289, %v3283
    %v3710 = vpack.c.b16 %v3290, %v3284
    %v3711 = vpack.c.b16 %v3297, %v3291
    %v3712 = vpack.c.b16 %v3298, %v3292
    %v3713 = vpack.c.b16 %v3299, %v3293
    %v3714 = vpack.c.b16 %v3300, %v3294
    %v3715 = vpack.c.b16 %v3301, %v3295
    %v3716 = vpack.c.b16 %v3302, %v3296
    %v3717 = vpack.c.b16 %v3309, %v3303
    %v3718 = vpack.c.b16 %v3310, %v3304
    %v3719 = vpack.c.b16 %v3311, %v3305
    %v3720 = vpack.c.b16 %v3312, %v3306
    %v3721 = vpack.c.b16 %v3313, %v3307
    %v3722 = vpack.c.b16 %v3314, %v3308
    %v3723 = vpack.c.b16 %v3321, %v3315
    %v3724 = vpack.c.b16 %v3322, %v3316
    %v3725 = vpack.c.b16 %v3323, %v3317
    %v3726 = vpack.c.b16 %v3324, %v3318
    %v3727 = vpack.c.b16 %v3325, %v3319
    %v3728 = vpack.c.b16 %v3326, %v3320
    %v3729 = vpack.c.b16 %v3333, %v3327
    %v3730 = vpack.c.b16 %v3334, %v3328
    %v3731 = vpack.c.b16 %v3335, %v3329
    %v3732 = vpack.c.b16 %v3336, %v3330
    %v3733 = vpack.c.b16 %v3337, %v3331
    %v3734 = vpack.c.b16 %v3338, %v3332
    %v3735 = vpack.c.b16 %v3345, %v3339
    %v3736 = vpack.c.b16 %v3346, %v3340
    %v3737 = vpack.c.b16 %v3347, %v3341
    %v3738 = vpack.c.b16 %v3348, %v3342
    %v3739 = vpack.c.b16 %v3349, %v3343
    %v3740 = vpack.c.b16 %v3350, %v3344
    %v3741 = vpack.c.b16 %v3357, %v3351
    %v3742 = vpack.c.b16 %v3358, %v3352
    %v3743 = vpack.c.b16 %v3359, %v3353
    %v3744 = vpack.c.b16 %v3360, %v3354
    %v3745 = vpack.c.b16 %v3361, %v3355
    %v3746 = vpack.c.b16 %v3362, %v3356
    %v3747 = vpack.c.b16 %v3369, %v3363
    %v3748 = vpack.c.b16 %v3370, %v3364
    %v3749 = vpack.c.b16 %v3371, %v3365
    %v3750 = vpack.c.b16 %v3372, %v3366
    %v3751 = vpack.c.b16 %v3373, %v3367
    %v3752 = vpack.c.b16 %v3374, %v3368
    %v3753 = vpack.c.b16 %v3381, %v3375
    %v3754 = vpack.c.b16 %v3382, %v3376
    %v3755 = vpack.c.b16 %v3383, %v3377
    %v3756 = vpack.c.b16 %v3384, %v3378
    %v3757 = vpack.c.b16 %v3385, %v3379
    %v3758 = vpack.c.b16 %v3386, %v3380
    %v3759 = vpack.c.b16 %v3393, %v3387
    %v3760 = vpack.c.b16 %v3394, %v3388
    %v3761 = vpack.c.b16 %v3395, %v3389
    %v3762 = vpack.c.b16 %v3396, %v3390
    %v3763 = vpack.c.b16 %v3397, %v3391
    %v3764 = vpack.c.b16 %v3398, %v3392
    %v3765 = vpack.c.b16 %v3405, %v3399
    %v3766 = vpack.c.b16 %v3406, %v3400
    %v3767 = vpack.c.b16 %v3407, %v3401
    %v3768 = vpack.c.b16 %v3408, %v3402
    %v3769 = vpack.c.b16 %v3409, %v3403
    %v3770 = vpack.c.b16 %v3410, %v3404
    %v3771 = vpack.c.b16 %v3417, %v3411
    %v3772 = vpack.c.b16 %v3418, %v3412
    %v3773 = vpack.c.b16 %v3419, %v3413
    %v3774 = vpack.c.b16 %v3420, %v3414
    %v3775 = vpack.c.b16 %v3421, %v3415
    %v3776 = vpack.c.b16 %v3422, %v3416
    %v3777 = vpack.c.b16 %v3429, %v3423
    %v3778 = vpack.c.b16 %v3430, %v3424
    %v3779 = vpack.c.b16 %v3431, %v3425
    %v3780 = vpack.c.b16 %v3432, %v3426
    %v3781 = vpack.c.b16 %v3433, %v3427
    %v3782 = vpack.c.b16 %v3434, %v3428
    %v3783 = vpack.c.b16 %v3441, %v3435
    %v3784 = vpack.c.b16 %v3442, %v3436
    %v3785 = vpack.c.b16 %v3443, %v3437
    %v3786 = vpack.c.b16 %v3444, %v3438
    %v3787 = vpack.c.b16 %v3445, %v3439
    %v3788 = vpack.c.b16 %v3446, %v3440
    %v3789 = vpack.c.b16 %v3453, %v3447
    %v3790 = vpack.c.b16 %v3454, %v3448
    %v3791 = vpack.c.b16 %v3455, %v3449
    %v3792 = vpack.c.b16 %v3456, %v3450
    %v3793 = vpack.c.b16 %v3457, %v3451
    %v3794 = vpack.c.b16 %v3458, %v3452
    %v3795 = vpack.c.b16 %v3465, %v3459
    %v3796 = vpack.c.b16 %v3466, %v3460
    %v3797 = vpack.c.b16 %v3467, %v3461
    %v3798 = vpack.c.b16 %v3468, %v3462
    %v3799 = vpack.c.b16 %v3469, %v3463
    %v3800 = vpack.c.b16 %v3470, %v3464
    %v3801 = vpack.c.b16 %v3477, %v3471
    %v3802 = vpack.c.b16 %v3478, %v3472
    %v3803 = vpack.c.b16 %v3479, %v3473
    %v3804 = vpack.c.b16 %v3480, %v3474
    %v3805 = vpack.c.b16 %v3481, %v3475
    %v3806 = vpack.c.b16 %v3482, %v3476
    %v3807 = vpack.c.b16 %v3489, %v3483
    %v3808 = vpack.c.b16 %v3490, %v3484
    %v3809 = vpack.c.b16 %v3491, %v3485
    %v3810 = vpack.c.b16 %v3492, %v3486
    %v3811 = vpack.c.b16 %v3493, %v3487
    %v3812 = vpack.c.b16 %v3494, %v3488
    %v3813 = vpack.c.b16 %v3501, %v3495
    %v3814 = vpack.c.b16 %v3502, %v3496
    %v3815 = vpack.c.b16 %v3503, %v3497
    %v3816 = vpack.c.b16 %v3504, %v3498
    %v3817 = vpack.c.b16 %v3505, %v3499
    %v3818 = vpack.c.b16 %v3506, %v3500
    %v3819 = vpack.c.b16 %v3513, %v3507
    %v3820 = vpack.c.b16 %v3514, %v3508
    %v3821 = vpack.c.b16 %v3515, %v3509
    %v3822 = vpack.c.b16 %v3516, %v3510
    %v3823 = vpack.c.b16 %v3517, %v3511
    %v3824 = vpack.c.b16 %v3518, %v3512
    %v3825 = vpack.c.b16 %v3525, %v3519
    %v3826 = vpack.c.b16 %v3526, %v3520
    %v3827 = vpack.c.b16 %v3527, %v3521
    %v3828 = vpack.c.b16 %v3528, %v3522
    %v3829 = vpack.c.b16 %v3529, %v3523
    %v3830 = vpack.c.b16 %v3530, %v3524
    %v3831 = vpack.c.b16 %v3537, %v3531
    %v3832 = vpack.c.b16 %v3538, %v3532
    %v3833 = vpack.c.b16 %v3539, %v3533
    %v3834 = vpack.c.b16 %v3540, %v3534
    %v3835 = vpack.c.b16 %v3541, %v3535
    %v3836 = vpack.c.b16 %v3542, %v3536
    %v3837 = vpack.c.b16 %v3549, %v3543
    %v3838 = vpack.c.b16 %v3550, %v3544
    %v3839 = vpack.c.b16 %v3551, %v3545
    %v3840 = vpack.c.b16 %v3552, %v3546
    %v3841 = vpack.c.b16 %v3553, %v3547
    %v3842 = vpack.c.b16 %v3554, %v3548
    %4131 = vmatpush.bf16.msra.mxu0 %v3597
    %4132 = vmatpush.bf16.msra.mxu0 %v3591
    %4133 = vmatpush.bf16.msra.mxu0 %v3585
    %4134 = vmatpush.bf16.msra.mxu0 %v3579
    %4135 = vmatpush.bf16.msra.mxu0 %v3573
    %4136 = vmatpush.bf16.msra.mxu0 %v3567
    %4137 = vmatpush.bf16.msra.mxu0 %v3561
    %4138 = vmatpush.bf16.msra.mxu0 %v3555
    %4139 = vmatmul.bf16.gmra.mxu0 %v2383
    %v4140 = vpop.f32.mrf.mxu0
    %v4141 = vadd.f32 %v2679, %v4140
    %v4142 = vpop.f32.mrf.mxu0
    %4143 = vdwg.mxu0
    %4144 = vmatpush.bf16.msra.mxu0 %v3645
    %4145 = vmatpush.bf16.msra.mxu0 %v3639
    %4146 = vmatpush.bf16.msra.mxu0 %v3633
    %4147 = vmatpush.bf16.msra.mxu0 %v3627
    %4148 = vmatpush.bf16.msra.mxu0 %v3621
    %4149 = vmatpush.bf16.msra.mxu0 %v3615
    %4150 = vmatpush.bf16.msra.mxu0 %v3609
    %4151 = vmatpush.bf16.msra.mxu0 %v3603
    %4152 = vmatmul.bf16.gmra.mxu0 %v2384
    %v4153 = vpop.f32.mrf.mxu0
    %v4154 = vadd.f32 %v4141, %v4153
    %v4155 = vpop.f32.mrf.mxu0
    %4156 = vdwg.mxu0
    %4157 = vmatpush.bf16.msra.mxu0 %v3693
    %4158 = vmatpush.bf16.msra.mxu0 %v3687
    %4159 = vmatpush.bf16.msra.mxu0 %v3681
    %4160 = vmatpush.bf16.msra.mxu0 %v3675
    %4161 = vmatpush.bf16.msra.mxu0 %v3669
    %4162 = vmatpush.bf16.msra.mxu0 %v3663
    %4163 = vmatpush.bf16.msra.mxu0 %v3657
    %4164 = vmatpush.bf16.msra.mxu0 %v3651
    %4165 = vmatmul.bf16.gmra.mxu0 %v2385
    %v4166 = vpop.f32.mrf.mxu0
    %v4167 = vadd.f32 %v4154, %v4166
    %v4168 = vpop.f32.mrf.mxu0
    %4169 = vdwg.mxu0
    %4170 = vmatpush.bf16.msra.mxu0 %v3741
    %4171 = vmatpush.bf16.msra.mxu0 %v3735
    %4172 = vmatpush.bf16.msra.mxu0 %v3729
    %4173 = vmatpush.bf16.msra.mxu0 %v3723
    %4174 = vmatpush.bf16.msra.mxu0 %v3717
    %4175 = vmatpush.bf16.msra.mxu0 %v3711
    %4176 = vmatpush.bf16.msra.mxu0 %v3705
    %4177 = vmatpush.bf16.msra.mxu0 %v3699
    %4178 = vmatmul.bf16.gmra.mxu0 %v2386
    %v4179 = vpop.f32.mrf.mxu0
    %v4180 = vadd.f32 %v4167, %v4179
    %v4181 = vpop.f32.mrf.mxu0
    %4182 = vdwg.mxu0
    %4183 = vmatpush.bf16.msra.mxu0 %v3789
    %4184 = vmatpush.bf16.msra.mxu0 %v3783
    %4185 = vmatpush.bf16.msra.mxu0 %v3777
    %4186 = vmatpush.bf16.msra.mxu0 %v3771
    %4187 = vmatpush.bf16.msra.mxu0 %v3765
    %4188 = vmatpush.bf16.msra.mxu0 %v3759
    %4189 = vmatpush.bf16.msra.mxu0 %v3753
    %4190 = vmatpush.bf16.msra.mxu0 %v3747
    %4191 = vmatmul.bf16.gmra.mxu0 %v2387
    %v4192 = vpop.f32.mrf.mxu0
    %v4193 = vadd.f32 %v4180, %v4192
    %v4194 = vpop.f32.mrf.mxu0
    %4195 = vdwg.mxu0
    %4196 = vmatpush.bf16.msra.mxu0 %v3837
    %4197 = vmatpush.bf16.msra.mxu0 %v3831
    %4198 = vmatpush.bf16.msra.mxu0 %v3825
    %4199 = vmatpush.bf16.msra.mxu0 %v3819
    %4200 = vmatpush.bf16.msra.mxu0 %v3813
    %4201 = vmatpush.bf16.msra.mxu0 %v3807
    %4202 = vmatpush.bf16.msra.mxu0 %v3801
    %4203 = vmatpush.bf16.msra.mxu0 %v3795
    %4204 = vmatmul.bf16.gmra.mxu0 %v2388
    %v4205 = vpop.f32.mrf.mxu0
    %v4206 = vadd.f32 %v4193, %v4205
    %v4207 = vpop.f32.mrf.mxu0
    %4208 = vdwg.mxu0
    %4209 = vmatpush.bf16.msra.mxu0 %v3598
    %4210 = vmatpush.bf16.msra.mxu0 %v3592
    %4211 = vmatpush.bf16.msra.mxu0 %v3586
    %4212 = vmatpush.bf16.msra.mxu0 %v3580
    %4213 = vmatpush.bf16.msra.mxu0 %v3574
    %4214 = vmatpush.bf16.msra.mxu0 %v3568
    %4215 = vmatpush.bf16.msra.mxu0 %v3562
    %4216 = vmatpush.bf16.msra.mxu0 %v3556
    %4217 = vmatmul.bf16.gmra.mxu0 %v2383
    %v4218 = vpop.f32.mrf.mxu0
    %v4219 = vadd.f32 %v2680, %v4218
    %v4220 = vpop.f32.mrf.mxu0
    %4221 = vdwg.mxu0
    %4222 = vmatpush.bf16.msra.mxu0 %v3646
    %4223 = vmatpush.bf16.msra.mxu0 %v3640
    %4224 = vmatpush.bf16.msra.mxu0 %v3634
    %4225 = vmatpush.bf16.msra.mxu0 %v3628
    %4226 = vmatpush.bf16.msra.mxu0 %v3622
    %4227 = vmatpush.bf16.msra.mxu0 %v3616
    %4228 = vmatpush.bf16.msra.mxu0 %v3610
    %4229 = vmatpush.bf16.msra.mxu0 %v3604
    %4230 = vmatmul.bf16.gmra.mxu0 %v2384
    %v4231 = vpop.f32.mrf.mxu0
    %v4232 = vadd.f32 %v4219, %v4231
    %v4233 = vpop.f32.mrf.mxu0
    %4234 = vdwg.mxu0
    %4235 = vmatpush.bf16.msra.mxu0 %v3694
    %4236 = vmatpush.bf16.msra.mxu0 %v3688
    %4237 = vmatpush.bf16.msra.mxu0 %v3682
    %4238 = vmatpush.bf16.msra.mxu0 %v3676
    %4239 = vmatpush.bf16.msra.mxu0 %v3670
    %4240 = vmatpush.bf16.msra.mxu0 %v3664
    %4241 = vmatpush.bf16.msra.mxu0 %v3658
    %4242 = vmatpush.bf16.msra.mxu0 %v3652
    %4243 = vmatmul.bf16.gmra.mxu0 %v2385
    %v4244 = vpop.f32.mrf.mxu0
    %v4245 = vadd.f32 %v4232, %v4244
    %v4246 = vpop.f32.mrf.mxu0
    %4247 = vdwg.mxu0
    %4248 = vmatpush.bf16.msra.mxu0 %v3742
    %4249 = vmatpush.bf16.msra.mxu0 %v3736
    %4250 = vmatpush.bf16.msra.mxu0 %v3730
    %4251 = vmatpush.bf16.msra.mxu0 %v3724
    %4252 = vmatpush.bf16.msra.mxu0 %v3718
    %4253 = vmatpush.bf16.msra.mxu0 %v3712
    %4254 = vmatpush.bf16.msra.mxu0 %v3706
    %4255 = vmatpush.bf16.msra.mxu0 %v3700
    %4256 = vmatmul.bf16.gmra.mxu0 %v2386
    %v4257 = vpop.f32.mrf.mxu0
    %v4258 = vadd.f32 %v4245, %v4257
    %v4259 = vpop.f32.mrf.mxu0
    %4260 = vdwg.mxu0
    %4261 = vmatpush.bf16.msra.mxu0 %v3790
    %4262 = vmatpush.bf16.msra.mxu0 %v3784
    %4263 = vmatpush.bf16.msra.mxu0 %v3778
    %4264 = vmatpush.bf16.msra.mxu0 %v3772
    %4265 = vmatpush.bf16.msra.mxu0 %v3766
    %4266 = vmatpush.bf16.msra.mxu0 %v3760
    %4267 = vmatpush.bf16.msra.mxu0 %v3754
    %4268 = vmatpush.bf16.msra.mxu0 %v3748
    %4269 = vmatmul.bf16.gmra.mxu0 %v2387
    %v4270 = vpop.f32.mrf.mxu0
    %v4271 = vadd.f32 %v4258, %v4270
    %v4272 = vpop.f32.mrf.mxu0
    %4273 = vdwg.mxu0
    %4274 = vmatpush.bf16.msra.mxu0 %v3838
    %4275 = vmatpush.bf16.msra.mxu0 %v3832
    %4276 = vmatpush.bf16.msra.mxu0 %v3826
    %4277 = vmatpush.bf16.msra.mxu0 %v3820
    %4278 = vmatpush.bf16.msra.mxu0 %v3814
    %4279 = vmatpush.bf16.msra.mxu0 %v3808
    %4280 = vmatpush.bf16.msra.mxu0 %v3802
    %4281 = vmatpush.bf16.msra.mxu0 %v3796
    %4282 = vmatmul.bf16.gmra.mxu0 %v2388
    %v4283 = vpop.f32.mrf.mxu0
    %v4284 = vadd.f32 %v4271, %v4283
    %v4285 = vpop.f32.mrf.mxu0
    %4286 = vdwg.mxu0
    %4287 = vmatpush.bf16.msra.mxu0 %v3599
    %4288 = vmatpush.bf16.msra.mxu0 %v3593
    %4289 = vmatpush.bf16.msra.mxu0 %v3587
    %4290 = vmatpush.bf16.msra.mxu0 %v3581
    %4291 = vmatpush.bf16.msra.mxu0 %v3575
    %4292 = vmatpush.bf16.msra.mxu0 %v3569
    %4293 = vmatpush.bf16.msra.mxu0 %v3563
    %4294 = vmatpush.bf16.msra.mxu0 %v3557
    %4295 = vmatmul.bf16.gmra.mxu0 %v2383
    %v4296 = vpop.f32.mrf.mxu0
    %v4297 = vadd.f32 %v2681, %v4296
    %v4298 = vpop.f32.mrf.mxu0
    %4299 = vdwg.mxu0
    %4300 = vmatpush.bf16.msra.mxu0 %v3647
    %4301 = vmatpush.bf16.msra.mxu0 %v3641
    %4302 = vmatpush.bf16.msra.mxu0 %v3635
    %4303 = vmatpush.bf16.msra.mxu0 %v3629
    %4304 = vmatpush.bf16.msra.mxu0 %v3623
    %4305 = vmatpush.bf16.msra.mxu0 %v3617
    %4306 = vmatpush.bf16.msra.mxu0 %v3611
    %4307 = vmatpush.bf16.msra.mxu0 %v3605
    %4308 = vmatmul.bf16.gmra.mxu0 %v2384
    %v4309 = vpop.f32.mrf.mxu0
    %v4310 = vadd.f32 %v4297, %v4309
    %v4311 = vpop.f32.mrf.mxu0
    %4312 = vdwg.mxu0
    %4313 = vmatpush.bf16.msra.mxu0 %v3695
    %4314 = vmatpush.bf16.msra.mxu0 %v3689
    %4315 = vmatpush.bf16.msra.mxu0 %v3683
    %4316 = vmatpush.bf16.msra.mxu0 %v3677
    %4317 = vmatpush.bf16.msra.mxu0 %v3671
    %4318 = vmatpush.bf16.msra.mxu0 %v3665
    %4319 = vmatpush.bf16.msra.mxu0 %v3659
    %4320 = vmatpush.bf16.msra.mxu0 %v3653
    %4321 = vmatmul.bf16.gmra.mxu0 %v2385
    %v4322 = vpop.f32.mrf.mxu0
    %v4323 = vadd.f32 %v4310, %v4322
    %v4324 = vpop.f32.mrf.mxu0
    %4325 = vdwg.mxu0
    %4326 = vmatpush.bf16.msra.mxu0 %v3743
    %4327 = vmatpush.bf16.msra.mxu0 %v3737
    %4328 = vmatpush.bf16.msra.mxu0 %v3731
    %4329 = vmatpush.bf16.msra.mxu0 %v3725
    %4330 = vmatpush.bf16.msra.mxu0 %v3719
    %4331 = vmatpush.bf16.msra.mxu0 %v3713
    %4332 = vmatpush.bf16.msra.mxu0 %v3707
    %4333 = vmatpush.bf16.msra.mxu0 %v3701
    %4334 = vmatmul.bf16.gmra.mxu0 %v2386
    %v4335 = vpop.f32.mrf.mxu0
    %v4336 = vadd.f32 %v4323, %v4335
    %v4337 = vpop.f32.mrf.mxu0
    %4338 = vdwg.mxu0
    %4339 = vmatpush.bf16.msra.mxu0 %v3791
    %4340 = vmatpush.bf16.msra.mxu0 %v3785
    %4341 = vmatpush.bf16.msra.mxu0 %v3779
    %4342 = vmatpush.bf16.msra.mxu0 %v3773
    %4343 = vmatpush.bf16.msra.mxu0 %v3767
    %4344 = vmatpush.bf16.msra.mxu0 %v3761
    %4345 = vmatpush.bf16.msra.mxu0 %v3755
    %4346 = vmatpush.bf16.msra.mxu0 %v3749
    %4347 = vmatmul.bf16.gmra.mxu0 %v2387
    %v4348 = vpop.f32.mrf.mxu0
    %v4349 = vadd.f32 %v4336, %v4348
    %v4350 = vpop.f32.mrf.mxu0
    %4351 = vdwg.mxu0
    %4352 = vmatpush.bf16.msra.mxu0 %v3839
    %4353 = vmatpush.bf16.msra.mxu0 %v3833
    %4354 = vmatpush.bf16.msra.mxu0 %v3827
    %4355 = vmatpush.bf16.msra.mxu0 %v3821
    %4356 = vmatpush.bf16.msra.mxu0 %v3815
    %4357 = vmatpush.bf16.msra.mxu0 %v3809
    %4358 = vmatpush.bf16.msra.mxu0 %v3803
    %4359 = vmatpush.bf16.msra.mxu0 %v3797
    %4360 = vmatmul.bf16.gmra.mxu0 %v2388
    %v4361 = vpop.f32.mrf.mxu0
    %v4362 = vadd.f32 %v4349, %v4361
    %v4363 = vpop.f32.mrf.mxu0
    %4364 = vdwg.mxu0
    %4365 = vmatpush.bf16.msra.mxu0 %v3600
    %4366 = vmatpush.bf16.msra.mxu0 %v3594
    %4367 = vmatpush.bf16.msra.mxu0 %v3588
    %4368 = vmatpush.bf16.msra.mxu0 %v3582
    %4369 = vmatpush.bf16.msra.mxu0 %v3576
    %4370 = vmatpush.bf16.msra.mxu0 %v3570
    %4371 = vmatpush.bf16.msra.mxu0 %v3564
    %4372 = vmatpush.bf16.msra.mxu0 %v3558
    %4373 = vmatmul.bf16.gmra.mxu0 %v2383
    %v4374 = vpop.f32.mrf.mxu0
    %v4375 = vadd.f32 %v2682, %v4374
    %v4376 = vpop.f32.mrf.mxu0
    %4377 = vdwg.mxu0
    %4378 = vmatpush.bf16.msra.mxu0 %v3648
    %4379 = vmatpush.bf16.msra.mxu0 %v3642
    %4380 = vmatpush.bf16.msra.mxu0 %v3636
    %4381 = vmatpush.bf16.msra.mxu0 %v3630
    %4382 = vmatpush.bf16.msra.mxu0 %v3624
    %4383 = vmatpush.bf16.msra.mxu0 %v3618
    %4384 = vmatpush.bf16.msra.mxu0 %v3612
    %4385 = vmatpush.bf16.msra.mxu0 %v3606
    %4386 = vmatmul.bf16.gmra.mxu0 %v2384
    %v4387 = vpop.f32.mrf.mxu0
    %v4388 = vadd.f32 %v4375, %v4387
    %v4389 = vpop.f32.mrf.mxu0
    %4390 = vdwg.mxu0
    %4391 = vmatpush.bf16.msra.mxu0 %v3696
    %4392 = vmatpush.bf16.msra.mxu0 %v3690
    %4393 = vmatpush.bf16.msra.mxu0 %v3684
    %4394 = vmatpush.bf16.msra.mxu0 %v3678
    %4395 = vmatpush.bf16.msra.mxu0 %v3672
    %4396 = vmatpush.bf16.msra.mxu0 %v3666
    %4397 = vmatpush.bf16.msra.mxu0 %v3660
    %4398 = vmatpush.bf16.msra.mxu0 %v3654
    %4399 = vmatmul.bf16.gmra.mxu0 %v2385
    %v4400 = vpop.f32.mrf.mxu0
    %v4401 = vadd.f32 %v4388, %v4400
    %v4402 = vpop.f32.mrf.mxu0
    %4403 = vdwg.mxu0
    %4404 = vmatpush.bf16.msra.mxu0 %v3744
    %4405 = vmatpush.bf16.msra.mxu0 %v3738
    %4406 = vmatpush.bf16.msra.mxu0 %v3732
    %4407 = vmatpush.bf16.msra.mxu0 %v3726
    %4408 = vmatpush.bf16.msra.mxu0 %v3720
    %4409 = vmatpush.bf16.msra.mxu0 %v3714
    %4410 = vmatpush.bf16.msra.mxu0 %v3708
    %4411 = vmatpush.bf16.msra.mxu0 %v3702
    %4412 = vmatmul.bf16.gmra.mxu0 %v2386
    %v4413 = vpop.f32.mrf.mxu0
    %v4414 = vadd.f32 %v4401, %v4413
    %v4415 = vpop.f32.mrf.mxu0
    %4416 = vdwg.mxu0
    %4417 = vmatpush.bf16.msra.mxu0 %v3792
    %4418 = vmatpush.bf16.msra.mxu0 %v3786
    %4419 = vmatpush.bf16.msra.mxu0 %v3780
    %4420 = vmatpush.bf16.msra.mxu0 %v3774
    %4421 = vmatpush.bf16.msra.mxu0 %v3768
    %4422 = vmatpush.bf16.msra.mxu0 %v3762
    %4423 = vmatpush.bf16.msra.mxu0 %v3756
    %4424 = vmatpush.bf16.msra.mxu0 %v3750
    %4425 = vmatmul.bf16.gmra.mxu0 %v2387
    %v4426 = vpop.f32.mrf.mxu0
    %v4427 = vadd.f32 %v4414, %v4426
    %v4428 = vpop.f32.mrf.mxu0
    %4429 = vdwg.mxu0
    %4430 = vmatpush.bf16.msra.mxu0 %v3840
    %4431 = vmatpush.bf16.msra.mxu0 %v3834
    %4432 = vmatpush.bf16.msra.mxu0 %v3828
    %4433 = vmatpush.bf16.msra.mxu0 %v3822
    %4434 = vmatpush.bf16.msra.mxu0 %v3816
    %4435 = vmatpush.bf16.msra.mxu0 %v3810
    %4436 = vmatpush.bf16.msra.mxu0 %v3804
    %4437 = vmatpush.bf16.msra.mxu0 %v3798
    %4438 = vmatmul.bf16.gmra.mxu0 %v2388
    %v4439 = vpop.f32.mrf.mxu0
    %v4440 = vadd.f32 %v4427, %v4439
    %v4441 = vpop.f32.mrf.mxu0
    %4442 = vdwg.mxu0
    %4443 = vmatpush.bf16.msra.mxu0 %v3601
    %4444 = vmatpush.bf16.msra.mxu0 %v3595
    %4445 = vmatpush.bf16.msra.mxu0 %v3589
    %4446 = vmatpush.bf16.msra.mxu0 %v3583
    %4447 = vmatpush.bf16.msra.mxu0 %v3577
    %4448 = vmatpush.bf16.msra.mxu0 %v3571
    %4449 = vmatpush.bf16.msra.mxu0 %v3565
    %4450 = vmatpush.bf16.msra.mxu0 %v3559
    %4451 = vmatmul.bf16.gmra.mxu0 %v2383
    %v4452 = vpop.f32.mrf.mxu0
    %v4453 = vadd.f32 %v2683, %v4452
    %v4454 = vpop.f32.mrf.mxu0
    %4455 = vdwg.mxu0
    %4456 = vmatpush.bf16.msra.mxu0 %v3649
    %4457 = vmatpush.bf16.msra.mxu0 %v3643
    %4458 = vmatpush.bf16.msra.mxu0 %v3637
    %4459 = vmatpush.bf16.msra.mxu0 %v3631
    %4460 = vmatpush.bf16.msra.mxu0 %v3625
    %4461 = vmatpush.bf16.msra.mxu0 %v3619
    %4462 = vmatpush.bf16.msra.mxu0 %v3613
    %4463 = vmatpush.bf16.msra.mxu0 %v3607
    %4464 = vmatmul.bf16.gmra.mxu0 %v2384
    %v4465 = vpop.f32.mrf.mxu0
    %v4466 = vadd.f32 %v4453, %v4465
    %v4467 = vpop.f32.mrf.mxu0
    %4468 = vdwg.mxu0
    %4469 = vmatpush.bf16.msra.mxu0 %v3697
    %4470 = vmatpush.bf16.msra.mxu0 %v3691
    %4471 = vmatpush.bf16.msra.mxu0 %v3685
    %4472 = vmatpush.bf16.msra.mxu0 %v3679
    %4473 = vmatpush.bf16.msra.mxu0 %v3673
    %4474 = vmatpush.bf16.msra.mxu0 %v3667
    %4475 = vmatpush.bf16.msra.mxu0 %v3661
    %4476 = vmatpush.bf16.msra.mxu0 %v3655
    %4477 = vmatmul.bf16.gmra.mxu0 %v2385
    %v4478 = vpop.f32.mrf.mxu0
    %v4479 = vadd.f32 %v4466, %v4478
    %v4480 = vpop.f32.mrf.mxu0
    %4481 = vdwg.mxu0
    %4482 = vmatpush.bf16.msra.mxu0 %v3745
    %4483 = vmatpush.bf16.msra.mxu0 %v3739
    %4484 = vmatpush.bf16.msra.mxu0 %v3733
    %4485 = vmatpush.bf16.msra.mxu0 %v3727
    %4486 = vmatpush.bf16.msra.mxu0 %v3721
    %4487 = vmatpush.bf16.msra.mxu0 %v3715
    %4488 = vmatpush.bf16.msra.mxu0 %v3709
    %4489 = vmatpush.bf16.msra.mxu0 %v3703
    %4490 = vmatmul.bf16.gmra.mxu0 %v2386
    %v4491 = vpop.f32.mrf.mxu0
    %v4492 = vadd.f32 %v4479, %v4491
    %v4493 = vpop.f32.mrf.mxu0
    %4494 = vdwg.mxu0
    %4495 = vmatpush.bf16.msra.mxu0 %v3793
    %4496 = vmatpush.bf16.msra.mxu0 %v3787
    %4497 = vmatpush.bf16.msra.mxu0 %v3781
    %4498 = vmatpush.bf16.msra.mxu0 %v3775
    %4499 = vmatpush.bf16.msra.mxu0 %v3769
    %4500 = vmatpush.bf16.msra.mxu0 %v3763
    %4501 = vmatpush.bf16.msra.mxu0 %v3757
    %4502 = vmatpush.bf16.msra.mxu0 %v3751
    %4503 = vmatmul.bf16.gmra.mxu0 %v2387
    %v4504 = vpop.f32.mrf.mxu0
    %v4505 = vadd.f32 %v4492, %v4504
    %v4506 = vpop.f32.mrf.mxu0
    %4507 = vdwg.mxu0
    %4508 = vmatpush.bf16.msra.mxu0 %v3841
    %4509 = vmatpush.bf16.msra.mxu0 %v3835
    %4510 = vmatpush.bf16.msra.mxu0 %v3829
    %4511 = vmatpush.bf16.msra.mxu0 %v3823
    %4512 = vmatpush.bf16.msra.mxu0 %v3817
    %4513 = vmatpush.bf16.msra.mxu0 %v3811
    %4514 = vmatpush.bf16.msra.mxu0 %v3805
    %4515 = vmatpush.bf16.msra.mxu0 %v3799
    %4516 = vmatmul.bf16.gmra.mxu0 %v2388
    %v4517 = vpop.f32.mrf.mxu0
    %v4518 = vadd.f32 %v4505, %v4517
    %v4519 = vpop.f32.mrf.mxu0
    %4520 = vdwg.mxu0
    %4521 = vmatpush.bf16.msra.mxu0 %v3602
    %4522 = vmatpush.bf16.msra.mxu0 %v3596
    %4523 = vmatpush.bf16.msra.mxu0 %v3590
    %4524 = vmatpush.bf16.msra.mxu0 %v3584
    %4525 = vmatpush.bf16.msra.mxu0 %v3578
    %4526 = vmatpush.bf16.msra.mxu0 %v3572
    %4527 = vmatpush.bf16.msra.mxu0 %v3566
    %4528 = vmatpush.bf16.msra.mxu0 %v3560
    %4529 = vmatmul.bf16.gmra.mxu0 %v2383
    %v4530 = vpop.f32.mrf.mxu0
    %v4531 = vadd.f32 %v2684, %v4530
    %v4532 = vpop.f32.mrf.mxu0
    %4533 = vdwg.mxu0
    %4534 = vmatpush.bf16.msra.mxu0 %v3650
    %4535 = vmatpush.bf16.msra.mxu0 %v3644
    %4536 = vmatpush.bf16.msra.mxu0 %v3638
    %4537 = vmatpush.bf16.msra.mxu0 %v3632
    %4538 = vmatpush.bf16.msra.mxu0 %v3626
    %4539 = vmatpush.bf16.msra.mxu0 %v3620
    %4540 = vmatpush.bf16.msra.mxu0 %v3614
    %4541 = vmatpush.bf16.msra.mxu0 %v3608
    %4542 = vmatmul.bf16.gmra.mxu0 %v2384
    %v4543 = vpop.f32.mrf.mxu0
    %v4544 = vadd.f32 %v4531, %v4543
    %v4545 = vpop.f32.mrf.mxu0
    %4546 = vdwg.mxu0
    %4547 = vmatpush.bf16.msra.mxu0 %v3698
    %4548 = vmatpush.bf16.msra.mxu0 %v3692
    %4549 = vmatpush.bf16.msra.mxu0 %v3686
    %4550 = vmatpush.bf16.msra.mxu0 %v3680
    %4551 = vmatpush.bf16.msra.mxu0 %v3674
    %4552 = vmatpush.bf16.msra.mxu0 %v3668
    %4553 = vmatpush.bf16.msra.mxu0 %v3662
    %4554 = vmatpush.bf16.msra.mxu0 %v3656
    %4555 = vmatmul.bf16.gmra.mxu0 %v2385
    %v4556 = vpop.f32.mrf.mxu0
    %v4557 = vadd.f32 %v4544, %v4556
    %v4558 = vpop.f32.mrf.mxu0
    %4559 = vdwg.mxu0
    %4560 = vmatpush.bf16.msra.mxu0 %v3746
    %4561 = vmatpush.bf16.msra.mxu0 %v3740
    %4562 = vmatpush.bf16.msra.mxu0 %v3734
    %4563 = vmatpush.bf16.msra.mxu0 %v3728
    %4564 = vmatpush.bf16.msra.mxu0 %v3722
    %4565 = vmatpush.bf16.msra.mxu0 %v3716
    %4566 = vmatpush.bf16.msra.mxu0 %v3710
    %4567 = vmatpush.bf16.msra.mxu0 %v3704
    %4568 = vmatmul.bf16.gmra.mxu0 %v2386
    %v4569 = vpop.f32.mrf.mxu0
    %v4570 = vadd.f32 %v4557, %v4569
    %v4571 = vpop.f32.mrf.mxu0
    %4572 = vdwg.mxu0
    %4573 = vmatpush.bf16.msra.mxu0 %v3794
    %4574 = vmatpush.bf16.msra.mxu0 %v3788
    %4575 = vmatpush.bf16.msra.mxu0 %v3782
    %4576 = vmatpush.bf16.msra.mxu0 %v3776
    %4577 = vmatpush.bf16.msra.mxu0 %v3770
    %4578 = vmatpush.bf16.msra.mxu0 %v3764
    %4579 = vmatpush.bf16.msra.mxu0 %v3758
    %4580 = vmatpush.bf16.msra.mxu0 %v3752
    %4581 = vmatmul.bf16.gmra.mxu0 %v2387
    %v4582 = vpop.f32.mrf.mxu0
    %v4583 = vadd.f32 %v4570, %v4582
    %v4584 = vpop.f32.mrf.mxu0
    %4585 = vdwg.mxu0
    %4586 = vmatpush.bf16.msra.mxu0 %v3842
    %4587 = vmatpush.bf16.msra.mxu0 %v3836
    %4588 = vmatpush.bf16.msra.mxu0 %v3830
    %4589 = vmatpush.bf16.msra.mxu0 %v3824
    %4590 = vmatpush.bf16.msra.mxu0 %v3818
    %4591 = vmatpush.bf16.msra.mxu0 %v3812
    %4592 = vmatpush.bf16.msra.mxu0 %v3806
    %4593 = vmatpush.bf16.msra.mxu0 %v3800
    %4594 = vmatmul.bf16.gmra.mxu0 %v2388
    %v4595 = vpop.f32.mrf.mxu0
    %v4596 = vadd.f32 %v4583, %v4595
    %v4597 = vpop.f32.mrf.mxu0
    %4598 = vdwg.mxu0
    %v4599 = vmax.f32 %v4206, 0.0
    %v4600 = vmax.f32 %v4284, 0.0
    %v4601 = vmax.f32 %v4362, 0.0
    %v4602 = vmax.f32 %v4440, 0.0
    %v4603 = vmax.f32 %v4518, 0.0
    %v4604 = vmax.f32 %v4596, 0.0
    %v4605 = vld [vmem:[#allocation13] sm:$0x3f]
    %v4607 = vperm.slane %v4605, 0
    %v4608 = vperm.slane %v4605, 1
    %v4609 = vperm.slane %v4605, 2
    %v4610 = vperm.slane %v4605, 3
    %v4611 = vperm.slane %v4605, 4
    %v4612 = vperm.slane %v4605, 5
    %v4619 = vmul.f32 %v4599, %v4607
    %v4620 = vmul.f32 %v4600, %v4608
    %v4621 = vmul.f32 %v4601, %v4609
    %v4622 = vmul.f32 %v4602, %v4610
    %v4623 = vmul.f32 %v4603, %v4611
    %v4624 = vmul.f32 %v4604, %v4612
    %v4625 = vadd.f32 %v4619, %v4620
    %v4626 = vadd.f32 %v4625, %v4621
    %v4627 = vadd.f32 %v4626, %v4622
    %v4628 = vadd.f32 %v4627, %v4623
    %v4629 = vadd.f32 %v4628, %v4624
    %4630 = vadd.xlane.f32.xlu0 %v4629
    %v4631 = vpop.xlane.xlu0 %4630
    %v4632 = vld [vmem:[#allocation14] sm:$0x1]
    %v4634 = vperm.slane %v4632, 0
    %v4636 = vadd.f32 %v4631, %v4634
    %4637 = vst [vmem:[#allocation16] sm:$0xff] %v4636
    // Predicated region
    $region66: #{tpu_custom_call.1} parent=1 // pred_check
      _
    $region67: #{tpu_custom_call.1} parent=1 // pred_check_branch
      %4639 = sbr.rel (0) target = $region69
    $region68: #{tpu_custom_call.1} parent=1 // pred_region
      %4641 = vsyncadd [#allocation4], 0
      %s4643 = sshll.u32 [#allocation16], 4
      %s4644 = int_to_ptr.vmem [resolvable:$true] %s4643
      %s4645 = sshll.u32 %s8, 4
      %s4646 = int_to_ptr.hbm [resolvable:$true] %s4645
      %4648 = dma.vmem_to_hbm [thread:$0]  %s4644, 128, %s4646, [#allocation4]
    $region69: #{tpu_custom_call.1} parent=1 // pred_fallthru
      _
    // Predicated region
    $region70: #{tpu_custom_call.1} parent=1 // pred_check
      _
    $region71: #{tpu_custom_call.1} parent=1 // pred_check_branch
      %4650 = sbr.rel (0) target = $region73
    $region72: #{tpu_custom_call.1} parent=1 // pred_region
      %4652 = dma.done [#allocation4], 128
    $region73: #{tpu_custom_call.1} parent=1 // pred_fallthru
      _
    %4653 = vsyncpa [#allocation3], 1
    %4654 = vsyncpa [#allocation6], 1
    %4655 = vsyncpa [#allocation9], 1
    %4656 = vsyncpa [#allocation12], 1
    %4657 = vsyncpa [#allocation15], 1
    %4658 = vsyncpa [#allocation4], 1

</llo_original>
